<compile_context>
chip_gen: v7x
topology: tpu7x:2x2x1
jax: 0.10.0
libtpu: 0.0.40
codegen_flags: <defaults>
</compile_context>

<pallas_src>
import jax
import jax.numpy as jnp
from jax.experimental import pallas as pl
from jax.experimental.pallas import tpu as pltpu

BN_EPS = 1e-5
FINAL_PAD = 128  # pad the 4-wide merged final layer to a lane-dense 128 cols


# ----------------------------------------------------------------------------
# Fused head kernel: fc_b1 -> [merged fc0] -> [merged fc1] -> [merged final]
# BN already folded into the weights; dropout is identity in eval mode.
# ----------------------------------------------------------------------------
def _head_kernel(x_ref, w1_ref, b1_ref, w2_ref, b2_ref, w3_ref, b3_ref,
                 w4_ref, b4_ref, o_ref):
    # fc_b1: [tb,2048] @ [2048,512] + b, relu
    h = jnp.dot(x_ref[...].astype(jnp.bfloat16), w1_ref[...],
                preferred_element_type=jnp.float32) + b1_ref[...]
    h = jnp.maximum(h, 0.0)
    # both heads' fc0 (concat): [tb,512] @ [512,256] + b, relu
    h = jnp.dot(h.astype(jnp.bfloat16), w2_ref[...],
                preferred_element_type=jnp.float32) + b2_ref[...]
    h = jnp.maximum(h, 0.0)
    # both heads' fc1 (block-diag): [tb,256] @ [256,128] + b, relu
    h = jnp.dot(h.astype(jnp.bfloat16), w3_ref[...],
                preferred_element_type=jnp.float32) + b3_ref[...]
    h = jnp.maximum(h, 0.0)
    # both heads' final Linear(64,2) (block-diag, lane-padded to 128)
    y = jnp.dot(h.astype(jnp.bfloat16), w4_ref[...],
                preferred_element_type=jnp.float32) + b4_ref[...]
    o_ref[...] = y.astype(o_ref.dtype)


def fused_head(feats, kp):
    """feats: [B, 2048] f32 -> [y0, y1], each [B, 2] f32."""
    B, fin = feats.shape
    assert fin == 2048
    # Tile the batch so large B pipelines and shards across TensorCores;
    # weights are grid-resident (constant block index).
    tb = B if B <= 512 else 256
    grid = (pl.cdiv(B, tb),)

    out = pl.pallas_call(
        _head_kernel,
        out_shape=jax.ShapeDtypeStruct((B, FINAL_PAD), jnp.float32),
        grid=grid,
        in_specs=[
            pl.BlockSpec((tb, 2048), lambda i: (i, 0)),          # feats tile
            pl.BlockSpec((2048, 512), lambda i: (0, 0)),         # w1 (bf16)
            pl.BlockSpec((1, 512), lambda i: (0, 0)),            # b1
            pl.BlockSpec((512, 256), lambda i: (0, 0)),          # w2 (bf16)
            pl.BlockSpec((1, 256), lambda i: (0, 0)),            # b2
            pl.BlockSpec((256, 128), lambda i: (0, 0)),          # w3 (bf16)
            pl.BlockSpec((1, 128), lambda i: (0, 0)),            # b3
            pl.BlockSpec((128, FINAL_PAD), lambda i: (0, 0)),    # w4 (bf16)
            pl.BlockSpec((1, FINAL_PAD), lambda i: (0, 0)),      # b4
        ],
        out_specs=pl.BlockSpec((tb, FINAL_PAD), lambda i: (i, 0)),
        compiler_params=pltpu.CompilerParams(
            dimension_semantics=("parallel",)),
    )(feats, kp["w1"], kp["b1"], kp["w2"], kp["b2"],
      kp["w3"], kp["b3"], kp["w4"], kp["b4"])

    # Slice the lane-padded output into the two [B, 2] classifier outputs.
    return [out[:, 0:2], out[:, 2:4]]


# ----------------------------------------------------------------------------
# Deterministic parameter construction (matches the torch __init__ shapes)
# ----------------------------------------------------------------------------
def _init_linear(key, fan_in, fan_out):
    kw, kb = jax.random.split(key)
    bound = 1.0 / jnp.sqrt(jnp.float32(fan_in))
    w = jax.random.uniform(kw, (fan_in, fan_out), jnp.float32, -bound, bound)
    b = jax.random.uniform(kb, (fan_out,), jnp.float32, -bound, bound)
    return w, b


def _init_fc_block(key, fan_in, fan_out):
    w, b = _init_linear(key, fan_in, fan_out)
    return {
        "w": w, "b": b,
        # BatchNorm1d fresh-init, eval mode uses running stats.
        "gamma": jnp.ones((fan_out,), jnp.float32),
        "beta": jnp.zeros((fan_out,), jnp.float32),
        "mean": jnp.zeros((fan_out,), jnp.float32),
        "var": jnp.ones((fan_out,), jnp.float32),
    }


def init_params(key):
    keys = jax.random.split(key, 1 + 6 * 3)
    params = {"fc_b1": _init_fc_block(keys[0], 2048, 512), "classifiers": []}
    for i in range(6):  # torch __init__ builds 6 classifier heads
        k0, k1, k2 = keys[1 + 3 * i], keys[2 + 3 * i], keys[3 + 3 * i]
        fw, fb = _init_linear(k2, 64, 2)
        params["classifiers"].append({
            "fc0": _init_fc_block(k0, 512, 128),
            "fc1": _init_fc_block(k1, 128, 64),
            "final_w": fw,
            "final_b": fb,
        })
    return params


def _fold_bn(block):
    """Fold eval-mode BatchNorm1d into the preceding Linear."""
    scale = block["gamma"] / jnp.sqrt(block["var"] + BN_EPS)
    shift = block["beta"] - block["mean"] * scale
    w = block["w"] * scale[None, :]
    b = block["b"] * scale + shift
    return w, b


def prepare_kernel_params(params):
    """One-time precompute: fold BN, merge the 2 live heads, cast weights
    to bf16 (biases stay f32)."""
    w1, b1 = _fold_bn(params["fc_b1"])

    c0 = params["classifiers"][0]
    c1 = params["classifiers"][1]

    # fc0 of both heads -> concat along output features: [512, 256]
    w0a, b0a = _fold_bn(c0["fc0"])
    w1a, b1a = _fold_bn(c1["fc0"])
    w2 = jnp.concatenate([w0a, w1a], axis=1)
    b2 = jnp.concatenate([b0a, b1a], axis=0)

    # fc1 of both heads -> block-diagonal [256, 128]
    w0b, b0b = _fold_bn(c0["fc1"])
    w1b, b1b = _fold_bn(c1["fc1"])
    w3 = jnp.zeros((256, 128), jnp.float32)
    w3 = w3.at[0:128, 0:64].set(w0b).at[128:256, 64:128].set(w1b)
    b3 = jnp.concatenate([b0b, b1b], axis=0)

    # final Linear(64, 2) of both heads -> block-diag, lane-padded [128, 128]
    w4 = jnp.zeros((128, FINAL_PAD), jnp.float32)
    w4 = w4.at[0:64, 0:2].set(c0["final_w"]).at[64:128, 2:4].set(c1["final_w"])
    b4 = jnp.zeros((FINAL_PAD,), jnp.float32)
    b4 = b4.at[0:2].set(c0["final_b"]).at[2:4].set(c1["final_b"])

    bf16 = jnp.bfloat16
    return {
        "w1": w1.astype(bf16), "b1": b1.reshape(1, -1),
        "w2": w2.astype(bf16), "b2": b2.reshape(1, -1),
        "w3": w3.astype(bf16), "b3": b3.reshape(1, -1),
        "w4": w4.astype(bf16), "b4": b4.reshape(1, -1),
    }


if __name__ == "__main__":
    key = jax.random.PRNGKey(0)
    k_param, k_data = jax.random.split(key)

    params = init_params(k_param)
    kparams = prepare_kernel_params(params)   # free one-time precompute

    batch = 2
    feats = jax.random.normal(k_data, (batch, 2048), jnp.float32)

    outputs = jax.jit(fused_head)(feats, kparams)
    outputs = jax.block_until_ready(outputs)

    assert len(outputs) == 2
    for o in outputs:
        assert o.shape == (batch, 2)

    print("KERNEL_OK")
</pallas_src>

<mosaic_0001>
module attributes {stable_mosaic.version = 11 : i64} {
  func.func @_head_kernel(%arg0: i32, %arg1: memref<2x2048xf32, #tpu.memory_space<vmem>>, %arg2: memref<2048x512xbf16, #tpu.memory_space<vmem>>, %arg3: memref<1x512xf32, #tpu.memory_space<vmem>>, %arg4: memref<512x256xbf16, #tpu.memory_space<vmem>>, %arg5: memref<1x256xf32, #tpu.memory_space<vmem>>, %arg6: memref<256x128xbf16, #tpu.memory_space<vmem>>, %arg7: memref<1x128xf32, #tpu.memory_space<vmem>>, %arg8: memref<128x128xbf16, #tpu.memory_space<vmem>>, %arg9: memref<1x128xf32, #tpu.memory_space<vmem>>, %arg10: memref<2x128xf32, #tpu.memory_space<vmem>>) attributes {dimension_semantics = [#tpu.dimension_semantics<parallel>], iteration_bounds = array<i64: 1>, scalar_prefetch = 0 : i64, scratch_operands = 0 : i64, tpu.core_type = #tpu.core_type<tc>, window_params = [{transform_indices = @transform_0, window_bounds = array<i64: 2, 2048>}, {pipeline_mode = #tpu.pipeline_mode<synchronous>, transform_indices = @transform_1, window_bounds = array<i64: 2048, 512>}, {pipeline_mode = #tpu.pipeline_mode<synchronous>, transform_indices = @transform_2, window_bounds = array<i64: 1, 512>}, {pipeline_mode = #tpu.pipeline_mode<synchronous>, transform_indices = @transform_3, window_bounds = array<i64: 512, 256>}, {pipeline_mode = #tpu.pipeline_mode<synchronous>, transform_indices = @transform_4, window_bounds = array<i64: 1, 256>}, {pipeline_mode = #tpu.pipeline_mode<synchronous>, transform_indices = @transform_5, window_bounds = array<i64: 256, 128>}, {pipeline_mode = #tpu.pipeline_mode<synchronous>, transform_indices = @transform_6, window_bounds = array<i64: 1, 128>}, {pipeline_mode = #tpu.pipeline_mode<synchronous>, transform_indices = @transform_7, window_bounds = array<i64: 128, 128>}, {pipeline_mode = #tpu.pipeline_mode<synchronous>, transform_indices = @transform_8, window_bounds = array<i64: 1, 128>}, {transform_indices = @transform_9, window_bounds = array<i64: 2, 128>}]} {
    %c0 = arith.constant 0 : index
    %c0_0 = arith.constant 0 : index
    %0 = vector.load %arg1[%c0, %c0_0] : memref<2x2048xf32, #tpu.memory_space<vmem>>, vector<2x2048xf32>
    %1 = arith.truncf %0 : vector<2x2048xf32> to vector<2x2048xbf16>
    %c0_1 = arith.constant 0 : index
    %c0_2 = arith.constant 0 : index
    %2 = vector.load %arg2[%c0_1, %c0_2] : memref<2048x512xbf16, #tpu.memory_space<vmem>>, vector<2048x512xbf16>
    %cst = arith.constant dense<0.000000e+00> : vector<2x512xf32>
    %3 = tpu.matmul %1, %2, %cst {dimension_numbers = #tpu.dot_dimension_numbers<[1], [0], [0], [1], [0, 0, 1, 1], [], []>} : vector<2x2048xbf16>, vector<2048x512xbf16>, vector<2x512xf32> -> vector<2x512xf32>
    %c0_3 = arith.constant 0 : index
    %c0_4 = arith.constant 0 : index
    %4 = vector.load %arg3[%c0_3, %c0_4] : memref<1x512xf32, #tpu.memory_space<vmem>>, vector<1x512xf32>
    %5 = vector.broadcast %4 : vector<1x512xf32> to vector<2x512xf32>
    %6 = arith.addf %3, %5 : vector<2x512xf32>
    %cst_5 = arith.constant 0.000000e+00 : f32
    %7 = vector.broadcast %cst_5 : f32 to vector<2x512xf32>
    %8 = arith.maximumf %6, %7 : vector<2x512xf32>
    %9 = arith.truncf %8 : vector<2x512xf32> to vector<2x512xbf16>
    %c0_6 = arith.constant 0 : index
    %c0_7 = arith.constant 0 : index
    %10 = vector.load %arg4[%c0_6, %c0_7] : memref<512x256xbf16, #tpu.memory_space<vmem>>, vector<512x256xbf16>
    %cst_8 = arith.constant dense<0.000000e+00> : vector<2x256xf32>
    %11 = tpu.matmul %9, %10, %cst_8 {dimension_numbers = #tpu.dot_dimension_numbers<[1], [0], [0], [1], [0, 0, 1, 1], [], []>} : vector<2x512xbf16>, vector<512x256xbf16>, vector<2x256xf32> -> vector<2x256xf32>
    %c0_9 = arith.constant 0 : index
    %c0_10 = arith.constant 0 : index
    %12 = vector.load %arg5[%c0_9, %c0_10] : memref<1x256xf32, #tpu.memory_space<vmem>>, vector<1x256xf32>
    %13 = vector.broadcast %12 : vector<1x256xf32> to vector<2x256xf32>
    %14 = arith.addf %11, %13 : vector<2x256xf32>
    %cst_11 = arith.constant 0.000000e+00 : f32
    %15 = vector.broadcast %cst_11 : f32 to vector<2x256xf32>
    %16 = arith.maximumf %14, %15 : vector<2x256xf32>
    %17 = arith.truncf %16 : vector<2x256xf32> to vector<2x256xbf16>
    %c0_12 = arith.constant 0 : index
    %c0_13 = arith.constant 0 : index
    %18 = vector.load %arg6[%c0_12, %c0_13] : memref<256x128xbf16, #tpu.memory_space<vmem>>, vector<256x128xbf16>
    %cst_14 = arith.constant dense<0.000000e+00> : vector<2x128xf32>
    %19 = tpu.matmul %17, %18, %cst_14 {dimension_numbers = #tpu.dot_dimension_numbers<[1], [0], [0], [1], [0, 0, 1, 1], [], []>} : vector<2x256xbf16>, vector<256x128xbf16>, vector<2x128xf32> -> vector<2x128xf32>
    %c0_15 = arith.constant 0 : index
    %c0_16 = arith.constant 0 : index
    %20 = vector.load %arg7[%c0_15, %c0_16] : memref<1x128xf32, #tpu.memory_space<vmem>>, vector<1x128xf32>
    %21 = vector.broadcast %20 : vector<1x128xf32> to vector<2x128xf32>
    %22 = arith.addf %19, %21 : vector<2x128xf32>
    %cst_17 = arith.constant 0.000000e+00 : f32
    %23 = vector.broadcast %cst_17 : f32 to vector<2x128xf32>
    %24 = arith.maximumf %22, %23 : vector<2x128xf32>
    %25 = arith.truncf %24 : vector<2x128xf32> to vector<2x128xbf16>
    %c0_18 = arith.constant 0 : index
    %c0_19 = arith.constant 0 : index
    %26 = vector.load %arg8[%c0_18, %c0_19] : memref<128x128xbf16, #tpu.memory_space<vmem>>, vector<128x128xbf16>
    %cst_20 = arith.constant dense<0.000000e+00> : vector<2x128xf32>
    %27 = tpu.matmul %25, %26, %cst_20 {dimension_numbers = #tpu.dot_dimension_numbers<[1], [0], [0], [1], [0, 0, 1, 1], [], []>} : vector<2x128xbf16>, vector<128x128xbf16>, vector<2x128xf32> -> vector<2x128xf32>
    %c0_21 = arith.constant 0 : index
    %c0_22 = arith.constant 0 : index
    %28 = vector.load %arg9[%c0_21, %c0_22] : memref<1x128xf32, #tpu.memory_space<vmem>>, vector<1x128xf32>
    %29 = vector.broadcast %28 : vector<1x128xf32> to vector<2x128xf32>
    %30 = arith.addf %27, %29 : vector<2x128xf32>
    %c0_23 = arith.constant 0 : index
    %c0_24 = arith.constant 0 : index
    %31 = vector.load %arg10[%c0_23, %c0_24] : memref<2x128xf32, #tpu.memory_space<vmem>>, vector<2x128xf32>
    tpu.vector_store %arg10[%c0_23, %c0_24], %30 {strides = array<i32>} : memref<2x128xf32, #tpu.memory_space<vmem>>, vector<2x128xf32>,
    return
  }
  func.func @transform_0(%arg0: i32) -> (i32, i32) {
    %c0_i32 = arith.constant 0 : i32
    %c0_i32_0 = arith.constant 0 : i32
    return %arg0, %c0_i32 : i32, i32
  }
  func.func @transform_1(%arg0: i32) -> (i32, i32) {
    %c0_i32 = arith.constant 0 : i32
    %c0_i32_0 = arith.constant 0 : i32
    %c0_i32_1 = arith.constant 0 : i32
    return %c0_i32, %c0_i32_0 : i32, i32
  }
  func.func @transform_2(%arg0: i32) -> (i32, i32) {
    %c0_i32 = arith.constant 0 : i32
    %c0_i32_0 = arith.constant 0 : i32
    %c0_i32_1 = arith.constant 0 : i32
    return %c0_i32, %c0_i32_0 : i32, i32
  }
  func.func @transform_3(%arg0: i32) -> (i32, i32) {
    %c0_i32 = arith.constant 0 : i32
    %c0_i32_0 = arith.constant 0 : i32
    %c0_i32_1 = arith.constant 0 : i32
    return %c0_i32, %c0_i32_0 : i32, i32
  }
  func.func @transform_4(%arg0: i32) -> (i32, i32) {
    %c0_i32 = arith.constant 0 : i32
    %c0_i32_0 = arith.constant 0 : i32
    %c0_i32_1 = arith.constant 0 : i32
    return %c0_i32, %c0_i32_0 : i32, i32
  }
  func.func @transform_5(%arg0: i32) -> (i32, i32) {
    %c0_i32 = arith.constant 0 : i32
    %c0_i32_0 = arith.constant 0 : i32
    %c0_i32_1 = arith.constant 0 : i32
    return %c0_i32, %c0_i32_0 : i32, i32
  }
  func.func @transform_6(%arg0: i32) -> (i32, i32) {
    %c0_i32 = arith.constant 0 : i32
    %c0_i32_0 = arith.constant 0 : i32
    %c0_i32_1 = arith.constant 0 : i32
    return %c0_i32, %c0_i32_0 : i32, i32
  }
  func.func @transform_7(%arg0: i32) -> (i32, i32) {
    %c0_i32 = arith.constant 0 : i32
    %c0_i32_0 = arith.constant 0 : i32
    %c0_i32_1 = arith.constant 0 : i32
    return %c0_i32, %c0_i32_0 : i32, i32
  }
  func.func @transform_8(%arg0: i32) -> (i32, i32) {
    %c0_i32 = arith.constant 0 : i32
    %c0_i32_0 = arith.constant 0 : i32
    %c0_i32_1 = arith.constant 0 : i32
    return %c0_i32, %c0_i32_0 : i32, i32
  }
  func.func @transform_9(%arg0: i32) -> (i32, i32) {
    %c0_i32 = arith.constant 0 : i32
    %c0_i32_0 = arith.constant 0 : i32
    return %arg0, %c0_i32 : i32, i32
  }
}

</mosaic_0001>

<llo_original>
// kernel: fused_head.1
$region0: #{fused_head.1}
  #allocation0 [shape = 'u32[]', space=smem, size = 0x4, offset = 0x4, fixed_abs, tag = 'smem constant byte address 0x4 - core index']
  #allocation1 [shape = 'u32[144,128]{1,0:T(1,128)}', space=vmem, size = 0x12000, scoped, tag = 'internal scratch']
  %s0 = inlined_call_operand.hbm [shape: f32[2,2048], index: 0, kind: input, shape index: {}]
  %s1 = inlined_call_operand.hbm [shape: bf16[2048,512], index: 1, kind: input, shape index: {}]
  %s2 = inlined_call_operand.hbm [shape: f32[1,512], index: 2, kind: input, shape index: {}]
  %s3 = inlined_call_operand.hbm [shape: bf16[512,256], index: 3, kind: input, shape index: {}]
  %s4 = inlined_call_operand.hbm [shape: f32[1,256], index: 4, kind: input, shape index: {}]
  %s5 = inlined_call_operand.hbm [shape: bf16[256,128], index: 5, kind: input, shape index: {}]
  %s6 = inlined_call_operand.hbm [shape: f32[1,128], index: 6, kind: input, shape index: {}]
  %s7 = inlined_call_operand.hbm [shape: bf16[128,128], index: 7, kind: input, shape index: {}]
  %s8 = inlined_call_operand.hbm [shape: f32[1,128], index: 8, kind: input, shape index: {}]
  %s9 = inlined_call_operand.vmem [shape: f32[2,128], index: 9, kind: output, shape index: {}]
  %s10 = sld [smem:[#allocation0]]
  $region82: #{fused_head.1} parent=0
    _
  %s12 = ssub.s32 1, %s10
  %s13 = scalar_select 0, %s12, %s10
  $region1: #{fused_head.1} parent=0
    #allocation2 [shape = 'u8[16384]{0}', space=vmem, size = 0x4000, scoped, tag = 'input window, operand 0, single buffered']
    #allocation3 [shape = 's32[1]{0}', space=sflag, size = 0x4, scoped, tag = 'scoped memory for fused_head.1']
    #allocation4 [shape = 'u8[2097152]{0}', space=vmem, size = 0x200000, scoped, tag = 'input window, operand 1, single buffered']
    #allocation5 [shape = 's32[1]{0}', space=sflag, size = 0x4, scoped, tag = 'scoped memory for fused_head.1']
    #allocation6 [shape = 'u8[2048]{0}', space=vmem, size = 0x800, scoped, tag = 'input window, operand 2, single buffered']
    #allocation7 [shape = 'u8[262144]{0}', space=vmem, size = 0x40000, scoped, tag = 'input window, operand 3, single buffered']
    #allocation8 [shape = 's32[1]{0}', space=sflag, size = 0x4, scoped, tag = 'scoped memory for fused_head.1']
    #allocation9 [shape = 'u8[1024]{0}', space=vmem, size = 0x400, scoped, tag = 'input window, operand 4, single buffered']
    #allocation10 [shape = 'u8[65536]{0}', space=vmem, size = 0x10000, scoped, tag = 'input window, operand 5, single buffered']
    #allocation11 [shape = 's32[1]{0}', space=sflag, size = 0x4, scoped, tag = 'scoped memory for fused_head.1']
    #allocation12 [shape = 'u8[512]{0}', space=vmem, size = 0x400, scoped, tag = 'input window, operand 6, single buffered']
    #allocation13 [shape = 'u8[32768]{0}', space=vmem, size = 0x8000, scoped, tag = 'input window, operand 7, single buffered']
    #allocation14 [shape = 's32[1]{0}', space=sflag, size = 0x4, scoped, tag = 'scoped memory for fused_head.1']
    #allocation15 [shape = 'u8[512]{0}', space=vmem, size = 0x400, scoped, tag = 'input window, operand 8, single buffered']
    %14 = vsyncpa [#allocation3], 0
    %15 = vsyncpa [#allocation5], 0
    %16 = vsyncpa [#allocation8], 0
    %17 = vsyncpa [#allocation11], 0
    %18 = vsyncpa [#allocation14], 0
    // Predicated region
    $region2: #{fused_head.1} parent=1 // pred_check
      _
    $region3: #{fused_head.1} parent=1 // pred_check_branch
      %20 = sbr.rel (0) target = $region5
    $region4: #{fused_head.1} parent=1 // pred_region
      %s22 = ssub.s32 512, 512
      %23 = vsyncadd [#allocation3], %s22
      %s25 = sshll.u32 [#allocation2], 4
      %s26 = int_to_ptr.vmem [resolvable:$true] %s25
      %28 = dma.hbm_to_vmem [thread:$0]  %s0, 512, %s26, [#allocation3]
    $region5: #{fused_head.1} parent=1 // pred_fallthru
      _
    // Predicated region
    $region6: #{fused_head.1} parent=1 // pred_check
      _
    $region7: #{fused_head.1} parent=1 // pred_check_branch
      %30 = sbr.rel (0) target = $region9
    $region8: #{fused_head.1} parent=1 // pred_region
      %s32 = ssub.s32 65536, 65536
      %33 = vsyncadd [#allocation5], %s32
      %s34 = sshll.u32 [#allocation4], 4
      %s35 = int_to_ptr.vmem [resolvable:$true] %s34
      %40 = dma.hbm_to_vmem [thread:$0]  %s1, 65536, %s35, [#allocation5], 256, 256, 16
    $region9: #{fused_head.1} parent=1 // pred_fallthru
      _
    // Predicated region
    $region10: #{fused_head.1} parent=1 // pred_check
      _
    $region11: #{fused_head.1} parent=1 // pred_check_branch
      %42 = sbr.rel (0) target = $region13
    $region12: #{fused_head.1} parent=1 // pred_region
      %s44 = ssub.s32 64, 64
      %45 = vsyncadd [#allocation5], %s44
      %s47 = sshll.u32 [#allocation6], 4
      %s48 = int_to_ptr.vmem [resolvable:$true] %s47
      %50 = dma.hbm_to_vmem [thread:$0]  %s2, 64, %s48, [#allocation5]
    $region13: #{fused_head.1} parent=1 // pred_fallthru
      _
    // Predicated region
    $region14: #{fused_head.1} parent=1 // pred_check
      _
    $region15: #{fused_head.1} parent=1 // pred_check_branch
      %52 = sbr.rel (0) target = $region17
    $region16: #{fused_head.1} parent=1 // pred_region
      %s54 = ssub.s32 8192, 8192
      %55 = vsyncadd [#allocation8], %s54
      %s56 = sshll.u32 [#allocation7], 4
      %s57 = int_to_ptr.vmem [resolvable:$true] %s56
      %62 = dma.hbm_to_vmem [thread:$0]  %s3, 8192, %s57, [#allocation8], 128, 128, 8
    $region17: #{fused_head.1} parent=1 // pred_fallthru
      _
    // Predicated region
    $region18: #{fused_head.1} parent=1 // pred_check
      _
    $region19: #{fused_head.1} parent=1 // pred_check_branch
      %64 = sbr.rel (0) target = $region21
    $region20: #{fused_head.1} parent=1 // pred_region
      %s66 = ssub.s32 32, 32
      %67 = vsyncadd [#allocation8], %s66
      %s69 = sshll.u32 [#allocation9], 4
      %s70 = int_to_ptr.vmem [resolvable:$true] %s69
      %72 = dma.hbm_to_vmem [thread:$0]  %s4, 32, %s70, [#allocation8]
    $region21: #{fused_head.1} parent=1 // pred_fallthru
      _
    // Predicated region
    $region22: #{fused_head.1} parent=1 // pred_check
      _
    $region23: #{fused_head.1} parent=1 // pred_check_branch
      %74 = sbr.rel (0) target = $region25
    $region24: #{fused_head.1} parent=1 // pred_region
      %s76 = ssub.s32 2048, 2048
      %77 = vsyncadd [#allocation11], %s76
      %s78 = sshll.u32 [#allocation10], 4
      %s79 = int_to_ptr.vmem [resolvable:$true] %s78
      %84 = dma.hbm_to_vmem [thread:$0]  %s5, 2048, %s79, [#allocation11], 64, 64, 4
    $region25: #{fused_head.1} parent=1 // pred_fallthru
      _
    // Predicated region
    $region26: #{fused_head.1} parent=1 // pred_check
      _
    $region27: #{fused_head.1} parent=1 // pred_check_branch
      %86 = sbr.rel (0) target = $region29
    $region28: #{fused_head.1} parent=1 // pred_region
      %s88 = ssub.s32 16, 16
      %89 = vsyncadd [#allocation11], %s88
      %s91 = sshll.u32 [#allocation12], 4
      %s92 = int_to_ptr.vmem [resolvable:$true] %s91
      %94 = dma.hbm_to_vmem [thread:$0]  %s6, 16, %s92, [#allocation11]
    $region29: #{fused_head.1} parent=1 // pred_fallthru
      _
    // Predicated region
    $region30: #{fused_head.1} parent=1 // pred_check
      _
    $region31: #{fused_head.1} parent=1 // pred_check_branch
      %96 = sbr.rel (0) target = $region33
    $region32: #{fused_head.1} parent=1 // pred_region
      %s98 = ssub.s32 1024, 1024
      %99 = vsyncadd [#allocation14], %s98
      %s100 = sshll.u32 [#allocation13], 4
      %s101 = int_to_ptr.vmem [resolvable:$true] %s100
      %106 = dma.hbm_to_vmem [thread:$0]  %s7, 1024, %s101, [#allocation14], 64, 64, 4
    $region33: #{fused_head.1} parent=1 // pred_fallthru
      _
    // Predicated region
    $region34: #{fused_head.1} parent=1 // pred_check
      _
    $region35: #{fused_head.1} parent=1 // pred_check_branch
      %108 = sbr.rel (0) target = $region37
    $region36: #{fused_head.1} parent=1 // pred_region
      %s110 = ssub.s32 16, 16
      %111 = vsyncadd [#allocation14], %s110
      %s113 = sshll.u32 [#allocation15], 4
      %s114 = int_to_ptr.vmem [resolvable:$true] %s113
      %116 = dma.hbm_to_vmem [thread:$0]  %s8, 16, %s114, [#allocation14]
    $region37: #{fused_head.1} parent=1 // pred_fallthru
      _
    // Predicated region
    $region38: #{fused_head.1} parent=1 // pred_check
      _
    $region39: #{fused_head.1} parent=1 // pred_check_branch
      %118 = sbr.rel (0) target = $region41
    $region40: #{fused_head.1} parent=1 // pred_region
      %119 = dma.done [#allocation3], 512
    $region41: #{fused_head.1} parent=1 // pred_fallthru
      _
    // Predicated region
    $region42: #{fused_head.1} parent=1 // pred_check
      _
    $region43: #{fused_head.1} parent=1 // pred_check_branch
      %121 = sbr.rel (0) target = $region45
    $region44: #{fused_head.1} parent=1 // pred_region
      %122 = dma.done [#allocation5], 65536
    $region45: #{fused_head.1} parent=1 // pred_fallthru
      _
    // Predicated region
    $region46: #{fused_head.1} parent=1 // pred_check
      _
    $region47: #{fused_head.1} parent=1 // pred_check_branch
      %124 = sbr.rel (0) target = $region49
    $region48: #{fused_head.1} parent=1 // pred_region
      %125 = dma.done [#allocation5], 64
    $region49: #{fused_head.1} parent=1 // pred_fallthru
      _
    // Predicated region
    $region50: #{fused_head.1} parent=1 // pred_check
      _
    $region51: #{fused_head.1} parent=1 // pred_check_branch
      %127 = sbr.rel (0) target = $region53
    $region52: #{fused_head.1} parent=1 // pred_region
      %128 = dma.done [#allocation8], 8192
    $region53: #{fused_head.1} parent=1 // pred_fallthru
      _
    // Predicated region
    $region54: #{fused_head.1} parent=1 // pred_check
      _
    $region55: #{fused_head.1} parent=1 // pred_check_branch
      %130 = sbr.rel (0) target = $region57
    $region56: #{fused_head.1} parent=1 // pred_region
      %131 = dma.done [#allocation8], 32
    $region57: #{fused_head.1} parent=1 // pred_fallthru
      _
    // Predicated region
    $region58: #{fused_head.1} parent=1 // pred_check
      _
    $region59: #{fused_head.1} parent=1 // pred_check_branch
      %133 = sbr.rel (0) target = $region61
    $region60: #{fused_head.1} parent=1 // pred_region
      %134 = dma.done [#allocation11], 2048
    $region61: #{fused_head.1} parent=1 // pred_fallthru
      _
    // Predicated region
    $region62: #{fused_head.1} parent=1 // pred_check
      _
    $region63: #{fused_head.1} parent=1 // pred_check_branch
      %136 = sbr.rel (0) target = $region65
    $region64: #{fused_head.1} parent=1 // pred_region
      %137 = dma.done [#allocation11], 16
    $region65: #{fused_head.1} parent=1 // pred_fallthru
      _
    // Predicated region
    $region66: #{fused_head.1} parent=1 // pred_check
      _
    $region67: #{fused_head.1} parent=1 // pred_check_branch
      %139 = sbr.rel (0) target = $region69
    $region68: #{fused_head.1} parent=1 // pred_region
      %140 = dma.done [#allocation14], 1024
    $region69: #{fused_head.1} parent=1 // pred_fallthru
      _
    // Predicated region
    $region70: #{fused_head.1} parent=1 // pred_check
      _
    $region71: #{fused_head.1} parent=1 // pred_check_branch
      %142 = sbr.rel (0) target = $region73
    $region72: #{fused_head.1} parent=1 // pred_region
      %143 = dma.done [#allocation14], 16
    $region73: #{fused_head.1} parent=1 // pred_fallthru
      _
    %v145 = vld [vmem:[#allocation2] sm:$0xff]
    %v146 = vld [vmem:[#allocation2 + $0x8] sm:$0xff]
    %v147 = vld [vmem:[#allocation2 + $0x10] sm:$0xff]
    %v148 = vld [vmem:[#allocation2 + $0x18] sm:$0xff]
    %v153 = vcombine.high %v145, %v145
    %v155 = vunpack.c.l.s4 1983009808
    %v156 = vunpack.c.0.s8 %v155
    %v157 = vlaneseq
    %v158 = vshrl.u32 %v157, 7
    %v159 = vsub.s32 %v156, %v158
    %v160 = vrot.slane %v145, %v159
    %v162 = vunpack.c.l.s4 1983009808
    %v163 = vunpack.c.0.s8 %v162
    %v164 = vlaneseq
    %v165 = vshrl.u32 %v164, 7
    %v166 = vsub.s32 %v163, %v165
    %v167 = vrot.slane %v153, %v166
    %v168 = vcombine.high %v160, %v160
    %v169 = vcombine.high %v167, %v167
    %v170 = vcombine.high %v146, %v146
    %v172 = vunpack.c.l.s4 1983009808
    %v173 = vunpack.c.0.s8 %v172
    %v174 = vlaneseq
    %v175 = vshrl.u32 %v174, 7
    %v176 = vsub.s32 %v173, %v175
    %v177 = vrot.slane %v146, %v176
    %v179 = vunpack.c.l.s4 1983009808
    %v180 = vunpack.c.0.s8 %v179
    %v181 = vlaneseq
    %v182 = vshrl.u32 %v181, 7
    %v183 = vsub.s32 %v180, %v182
    %v184 = vrot.slane %v170, %v183
    %v185 = vcombine.high %v177, %v177
    %v186 = vcombine.high %v184, %v184
    %v187 = vcombine.high %v147, %v147
    %v189 = vunpack.c.l.s4 1983009808
    %v190 = vunpack.c.0.s8 %v189
    %v191 = vlaneseq
    %v192 = vshrl.u32 %v191, 7
    %v193 = vsub.s32 %v190, %v192
    %v194 = vrot.slane %v147, %v193
    %v196 = vunpack.c.l.s4 1983009808
    %v197 = vunpack.c.0.s8 %v196
    %v198 = vlaneseq
    %v199 = vshrl.u32 %v198, 7
    %v200 = vsub.s32 %v197, %v199
    %v201 = vrot.slane %v187, %v200
    %v202 = vcombine.high %v194, %v194
    %v203 = vcombine.high %v201, %v201
    %v204 = vcombine.high %v148, %v148
    %v206 = vunpack.c.l.s4 1983009808
    %v207 = vunpack.c.0.s8 %v206
    %v208 = vlaneseq
    %v209 = vshrl.u32 %v208, 7
    %v210 = vsub.s32 %v207, %v209
    %v211 = vrot.slane %v148, %v210
    %v213 = vunpack.c.l.s4 1983009808
    %v214 = vunpack.c.0.s8 %v213
    %v215 = vlaneseq
    %v216 = vshrl.u32 %v215, 7
    %v217 = vsub.s32 %v214, %v216
    %v218 = vrot.slane %v204, %v217
    %v219 = vcombine.high %v211, %v211
    %v220 = vcombine.high %v218, %v218
    %v237 = vpack.c.bf16 %v160, %v160
    %v238 = vpack.c.bf16 %v168, %v168
    %v239 = vpack.c.bf16 %v167, %v167
    %v240 = vpack.c.bf16 %v169, %v169
    %v241 = vpack.c.bf16 %v177, %v177
    %v242 = vpack.c.bf16 %v185, %v185
    %v243 = vpack.c.bf16 %v184, %v184
    %v244 = vpack.c.bf16 %v186, %v186
    %v245 = vpack.c.bf16 %v194, %v194
    %v246 = vpack.c.bf16 %v202, %v202
    %v247 = vpack.c.bf16 %v201, %v201
    %v248 = vpack.c.bf16 %v203, %v203
    %v249 = vpack.c.bf16 %v211, %v211
    %v250 = vpack.c.bf16 %v219, %v219
    %v251 = vpack.c.bf16 %v218, %v218
    %v252 = vpack.c.bf16 %v220, %v220
    %v253 = vld [vmem:[#allocation4] sm:$0xff]
    %v254 = vld [vmem:[#allocation4 + $0x8] sm:$0xff]
    %v255 = vld [vmem:[#allocation4 + $0x10] sm:$0xff]
    %v256 = vld [vmem:[#allocation4 + $0x18] sm:$0xff]
    %v257 = vld [vmem:[#allocation4 + $0x20] sm:$0xff]
    %v258 = vld [vmem:[#allocation4 + $0x28] sm:$0xff]
    %v259 = vld [vmem:[#allocation4 + $0x30] sm:$0xff]
    %v260 = vld [vmem:[#allocation4 + $0x38] sm:$0xff]
    %v261 = vld [vmem:[#allocation4 + $0x40] sm:$0xff]
    %v262 = vld [vmem:[#allocation4 + $0x48] sm:$0xff]
    %v263 = vld [vmem:[#allocation4 + $0x50] sm:$0xff]
    %v264 = vld [vmem:[#allocation4 + $0x58] sm:$0xff]
    %v265 = vld [vmem:[#allocation4 + $0x60] sm:$0xff]
    %v266 = vld [vmem:[#allocation4 + $0x68] sm:$0xff]
    %v267 = vld [vmem:[#allocation4 + $0x70] sm:$0xff]
    %v268 = vld [vmem:[#allocation4 + $0x78] sm:$0xff]
    %v269 = vld [vmem:[#allocation4 + $0x80] sm:$0xff]
    %v270 = vld [vmem:[#allocation4 + $0x88] sm:$0xff]
    %v271 = vld [vmem:[#allocation4 + $0x90] sm:$0xff]
    %v272 = vld [vmem:[#allocation4 + $0x98] sm:$0xff]
    %v273 = vld [vmem:[#allocation4 + $0xa0] sm:$0xff]
    %v274 = vld [vmem:[#allocation4 + $0xa8] sm:$0xff]
    %v275 = vld [vmem:[#allocation4 + $0xb0] sm:$0xff]
    %v276 = vld [vmem:[#allocation4 + $0xb8] sm:$0xff]
    %v277 = vld [vmem:[#allocation4 + $0xc0] sm:$0xff]
    %v278 = vld [vmem:[#allocation4 + $0xc8] sm:$0xff]
    %v279 = vld [vmem:[#allocation4 + $0xd0] sm:$0xff]
    %v280 = vld [vmem:[#allocation4 + $0xd8] sm:$0xff]
    %v281 = vld [vmem:[#allocation4 + $0xe0] sm:$0xff]
    %v282 = vld [vmem:[#allocation4 + $0xe8] sm:$0xff]
    %v283 = vld [vmem:[#allocation4 + $0xf0] sm:$0xff]
    %v284 = vld [vmem:[#allocation4 + $0xf8] sm:$0xff]
    %v285 = vld [vmem:[#allocation4 + $0x100] sm:$0xff]
    %v286 = vld [vmem:[#allocation4 + $0x108] sm:$0xff]
    %v287 = vld [vmem:[#allocation4 + $0x110] sm:$0xff]
    %v288 = vld [vmem:[#allocation4 + $0x118] sm:$0xff]
    %v289 = vld [vmem:[#allocation4 + $0x120] sm:$0xff]
    %v290 = vld [vmem:[#allocation4 + $0x128] sm:$0xff]
    %v291 = vld [vmem:[#allocation4 + $0x130] sm:$0xff]
    %v292 = vld [vmem:[#allocation4 + $0x138] sm:$0xff]
    %v293 = vld [vmem:[#allocation4 + $0x140] sm:$0xff]
    %v294 = vld [vmem:[#allocation4 + $0x148] sm:$0xff]
    %v295 = vld [vmem:[#allocation4 + $0x150] sm:$0xff]
    %v296 = vld [vmem:[#allocation4 + $0x158] sm:$0xff]
    %v297 = vld [vmem:[#allocation4 + $0x160] sm:$0xff]
    %v298 = vld [vmem:[#allocation4 + $0x168] sm:$0xff]
    %v299 = vld [vmem:[#allocation4 + $0x170] sm:$0xff]
    %v300 = vld [vmem:[#allocation4 + $0x178] sm:$0xff]
    %v301 = vld [vmem:[#allocation4 + $0x180] sm:$0xff]
    %v302 = vld [vmem:[#allocation4 + $0x188] sm:$0xff]
    %v303 = vld [vmem:[#allocation4 + $0x190] sm:$0xff]
    %v304 = vld [vmem:[#allocation4 + $0x198] sm:$0xff]
    %v305 = vld [vmem:[#allocation4 + $0x1a0] sm:$0xff]
    %v306 = vld [vmem:[#allocation4 + $0x1a8] sm:$0xff]
    %v307 = vld [vmem:[#allocation4 + $0x1b0] sm:$0xff]
    %v308 = vld [vmem:[#allocation4 + $0x1b8] sm:$0xff]
    %v309 = vld [vmem:[#allocation4 + $0x1c0] sm:$0xff]
    %v310 = vld [vmem:[#allocation4 + $0x1c8] sm:$0xff]
    %v311 = vld [vmem:[#allocation4 + $0x1d0] sm:$0xff]
    %v312 = vld [vmem:[#allocation4 + $0x1d8] sm:$0xff]
    %v313 = vld [vmem:[#allocation4 + $0x1e0] sm:$0xff]
    %v314 = vld [vmem:[#allocation4 + $0x1e8] sm:$0xff]
    %v315 = vld [vmem:[#allocation4 + $0x1f0] sm:$0xff]
    %v316 = vld [vmem:[#allocation4 + $0x1f8] sm:$0xff]
    %v317 = vld [vmem:[#allocation4 + $0x200] sm:$0xff]
    %v318 = vld [vmem:[#allocation4 + $0x208] sm:$0xff]
    %v319 = vld [vmem:[#allocation4 + $0x210] sm:$0xff]
    %v320 = vld [vmem:[#allocation4 + $0x218] sm:$0xff]
    %v321 = vld [vmem:[#allocation4 + $0x220] sm:$0xff]
    %v322 = vld [vmem:[#allocation4 + $0x228] sm:$0xff]
    %v323 = vld [vmem:[#allocation4 + $0x230] sm:$0xff]
    %v324 = vld [vmem:[#allocation4 + $0x238] sm:$0xff]
    %v325 = vld [vmem:[#allocation4 + $0x240] sm:$0xff]
    %v326 = vld [vmem:[#allocation4 + $0x248] sm:$0xff]
    %v327 = vld [vmem:[#allocation4 + $0x250] sm:$0xff]
    %v328 = vld [vmem:[#allocation4 + $0x258] sm:$0xff]
    %v329 = vld [vmem:[#allocation4 + $0x260] sm:$0xff]
    %v330 = vld [vmem:[#allocation4 + $0x268] sm:$0xff]
    %v331 = vld [vmem:[#allocation4 + $0x270] sm:$0xff]
    %v332 = vld [vmem:[#allocation4 + $0x278] sm:$0xff]
    %v333 = vld [vmem:[#allocation4 + $0x280] sm:$0xff]
    %v334 = vld [vmem:[#allocation4 + $0x288] sm:$0xff]
    %v335 = vld [vmem:[#allocation4 + $0x290] sm:$0xff]
    %v336 = vld [vmem:[#allocation4 + $0x298] sm:$0xff]
    %v337 = vld [vmem:[#allocation4 + $0x2a0] sm:$0xff]
    %v338 = vld [vmem:[#allocation4 + $0x2a8] sm:$0xff]
    %v339 = vld [vmem:[#allocation4 + $0x2b0] sm:$0xff]
    %v340 = vld [vmem:[#allocation4 + $0x2b8] sm:$0xff]
    %v341 = vld [vmem:[#allocation4 + $0x2c0] sm:$0xff]
    %v342 = vld [vmem:[#allocation4 + $0x2c8] sm:$0xff]
    %v343 = vld [vmem:[#allocation4 + $0x2d0] sm:$0xff]
    %v344 = vld [vmem:[#allocation4 + $0x2d8] sm:$0xff]
    %v345 = vld [vmem:[#allocation4 + $0x2e0] sm:$0xff]
    %v346 = vld [vmem:[#allocation4 + $0x2e8] sm:$0xff]
    %v347 = vld [vmem:[#allocation4 + $0x2f0] sm:$0xff]
    %v348 = vld [vmem:[#allocation4 + $0x2f8] sm:$0xff]
    %v349 = vld [vmem:[#allocation4 + $0x300] sm:$0xff]
    %v350 = vld [vmem:[#allocation4 + $0x308] sm:$0xff]
    %v351 = vld [vmem:[#allocation4 + $0x310] sm:$0xff]
    %v352 = vld [vmem:[#allocation4 + $0x318] sm:$0xff]
    %v353 = vld [vmem:[#allocation4 + $0x320] sm:$0xff]
    %v354 = vld [vmem:[#allocation4 + $0x328] sm:$0xff]
    %v355 = vld [vmem:[#allocation4 + $0x330] sm:$0xff]
    %v356 = vld [vmem:[#allocation4 + $0x338] sm:$0xff]
    %v357 = vld [vmem:[#allocation4 + $0x340] sm:$0xff]
    %v358 = vld [vmem:[#allocation4 + $0x348] sm:$0xff]
    %v359 = vld [vmem:[#allocation4 + $0x350] sm:$0xff]
    %v360 = vld [vmem:[#allocation4 + $0x358] sm:$0xff]
    %v361 = vld [vmem:[#allocation4 + $0x360] sm:$0xff]
    %v362 = vld [vmem:[#allocation4 + $0x368] sm:$0xff]
    %v363 = vld [vmem:[#allocation4 + $0x370] sm:$0xff]
    %v364 = vld [vmem:[#allocation4 + $0x378] sm:$0xff]
    %v365 = vld [vmem:[#allocation4 + $0x380] sm:$0xff]
    %v366 = vld [vmem:[#allocation4 + $0x388] sm:$0xff]
    %v367 = vld [vmem:[#allocation4 + $0x390] sm:$0xff]
    %v368 = vld [vmem:[#allocation4 + $0x398] sm:$0xff]
    %v369 = vld [vmem:[#allocation4 + $0x3a0] sm:$0xff]
    %v370 = vld [vmem:[#allocation4 + $0x3a8] sm:$0xff]
    %v371 = vld [vmem:[#allocation4 + $0x3b0] sm:$0xff]
    %v372 = vld [vmem:[#allocation4 + $0x3b8] sm:$0xff]
    %v373 = vld [vmem:[#allocation4 + $0x3c0] sm:$0xff]
    %v374 = vld [vmem:[#allocation4 + $0x3c8] sm:$0xff]
    %v375 = vld [vmem:[#allocation4 + $0x3d0] sm:$0xff]
    %v376 = vld [vmem:[#allocation4 + $0x3d8] sm:$0xff]
    %v377 = vld [vmem:[#allocation4 + $0x3e0] sm:$0xff]
    %v378 = vld [vmem:[#allocation4 + $0x3e8] sm:$0xff]
    %v379 = vld [vmem:[#allocation4 + $0x3f0] sm:$0xff]
    %v380 = vld [vmem:[#allocation4 + $0x3f8] sm:$0xff]
    %v381 = vld [vmem:[#allocation4 + $0x400] sm:$0xff]
    %v382 = vld [vmem:[#allocation4 + $0x408] sm:$0xff]
    %v383 = vld [vmem:[#allocation4 + $0x410] sm:$0xff]
    %v384 = vld [vmem:[#allocation4 + $0x418] sm:$0xff]
    %v385 = vld [vmem:[#allocation4 + $0x420] sm:$0xff]
    %v386 = vld [vmem:[#allocation4 + $0x428] sm:$0xff]
    %v387 = vld [vmem:[#allocation4 + $0x430] sm:$0xff]
    %v388 = vld [vmem:[#allocation4 + $0x438] sm:$0xff]
    %v389 = vld [vmem:[#allocation4 + $0x440] sm:$0xff]
    %v390 = vld [vmem:[#allocation4 + $0x448] sm:$0xff]
    %v391 = vld [vmem:[#allocation4 + $0x450] sm:$0xff]
    %v392 = vld [vmem:[#allocation4 + $0x458] sm:$0xff]
    %v393 = vld [vmem:[#allocation4 + $0x460] sm:$0xff]
    %v394 = vld [vmem:[#allocation4 + $0x468] sm:$0xff]
    %v395 = vld [vmem:[#allocation4 + $0x470] sm:$0xff]
    %v396 = vld [vmem:[#allocation4 + $0x478] sm:$0xff]
    %v397 = vld [vmem:[#allocation4 + $0x480] sm:$0xff]
    %v398 = vld [vmem:[#allocation4 + $0x488] sm:$0xff]
    %v399 = vld [vmem:[#allocation4 + $0x490] sm:$0xff]
    %v400 = vld [vmem:[#allocation4 + $0x498] sm:$0xff]
    %v401 = vld [vmem:[#allocation4 + $0x4a0] sm:$0xff]
    %v402 = vld [vmem:[#allocation4 + $0x4a8] sm:$0xff]
    %v403 = vld [vmem:[#allocation4 + $0x4b0] sm:$0xff]
    %v404 = vld [vmem:[#allocation4 + $0x4b8] sm:$0xff]
    %v405 = vld [vmem:[#allocation4 + $0x4c0] sm:$0xff]
    %v406 = vld [vmem:[#allocation4 + $0x4c8] sm:$0xff]
    %v407 = vld [vmem:[#allocation4 + $0x4d0] sm:$0xff]
    %v408 = vld [vmem:[#allocation4 + $0x4d8] sm:$0xff]
    %v409 = vld [vmem:[#allocation4 + $0x4e0] sm:$0xff]
    %v410 = vld [vmem:[#allocation4 + $0x4e8] sm:$0xff]
    %v411 = vld [vmem:[#allocation4 + $0x4f0] sm:$0xff]
    %v412 = vld [vmem:[#allocation4 + $0x4f8] sm:$0xff]
    %v413 = vld [vmem:[#allocation4 + $0x500] sm:$0xff]
    %v414 = vld [vmem:[#allocation4 + $0x508] sm:$0xff]
    %v415 = vld [vmem:[#allocation4 + $0x510] sm:$0xff]
    %v416 = vld [vmem:[#allocation4 + $0x518] sm:$0xff]
    %v417 = vld [vmem:[#allocation4 + $0x520] sm:$0xff]
    %v418 = vld [vmem:[#allocation4 + $0x528] sm:$0xff]
    %v419 = vld [vmem:[#allocation4 + $0x530] sm:$0xff]
    %v420 = vld [vmem:[#allocation4 + $0x538] sm:$0xff]
    %v421 = vld [vmem:[#allocation4 + $0x540] sm:$0xff]
    %v422 = vld [vmem:[#allocation4 + $0x548] sm:$0xff]
    %v423 = vld [vmem:[#allocation4 + $0x550] sm:$0xff]
    %v424 = vld [vmem:[#allocation4 + $0x558] sm:$0xff]
    %v425 = vld [vmem:[#allocation4 + $0x560] sm:$0xff]
    %v426 = vld [vmem:[#allocation4 + $0x568] sm:$0xff]
    %v427 = vld [vmem:[#allocation4 + $0x570] sm:$0xff]
    %v428 = vld [vmem:[#allocation4 + $0x578] sm:$0xff]
    %v429 = vld [vmem:[#allocation4 + $0x580] sm:$0xff]
    %v430 = vld [vmem:[#allocation4 + $0x588] sm:$0xff]
    %v431 = vld [vmem:[#allocation4 + $0x590] sm:$0xff]
    %v432 = vld [vmem:[#allocation4 + $0x598] sm:$0xff]
    %v433 = vld [vmem:[#allocation4 + $0x5a0] sm:$0xff]
    %v434 = vld [vmem:[#allocation4 + $0x5a8] sm:$0xff]
    %v435 = vld [vmem:[#allocation4 + $0x5b0] sm:$0xff]
    %v436 = vld [vmem:[#allocation4 + $0x5b8] sm:$0xff]
    %v437 = vld [vmem:[#allocation4 + $0x5c0] sm:$0xff]
    %v438 = vld [vmem:[#allocation4 + $0x5c8] sm:$0xff]
    %v439 = vld [vmem:[#allocation4 + $0x5d0] sm:$0xff]
    %v440 = vld [vmem:[#allocation4 + $0x5d8] sm:$0xff]
    %v441 = vld [vmem:[#allocation4 + $0x5e0] sm:$0xff]
    %v442 = vld [vmem:[#allocation4 + $0x5e8] sm:$0xff]
    %v443 = vld [vmem:[#allocation4 + $0x5f0] sm:$0xff]
    %v444 = vld [vmem:[#allocation4 + $0x5f8] sm:$0xff]
    %v445 = vld [vmem:[#allocation4 + $0x600] sm:$0xff]
    %v446 = vld [vmem:[#allocation4 + $0x608] sm:$0xff]
    %v447 = vld [vmem:[#allocation4 + $0x610] sm:$0xff]
    %v448 = vld [vmem:[#allocation4 + $0x618] sm:$0xff]
    %v449 = vld [vmem:[#allocation4 + $0x620] sm:$0xff]
    %v450 = vld [vmem:[#allocation4 + $0x628] sm:$0xff]
    %v451 = vld [vmem:[#allocation4 + $0x630] sm:$0xff]
    %v452 = vld [vmem:[#allocation4 + $0x638] sm:$0xff]
    %v453 = vld [vmem:[#allocation4 + $0x640] sm:$0xff]
    %v454 = vld [vmem:[#allocation4 + $0x648] sm:$0xff]
    %v455 = vld [vmem:[#allocation4 + $0x650] sm:$0xff]
    %v456 = vld [vmem:[#allocation4 + $0x658] sm:$0xff]
    %v457 = vld [vmem:[#allocation4 + $0x660] sm:$0xff]
    %v458 = vld [vmem:[#allocation4 + $0x668] sm:$0xff]
    %v459 = vld [vmem:[#allocation4 + $0x670] sm:$0xff]
    %v460 = vld [vmem:[#allocation4 + $0x678] sm:$0xff]
    %v461 = vld [vmem:[#allocation4 + $0x680] sm:$0xff]
    %v462 = vld [vmem:[#allocation4 + $0x688] sm:$0xff]
    %v463 = vld [vmem:[#allocation4 + $0x690] sm:$0xff]
    %v464 = vld [vmem:[#allocation4 + $0x698] sm:$0xff]
    %v465 = vld [vmem:[#allocation4 + $0x6a0] sm:$0xff]
    %v466 = vld [vmem:[#allocation4 + $0x6a8] sm:$0xff]
    %v467 = vld [vmem:[#allocation4 + $0x6b0] sm:$0xff]
    %v468 = vld [vmem:[#allocation4 + $0x6b8] sm:$0xff]
    %v469 = vld [vmem:[#allocation4 + $0x6c0] sm:$0xff]
    %v470 = vld [vmem:[#allocation4 + $0x6c8] sm:$0xff]
    %v471 = vld [vmem:[#allocation4 + $0x6d0] sm:$0xff]
    %v472 = vld [vmem:[#allocation4 + $0x6d8] sm:$0xff]
    %v473 = vld [vmem:[#allocation4 + $0x6e0] sm:$0xff]
    %v474 = vld [vmem:[#allocation4 + $0x6e8] sm:$0xff]
    %v475 = vld [vmem:[#allocation4 + $0x6f0] sm:$0xff]
    %v476 = vld [vmem:[#allocation4 + $0x6f8] sm:$0xff]
    %v477 = vld [vmem:[#allocation4 + $0x700] sm:$0xff]
    %v478 = vld [vmem:[#allocation4 + $0x708] sm:$0xff]
    %v479 = vld [vmem:[#allocation4 + $0x710] sm:$0xff]
    %v480 = vld [vmem:[#allocation4 + $0x718] sm:$0xff]
    %v481 = vld [vmem:[#allocation4 + $0x720] sm:$0xff]
    %v482 = vld [vmem:[#allocation4 + $0x728] sm:$0xff]
    %v483 = vld [vmem:[#allocation4 + $0x730] sm:$0xff]
    %v484 = vld [vmem:[#allocation4 + $0x738] sm:$0xff]
    %v485 = vld [vmem:[#allocation4 + $0x740] sm:$0xff]
    %v486 = vld [vmem:[#allocation4 + $0x748] sm:$0xff]
    %v487 = vld [vmem:[#allocation4 + $0x750] sm:$0xff]
    %v488 = vld [vmem:[#allocation4 + $0x758] sm:$0xff]
    %v489 = vld [vmem:[#allocation4 + $0x760] sm:$0xff]
    %v490 = vld [vmem:[#allocation4 + $0x768] sm:$0xff]
    %v491 = vld [vmem:[#allocation4 + $0x770] sm:$0xff]
    %v492 = vld [vmem:[#allocation4 + $0x778] sm:$0xff]
    %v493 = vld [vmem:[#allocation4 + $0x780] sm:$0xff]
    %v494 = vld [vmem:[#allocation4 + $0x788] sm:$0xff]
    %v495 = vld [vmem:[#allocation4 + $0x790] sm:$0xff]
    %v496 = vld [vmem:[#allocation4 + $0x798] sm:$0xff]
    %v497 = vld [vmem:[#allocation4 + $0x7a0] sm:$0xff]
    %v498 = vld [vmem:[#allocation4 + $0x7a8] sm:$0xff]
    %v499 = vld [vmem:[#allocation4 + $0x7b0] sm:$0xff]
    %v500 = vld [vmem:[#allocation4 + $0x7b8] sm:$0xff]
    %v501 = vld [vmem:[#allocation4 + $0x7c0] sm:$0xff]
    %v502 = vld [vmem:[#allocation4 + $0x7c8] sm:$0xff]
    %v503 = vld [vmem:[#allocation4 + $0x7d0] sm:$0xff]
    %v504 = vld [vmem:[#allocation4 + $0x7d8] sm:$0xff]
    %v505 = vld [vmem:[#allocation4 + $0x7e0] sm:$0xff]
    %v506 = vld [vmem:[#allocation4 + $0x7e8] sm:$0xff]
    %v507 = vld [vmem:[#allocation4 + $0x7f0] sm:$0xff]
    %v508 = vld [vmem:[#allocation4 + $0x7f8] sm:$0xff]
    %v509 = vld [vmem:[#allocation4 + $0x800] sm:$0xff]
    %v510 = vld [vmem:[#allocation4 + $0x808] sm:$0xff]
    %v511 = vld [vmem:[#allocation4 + $0x810] sm:$0xff]
    %v512 = vld [vmem:[#allocation4 + $0x818] sm:$0xff]
    %v513 = vld [vmem:[#allocation4 + $0x820] sm:$0xff]
    %v514 = vld [vmem:[#allocation4 + $0x828] sm:$0xff]
    %v515 = vld [vmem:[#allocation4 + $0x830] sm:$0xff]
    %v516 = vld [vmem:[#allocation4 + $0x838] sm:$0xff]
    %v517 = vld [vmem:[#allocation4 + $0x840] sm:$0xff]
    %v518 = vld [vmem:[#allocation4 + $0x848] sm:$0xff]
    %v519 = vld [vmem:[#allocation4 + $0x850] sm:$0xff]
    %v520 = vld [vmem:[#allocation4 + $0x858] sm:$0xff]
    %v521 = vld [vmem:[#allocation4 + $0x860] sm:$0xff]
    %v522 = vld [vmem:[#allocation4 + $0x868] sm:$0xff]
    %v523 = vld [vmem:[#allocation4 + $0x870] sm:$0xff]
    %v524 = vld [vmem:[#allocation4 + $0x878] sm:$0xff]
    %v525 = vld [vmem:[#allocation4 + $0x880] sm:$0xff]
    %v526 = vld [vmem:[#allocation4 + $0x888] sm:$0xff]
    %v527 = vld [vmem:[#allocation4 + $0x890] sm:$0xff]
    %v528 = vld [vmem:[#allocation4 + $0x898] sm:$0xff]
    %v529 = vld [vmem:[#allocation4 + $0x8a0] sm:$0xff]
    %v530 = vld [vmem:[#allocation4 + $0x8a8] sm:$0xff]
    %v531 = vld [vmem:[#allocation4 + $0x8b0] sm:$0xff]
    %v532 = vld [vmem:[#allocation4 + $0x8b8] sm:$0xff]
    %v533 = vld [vmem:[#allocation4 + $0x8c0] sm:$0xff]
    %v534 = vld [vmem:[#allocation4 + $0x8c8] sm:$0xff]
    %v535 = vld [vmem:[#allocation4 + $0x8d0] sm:$0xff]
    %v536 = vld [vmem:[#allocation4 + $0x8d8] sm:$0xff]
    %v537 = vld [vmem:[#allocation4 + $0x8e0] sm:$0xff]
    %v538 = vld [vmem:[#allocation4 + $0x8e8] sm:$0xff]
    %v539 = vld [vmem:[#allocation4 + $0x8f0] sm:$0xff]
    %v540 = vld [vmem:[#allocation4 + $0x8f8] sm:$0xff]
    %v541 = vld [vmem:[#allocation4 + $0x900] sm:$0xff]
    %v542 = vld [vmem:[#allocation4 + $0x908] sm:$0xff]
    %v543 = vld [vmem:[#allocation4 + $0x910] sm:$0xff]
    %v544 = vld [vmem:[#allocation4 + $0x918] sm:$0xff]
    %v545 = vld [vmem:[#allocation4 + $0x920] sm:$0xff]
    %v546 = vld [vmem:[#allocation4 + $0x928] sm:$0xff]
    %v547 = vld [vmem:[#allocation4 + $0x930] sm:$0xff]
    %v548 = vld [vmem:[#allocation4 + $0x938] sm:$0xff]
    %v549 = vld [vmem:[#allocation4 + $0x940] sm:$0xff]
    %v550 = vld [vmem:[#allocation4 + $0x948] sm:$0xff]
    %v551 = vld [vmem:[#allocation4 + $0x950] sm:$0xff]
    %v552 = vld [vmem:[#allocation4 + $0x958] sm:$0xff]
    %v553 = vld [vmem:[#allocation4 + $0x960] sm:$0xff]
    %v554 = vld [vmem:[#allocation4 + $0x968] sm:$0xff]
    %v555 = vld [vmem:[#allocation4 + $0x970] sm:$0xff]
    %v556 = vld [vmem:[#allocation4 + $0x978] sm:$0xff]
    %v557 = vld [vmem:[#allocation4 + $0x980] sm:$0xff]
    %v558 = vld [vmem:[#allocation4 + $0x988] sm:$0xff]
    %v559 = vld [vmem:[#allocation4 + $0x990] sm:$0xff]
    %v560 = vld [vmem:[#allocation4 + $0x998] sm:$0xff]
    %v561 = vld [vmem:[#allocation4 + $0x9a0] sm:$0xff]
    %v562 = vld [vmem:[#allocation4 + $0x9a8] sm:$0xff]
    %v563 = vld [vmem:[#allocation4 + $0x9b0] sm:$0xff]
    %v564 = vld [vmem:[#allocation4 + $0x9b8] sm:$0xff]
    %v565 = vld [vmem:[#allocation4 + $0x9c0] sm:$0xff]
    %v566 = vld [vmem:[#allocation4 + $0x9c8] sm:$0xff]
    %v567 = vld [vmem:[#allocation4 + $0x9d0] sm:$0xff]
    %v568 = vld [vmem:[#allocation4 + $0x9d8] sm:$0xff]
    %v569 = vld [vmem:[#allocation4 + $0x9e0] sm:$0xff]
    %v570 = vld [vmem:[#allocation4 + $0x9e8] sm:$0xff]
    %v571 = vld [vmem:[#allocation4 + $0x9f0] sm:$0xff]
    %v572 = vld [vmem:[#allocation4 + $0x9f8] sm:$0xff]
    %v573 = vld [vmem:[#allocation4 + $0xa00] sm:$0xff]
    %v574 = vld [vmem:[#allocation4 + $0xa08] sm:$0xff]
    %v575 = vld [vmem:[#allocation4 + $0xa10] sm:$0xff]
    %v576 = vld [vmem:[#allocation4 + $0xa18] sm:$0xff]
    %v577 = vld [vmem:[#allocation4 + $0xa20] sm:$0xff]
    %v578 = vld [vmem:[#allocation4 + $0xa28] sm:$0xff]
    %v579 = vld [vmem:[#allocation4 + $0xa30] sm:$0xff]
    %v580 = vld [vmem:[#allocation4 + $0xa38] sm:$0xff]
    %v581 = vld [vmem:[#allocation4 + $0xa40] sm:$0xff]
    %v582 = vld [vmem:[#allocation4 + $0xa48] sm:$0xff]
    %v583 = vld [vmem:[#allocation4 + $0xa50] sm:$0xff]
    %v584 = vld [vmem:[#allocation4 + $0xa58] sm:$0xff]
    %v585 = vld [vmem:[#allocation4 + $0xa60] sm:$0xff]
    %v586 = vld [vmem:[#allocation4 + $0xa68] sm:$0xff]
    %v587 = vld [vmem:[#allocation4 + $0xa70] sm:$0xff]
    %v588 = vld [vmem:[#allocation4 + $0xa78] sm:$0xff]
    %v589 = vld [vmem:[#allocation4 + $0xa80] sm:$0xff]
    %v590 = vld [vmem:[#allocation4 + $0xa88] sm:$0xff]
    %v591 = vld [vmem:[#allocation4 + $0xa90] sm:$0xff]
    %v592 = vld [vmem:[#allocation4 + $0xa98] sm:$0xff]
    %v593 = vld [vmem:[#allocation4 + $0xaa0] sm:$0xff]
    %v594 = vld [vmem:[#allocation4 + $0xaa8] sm:$0xff]
    %v595 = vld [vmem:[#allocation4 + $0xab0] sm:$0xff]
    %v596 = vld [vmem:[#allocation4 + $0xab8] sm:$0xff]
    %v597 = vld [vmem:[#allocation4 + $0xac0] sm:$0xff]
    %v598 = vld [vmem:[#allocation4 + $0xac8] sm:$0xff]
    %v599 = vld [vmem:[#allocation4 + $0xad0] sm:$0xff]
    %v600 = vld [vmem:[#allocation4 + $0xad8] sm:$0xff]
    %v601 = vld [vmem:[#allocation4 + $0xae0] sm:$0xff]
    %v602 = vld [vmem:[#allocation4 + $0xae8] sm:$0xff]
    %v603 = vld [vmem:[#allocation4 + $0xaf0] sm:$0xff]
    %v604 = vld [vmem:[#allocation4 + $0xaf8] sm:$0xff]
    %v605 = vld [vmem:[#allocation4 + $0xb00] sm:$0xff]
    %v606 = vld [vmem:[#allocation4 + $0xb08] sm:$0xff]
    %v607 = vld [vmem:[#allocation4 + $0xb10] sm:$0xff]
    %v608 = vld [vmem:[#allocation4 + $0xb18] sm:$0xff]
    %v609 = vld [vmem:[#allocation4 + $0xb20] sm:$0xff]
    %v610 = vld [vmem:[#allocation4 + $0xb28] sm:$0xff]
    %v611 = vld [vmem:[#allocation4 + $0xb30] sm:$0xff]
    %v612 = vld [vmem:[#allocation4 + $0xb38] sm:$0xff]
    %v613 = vld [vmem:[#allocation4 + $0xb40] sm:$0xff]
    %v614 = vld [vmem:[#allocation4 + $0xb48] sm:$0xff]
    %v615 = vld [vmem:[#allocation4 + $0xb50] sm:$0xff]
    %v616 = vld [vmem:[#allocation4 + $0xb58] sm:$0xff]
    %v617 = vld [vmem:[#allocation4 + $0xb60] sm:$0xff]
    %v618 = vld [vmem:[#allocation4 + $0xb68] sm:$0xff]
    %v619 = vld [vmem:[#allocation4 + $0xb70] sm:$0xff]
    %v620 = vld [vmem:[#allocation4 + $0xb78] sm:$0xff]
    %v621 = vld [vmem:[#allocation4 + $0xb80] sm:$0xff]
    %v622 = vld [vmem:[#allocation4 + $0xb88] sm:$0xff]
    %v623 = vld [vmem:[#allocation4 + $0xb90] sm:$0xff]
    %v624 = vld [vmem:[#allocation4 + $0xb98] sm:$0xff]
    %v625 = vld [vmem:[#allocation4 + $0xba0] sm:$0xff]
    %v626 = vld [vmem:[#allocation4 + $0xba8] sm:$0xff]
    %v627 = vld [vmem:[#allocation4 + $0xbb0] sm:$0xff]
    %v628 = vld [vmem:[#allocation4 + $0xbb8] sm:$0xff]
    %v629 = vld [vmem:[#allocation4 + $0xbc0] sm:$0xff]
    %v630 = vld [vmem:[#allocation4 + $0xbc8] sm:$0xff]
    %v631 = vld [vmem:[#allocation4 + $0xbd0] sm:$0xff]
    %v632 = vld [vmem:[#allocation4 + $0xbd8] sm:$0xff]
    %v633 = vld [vmem:[#allocation4 + $0xbe0] sm:$0xff]
    %v634 = vld [vmem:[#allocation4 + $0xbe8] sm:$0xff]
    %v635 = vld [vmem:[#allocation4 + $0xbf0] sm:$0xff]
    %v636 = vld [vmem:[#allocation4 + $0xbf8] sm:$0xff]
    %v637 = vld [vmem:[#allocation4 + $0xc00] sm:$0xff]
    %v638 = vld [vmem:[#allocation4 + $0xc08] sm:$0xff]
    %v639 = vld [vmem:[#allocation4 + $0xc10] sm:$0xff]
    %v640 = vld [vmem:[#allocation4 + $0xc18] sm:$0xff]
    %v641 = vld [vmem:[#allocation4 + $0xc20] sm:$0xff]
    %v642 = vld [vmem:[#allocation4 + $0xc28] sm:$0xff]
    %v643 = vld [vmem:[#allocation4 + $0xc30] sm:$0xff]
    %v644 = vld [vmem:[#allocation4 + $0xc38] sm:$0xff]
    %v645 = vld [vmem:[#allocation4 + $0xc40] sm:$0xff]
    %v646 = vld [vmem:[#allocation4 + $0xc48] sm:$0xff]
    %v647 = vld [vmem:[#allocation4 + $0xc50] sm:$0xff]
    %v648 = vld [vmem:[#allocation4 + $0xc58] sm:$0xff]
    %v649 = vld [vmem:[#allocation4 + $0xc60] sm:$0xff]
    %v650 = vld [vmem:[#allocation4 + $0xc68] sm:$0xff]
    %v651 = vld [vmem:[#allocation4 + $0xc70] sm:$0xff]
    %v652 = vld [vmem:[#allocation4 + $0xc78] sm:$0xff]
    %v653 = vld [vmem:[#allocation4 + $0xc80] sm:$0xff]
    %v654 = vld [vmem:[#allocation4 + $0xc88] sm:$0xff]
    %v655 = vld [vmem:[#allocation4 + $0xc90] sm:$0xff]
    %v656 = vld [vmem:[#allocation4 + $0xc98] sm:$0xff]
    %v657 = vld [vmem:[#allocation4 + $0xca0] sm:$0xff]
    %v658 = vld [vmem:[#allocation4 + $0xca8] sm:$0xff]
    %v659 = vld [vmem:[#allocation4 + $0xcb0] sm:$0xff]
    %v660 = vld [vmem:[#allocation4 + $0xcb8] sm:$0xff]
    %v661 = vld [vmem:[#allocation4 + $0xcc0] sm:$0xff]
    %v662 = vld [vmem:[#allocation4 + $0xcc8] sm:$0xff]
    %v663 = vld [vmem:[#allocation4 + $0xcd0] sm:$0xff]
    %v664 = vld [vmem:[#allocation4 + $0xcd8] sm:$0xff]
    %v665 = vld [vmem:[#allocation4 + $0xce0] sm:$0xff]
    %v666 = vld [vmem:[#allocation4 + $0xce8] sm:$0xff]
    %v667 = vld [vmem:[#allocation4 + $0xcf0] sm:$0xff]
    %v668 = vld [vmem:[#allocation4 + $0xcf8] sm:$0xff]
    %v669 = vld [vmem:[#allocation4 + $0xd00] sm:$0xff]
    %v670 = vld [vmem:[#allocation4 + $0xd08] sm:$0xff]
    %v671 = vld [vmem:[#allocation4 + $0xd10] sm:$0xff]
    %v672 = vld [vmem:[#allocation4 + $0xd18] sm:$0xff]
    %v673 = vld [vmem:[#allocation4 + $0xd20] sm:$0xff]
    %v674 = vld [vmem:[#allocation4 + $0xd28] sm:$0xff]
    %v675 = vld [vmem:[#allocation4 + $0xd30] sm:$0xff]
    %v676 = vld [vmem:[#allocation4 + $0xd38] sm:$0xff]
    %v677 = vld [vmem:[#allocation4 + $0xd40] sm:$0xff]
    %v678 = vld [vmem:[#allocation4 + $0xd48] sm:$0xff]
    %v679 = vld [vmem:[#allocation4 + $0xd50] sm:$0xff]
    %v680 = vld [vmem:[#allocation4 + $0xd58] sm:$0xff]
    %v681 = vld [vmem:[#allocation4 + $0xd60] sm:$0xff]
    %v682 = vld [vmem:[#allocation4 + $0xd68] sm:$0xff]
    %v683 = vld [vmem:[#allocation4 + $0xd70] sm:$0xff]
    %v684 = vld [vmem:[#allocation4 + $0xd78] sm:$0xff]
    %v685 = vld [vmem:[#allocation4 + $0xd80] sm:$0xff]
    %v686 = vld [vmem:[#allocation4 + $0xd88] sm:$0xff]
    %v687 = vld [vmem:[#allocation4 + $0xd90] sm:$0xff]
    %v688 = vld [vmem:[#allocation4 + $0xd98] sm:$0xff]
    %v689 = vld [vmem:[#allocation4 + $0xda0] sm:$0xff]
    %v690 = vld [vmem:[#allocation4 + $0xda8] sm:$0xff]
    %v691 = vld [vmem:[#allocation4 + $0xdb0] sm:$0xff]
    %v692 = vld [vmem:[#allocation4 + $0xdb8] sm:$0xff]
    %v693 = vld [vmem:[#allocation4 + $0xdc0] sm:$0xff]
    %v694 = vld [vmem:[#allocation4 + $0xdc8] sm:$0xff]
    %v695 = vld [vmem:[#allocation4 + $0xdd0] sm:$0xff]
    %v696 = vld [vmem:[#allocation4 + $0xdd8] sm:$0xff]
    %v697 = vld [vmem:[#allocation4 + $0xde0] sm:$0xff]
    %v698 = vld [vmem:[#allocation4 + $0xde8] sm:$0xff]
    %v699 = vld [vmem:[#allocation4 + $0xdf0] sm:$0xff]
    %v700 = vld [vmem:[#allocation4 + $0xdf8] sm:$0xff]
    %v701 = vld [vmem:[#allocation4 + $0xe00] sm:$0xff]
    %v702 = vld [vmem:[#allocation4 + $0xe08] sm:$0xff]
    %v703 = vld [vmem:[#allocation4 + $0xe10] sm:$0xff]
    %v704 = vld [vmem:[#allocation4 + $0xe18] sm:$0xff]
    %v705 = vld [vmem:[#allocation4 + $0xe20] sm:$0xff]
    %v706 = vld [vmem:[#allocation4 + $0xe28] sm:$0xff]
    %v707 = vld [vmem:[#allocation4 + $0xe30] sm:$0xff]
    %v708 = vld [vmem:[#allocation4 + $0xe38] sm:$0xff]
    %v709 = vld [vmem:[#allocation4 + $0xe40] sm:$0xff]
    %v710 = vld [vmem:[#allocation4 + $0xe48] sm:$0xff]
    %v711 = vld [vmem:[#allocation4 + $0xe50] sm:$0xff]
    %v712 = vld [vmem:[#allocation4 + $0xe58] sm:$0xff]
    %v713 = vld [vmem:[#allocation4 + $0xe60] sm:$0xff]
    %v714 = vld [vmem:[#allocation4 + $0xe68] sm:$0xff]
    %v715 = vld [vmem:[#allocation4 + $0xe70] sm:$0xff]
    %v716 = vld [vmem:[#allocation4 + $0xe78] sm:$0xff]
    %v717 = vld [vmem:[#allocation4 + $0xe80] sm:$0xff]
    %v718 = vld [vmem:[#allocation4 + $0xe88] sm:$0xff]
    %v719 = vld [vmem:[#allocation4 + $0xe90] sm:$0xff]
    %v720 = vld [vmem:[#allocation4 + $0xe98] sm:$0xff]
    %v721 = vld [vmem:[#allocation4 + $0xea0] sm:$0xff]
    %v722 = vld [vmem:[#allocation4 + $0xea8] sm:$0xff]
    %v723 = vld [vmem:[#allocation4 + $0xeb0] sm:$0xff]
    %v724 = vld [vmem:[#allocation4 + $0xeb8] sm:$0xff]
    %v725 = vld [vmem:[#allocation4 + $0xec0] sm:$0xff]
    %v726 = vld [vmem:[#allocation4 + $0xec8] sm:$0xff]
    %v727 = vld [vmem:[#allocation4 + $0xed0] sm:$0xff]
    %v728 = vld [vmem:[#allocation4 + $0xed8] sm:$0xff]
    %v729 = vld [vmem:[#allocation4 + $0xee0] sm:$0xff]
    %v730 = vld [vmem:[#allocation4 + $0xee8] sm:$0xff]
    %v731 = vld [vmem:[#allocation4 + $0xef0] sm:$0xff]
    %v732 = vld [vmem:[#allocation4 + $0xef8] sm:$0xff]
    %v733 = vld [vmem:[#allocation4 + $0xf00] sm:$0xff]
    %v734 = vld [vmem:[#allocation4 + $0xf08] sm:$0xff]
    %v735 = vld [vmem:[#allocation4 + $0xf10] sm:$0xff]
    %v736 = vld [vmem:[#allocation4 + $0xf18] sm:$0xff]
    %v737 = vld [vmem:[#allocation4 + $0xf20] sm:$0xff]
    %v738 = vld [vmem:[#allocation4 + $0xf28] sm:$0xff]
    %v739 = vld [vmem:[#allocation4 + $0xf30] sm:$0xff]
    %v740 = vld [vmem:[#allocation4 + $0xf38] sm:$0xff]
    %v741 = vld [vmem:[#allocation4 + $0xf40] sm:$0xff]
    %v742 = vld [vmem:[#allocation4 + $0xf48] sm:$0xff]
    %v743 = vld [vmem:[#allocation4 + $0xf50] sm:$0xff]
    %v744 = vld [vmem:[#allocation4 + $0xf58] sm:$0xff]
    %v745 = vld [vmem:[#allocation4 + $0xf60] sm:$0xff]
    %v746 = vld [vmem:[#allocation4 + $0xf68] sm:$0xff]
    %v747 = vld [vmem:[#allocation4 + $0xf70] sm:$0xff]
    %v748 = vld [vmem:[#allocation4 + $0xf78] sm:$0xff]
    %v749 = vld [vmem:[#allocation4 + $0xf80] sm:$0xff]
    %v750 = vld [vmem:[#allocation4 + $0xf88] sm:$0xff]
    %v751 = vld [vmem:[#allocation4 + $0xf90] sm:$0xff]
    %v752 = vld [vmem:[#allocation4 + $0xf98] sm:$0xff]
    %v753 = vld [vmem:[#allocation4 + $0xfa0] sm:$0xff]
    %v754 = vld [vmem:[#allocation4 + $0xfa8] sm:$0xff]
    %v755 = vld [vmem:[#allocation4 + $0xfb0] sm:$0xff]
    %v756 = vld [vmem:[#allocation4 + $0xfb8] sm:$0xff]
    %v757 = vld [vmem:[#allocation4 + $0xfc0] sm:$0xff]
    %v758 = vld [vmem:[#allocation4 + $0xfc8] sm:$0xff]
    %v759 = vld [vmem:[#allocation4 + $0xfd0] sm:$0xff]
    %v760 = vld [vmem:[#allocation4 + $0xfd8] sm:$0xff]
    %v761 = vld [vmem:[#allocation4 + $0xfe0] sm:$0xff]
    %v762 = vld [vmem:[#allocation4 + $0xfe8] sm:$0xff]
    %v763 = vld [vmem:[#allocation4 + $0xff0] sm:$0xff]
    %v764 = vld [vmem:[#allocation4 + $0xff8] sm:$0xff]
    %v765 = vld [vmem:[#allocation6] sm:$0xf]
    %v767 = vlaneseq
    %v768 = vshrl.u32 %v767, 7
    %v769 = vsub.s32 0, %v768
    %v770 = vrot.slane %v765, %v769
    %v771 = vlaneseq
    %v772 = vshrl.u32 %v771, 7
    %v773 = vsub.s32 1, %v772
    %v774 = vrot.slane %v765, %v773
    %v775 = vlaneseq
    %v776 = vshrl.u32 %v775, 7
    %v777 = vsub.s32 2, %v776
    %v778 = vrot.slane %v765, %v777
    %v779 = vlaneseq
    %v780 = vshrl.u32 %v779, 7
    %v781 = vsub.s32 3, %v780
    %v782 = vrot.slane %v765, %v781
    %v1299 = vunpack.c.l.b16 %v253
    %v1300 = vunpack.c.h.b16 %v253
    %v1301 = vunpack.c.l.b16 %v254
    %v1302 = vunpack.c.h.b16 %v254
    %v1303 = vunpack.c.l.b16 %v255
    %v1304 = vunpack.c.h.b16 %v255
    %v1305 = vunpack.c.l.b16 %v256
    %v1306 = vunpack.c.h.b16 %v256
    %v1307 = vunpack.c.l.b16 %v257
    %v1308 = vunpack.c.h.b16 %v257
    %v1309 = vunpack.c.l.b16 %v258
    %v1310 = vunpack.c.h.b16 %v258
    %v1311 = vunpack.c.l.b16 %v259
    %v1312 = vunpack.c.h.b16 %v259
    %v1313 = vunpack.c.l.b16 %v260
    %v1314 = vunpack.c.h.b16 %v260
    %v1315 = vunpack.c.l.b16 %v261
    %v1316 = vunpack.c.h.b16 %v261
    %v1317 = vunpack.c.l.b16 %v262
    %v1318 = vunpack.c.h.b16 %v262
    %v1319 = vunpack.c.l.b16 %v263
    %v1320 = vunpack.c.h.b16 %v263
    %v1321 = vunpack.c.l.b16 %v264
    %v1322 = vunpack.c.h.b16 %v264
    %v1323 = vunpack.c.l.b16 %v265
    %v1324 = vunpack.c.h.b16 %v265
    %v1325 = vunpack.c.l.b16 %v266
    %v1326 = vunpack.c.h.b16 %v266
    %v1327 = vunpack.c.l.b16 %v267
    %v1328 = vunpack.c.h.b16 %v267
    %v1329 = vunpack.c.l.b16 %v268
    %v1330 = vunpack.c.h.b16 %v268
    %v1331 = vunpack.c.l.b16 %v269
    %v1332 = vunpack.c.h.b16 %v269
    %v1333 = vunpack.c.l.b16 %v270
    %v1334 = vunpack.c.h.b16 %v270
    %v1335 = vunpack.c.l.b16 %v271
    %v1336 = vunpack.c.h.b16 %v271
    %v1337 = vunpack.c.l.b16 %v272
    %v1338 = vunpack.c.h.b16 %v272
    %v1339 = vunpack.c.l.b16 %v273
    %v1340 = vunpack.c.h.b16 %v273
    %v1341 = vunpack.c.l.b16 %v274
    %v1342 = vunpack.c.h.b16 %v274
    %v1343 = vunpack.c.l.b16 %v275
    %v1344 = vunpack.c.h.b16 %v275
    %v1345 = vunpack.c.l.b16 %v276
    %v1346 = vunpack.c.h.b16 %v276
    %v1347 = vunpack.c.l.b16 %v277
    %v1348 = vunpack.c.h.b16 %v277
    %v1349 = vunpack.c.l.b16 %v278
    %v1350 = vunpack.c.h.b16 %v278
    %v1351 = vunpack.c.l.b16 %v279
    %v1352 = vunpack.c.h.b16 %v279
    %v1353 = vunpack.c.l.b16 %v280
    %v1354 = vunpack.c.h.b16 %v280
    %v1355 = vunpack.c.l.b16 %v281
    %v1356 = vunpack.c.h.b16 %v281
    %v1357 = vunpack.c.l.b16 %v282
    %v1358 = vunpack.c.h.b16 %v282
    %v1359 = vunpack.c.l.b16 %v283
    %v1360 = vunpack.c.h.b16 %v283
    %v1361 = vunpack.c.l.b16 %v284
    %v1362 = vunpack.c.h.b16 %v284
    %v1363 = vunpack.c.l.b16 %v285
    %v1364 = vunpack.c.h.b16 %v285
    %v1365 = vunpack.c.l.b16 %v286
    %v1366 = vunpack.c.h.b16 %v286
    %v1367 = vunpack.c.l.b16 %v287
    %v1368 = vunpack.c.h.b16 %v287
    %v1369 = vunpack.c.l.b16 %v288
    %v1370 = vunpack.c.h.b16 %v288
    %v1371 = vunpack.c.l.b16 %v289
    %v1372 = vunpack.c.h.b16 %v289
    %v1373 = vunpack.c.l.b16 %v290
    %v1374 = vunpack.c.h.b16 %v290
    %v1375 = vunpack.c.l.b16 %v291
    %v1376 = vunpack.c.h.b16 %v291
    %v1377 = vunpack.c.l.b16 %v292
    %v1378 = vunpack.c.h.b16 %v292
    %v1379 = vunpack.c.l.b16 %v293
    %v1380 = vunpack.c.h.b16 %v293
    %v1381 = vunpack.c.l.b16 %v294
    %v1382 = vunpack.c.h.b16 %v294
    %v1383 = vunpack.c.l.b16 %v295
    %v1384 = vunpack.c.h.b16 %v295
    %v1385 = vunpack.c.l.b16 %v296
    %v1386 = vunpack.c.h.b16 %v296
    %v1387 = vunpack.c.l.b16 %v297
    %v1388 = vunpack.c.h.b16 %v297
    %v1389 = vunpack.c.l.b16 %v298
    %v1390 = vunpack.c.h.b16 %v298
    %v1391 = vunpack.c.l.b16 %v299
    %v1392 = vunpack.c.h.b16 %v299
    %v1393 = vunpack.c.l.b16 %v300
    %v1394 = vunpack.c.h.b16 %v300
    %v1395 = vunpack.c.l.b16 %v301
    %v1396 = vunpack.c.h.b16 %v301
    %v1397 = vunpack.c.l.b16 %v302
    %v1398 = vunpack.c.h.b16 %v302
    %v1399 = vunpack.c.l.b16 %v303
    %v1400 = vunpack.c.h.b16 %v303
    %v1401 = vunpack.c.l.b16 %v304
    %v1402 = vunpack.c.h.b16 %v304
    %v1403 = vunpack.c.l.b16 %v305
    %v1404 = vunpack.c.h.b16 %v305
    %v1405 = vunpack.c.l.b16 %v306
    %v1406 = vunpack.c.h.b16 %v306
    %v1407 = vunpack.c.l.b16 %v307
    %v1408 = vunpack.c.h.b16 %v307
    %v1409 = vunpack.c.l.b16 %v308
    %v1410 = vunpack.c.h.b16 %v308
    %v1411 = vunpack.c.l.b16 %v309
    %v1412 = vunpack.c.h.b16 %v309
    %v1413 = vunpack.c.l.b16 %v310
    %v1414 = vunpack.c.h.b16 %v310
    %v1415 = vunpack.c.l.b16 %v311
    %v1416 = vunpack.c.h.b16 %v311
    %v1417 = vunpack.c.l.b16 %v312
    %v1418 = vunpack.c.h.b16 %v312
    %v1419 = vunpack.c.l.b16 %v313
    %v1420 = vunpack.c.h.b16 %v313
    %v1421 = vunpack.c.l.b16 %v314
    %v1422 = vunpack.c.h.b16 %v314
    %v1423 = vunpack.c.l.b16 %v315
    %v1424 = vunpack.c.h.b16 %v315
    %v1425 = vunpack.c.l.b16 %v316
    %v1426 = vunpack.c.h.b16 %v316
    %v1427 = vunpack.c.l.b16 %v317
    %v1428 = vunpack.c.h.b16 %v317
    %v1429 = vunpack.c.l.b16 %v318
    %v1430 = vunpack.c.h.b16 %v318
    %v1431 = vunpack.c.l.b16 %v319
    %v1432 = vunpack.c.h.b16 %v319
    %v1433 = vunpack.c.l.b16 %v320
    %v1434 = vunpack.c.h.b16 %v320
    %v1435 = vunpack.c.l.b16 %v321
    %v1436 = vunpack.c.h.b16 %v321
    %v1437 = vunpack.c.l.b16 %v322
    %v1438 = vunpack.c.h.b16 %v322
    %v1439 = vunpack.c.l.b16 %v323
    %v1440 = vunpack.c.h.b16 %v323
    %v1441 = vunpack.c.l.b16 %v324
    %v1442 = vunpack.c.h.b16 %v324
    %v1443 = vunpack.c.l.b16 %v325
    %v1444 = vunpack.c.h.b16 %v325
    %v1445 = vunpack.c.l.b16 %v326
    %v1446 = vunpack.c.h.b16 %v326
    %v1447 = vunpack.c.l.b16 %v327
    %v1448 = vunpack.c.h.b16 %v327
    %v1449 = vunpack.c.l.b16 %v328
    %v1450 = vunpack.c.h.b16 %v328
    %v1451 = vunpack.c.l.b16 %v329
    %v1452 = vunpack.c.h.b16 %v329
    %v1453 = vunpack.c.l.b16 %v330
    %v1454 = vunpack.c.h.b16 %v330
    %v1455 = vunpack.c.l.b16 %v331
    %v1456 = vunpack.c.h.b16 %v331
    %v1457 = vunpack.c.l.b16 %v332
    %v1458 = vunpack.c.h.b16 %v332
    %v1459 = vunpack.c.l.b16 %v333
    %v1460 = vunpack.c.h.b16 %v333
    %v1461 = vunpack.c.l.b16 %v334
    %v1462 = vunpack.c.h.b16 %v334
    %v1463 = vunpack.c.l.b16 %v335
    %v1464 = vunpack.c.h.b16 %v335
    %v1465 = vunpack.c.l.b16 %v336
    %v1466 = vunpack.c.h.b16 %v336
    %v1467 = vunpack.c.l.b16 %v337
    %v1468 = vunpack.c.h.b16 %v337
    %v1469 = vunpack.c.l.b16 %v338
    %v1470 = vunpack.c.h.b16 %v338
    %v1471 = vunpack.c.l.b16 %v339
    %v1472 = vunpack.c.h.b16 %v339
    %v1473 = vunpack.c.l.b16 %v340
    %v1474 = vunpack.c.h.b16 %v340
    %v1475 = vunpack.c.l.b16 %v341
    %v1476 = vunpack.c.h.b16 %v341
    %v1477 = vunpack.c.l.b16 %v342
    %v1478 = vunpack.c.h.b16 %v342
    %v1479 = vunpack.c.l.b16 %v343
    %v1480 = vunpack.c.h.b16 %v343
    %v1481 = vunpack.c.l.b16 %v344
    %v1482 = vunpack.c.h.b16 %v344
    %v1483 = vunpack.c.l.b16 %v345
    %v1484 = vunpack.c.h.b16 %v345
    %v1485 = vunpack.c.l.b16 %v346
    %v1486 = vunpack.c.h.b16 %v346
    %v1487 = vunpack.c.l.b16 %v347
    %v1488 = vunpack.c.h.b16 %v347
    %v1489 = vunpack.c.l.b16 %v348
    %v1490 = vunpack.c.h.b16 %v348
    %v1491 = vunpack.c.l.b16 %v349
    %v1492 = vunpack.c.h.b16 %v349
    %v1493 = vunpack.c.l.b16 %v350
    %v1494 = vunpack.c.h.b16 %v350
    %v1495 = vunpack.c.l.b16 %v351
    %v1496 = vunpack.c.h.b16 %v351
    %v1497 = vunpack.c.l.b16 %v352
    %v1498 = vunpack.c.h.b16 %v352
    %v1499 = vunpack.c.l.b16 %v353
    %v1500 = vunpack.c.h.b16 %v353
    %v1501 = vunpack.c.l.b16 %v354
    %v1502 = vunpack.c.h.b16 %v354
    %v1503 = vunpack.c.l.b16 %v355
    %v1504 = vunpack.c.h.b16 %v355
    %v1505 = vunpack.c.l.b16 %v356
    %v1506 = vunpack.c.h.b16 %v356
    %v1507 = vunpack.c.l.b16 %v357
    %v1508 = vunpack.c.h.b16 %v357
    %v1509 = vunpack.c.l.b16 %v358
    %v1510 = vunpack.c.h.b16 %v358
    %v1511 = vunpack.c.l.b16 %v359
    %v1512 = vunpack.c.h.b16 %v359
    %v1513 = vunpack.c.l.b16 %v360
    %v1514 = vunpack.c.h.b16 %v360
    %v1515 = vunpack.c.l.b16 %v361
    %v1516 = vunpack.c.h.b16 %v361
    %v1517 = vunpack.c.l.b16 %v362
    %v1518 = vunpack.c.h.b16 %v362
    %v1519 = vunpack.c.l.b16 %v363
    %v1520 = vunpack.c.h.b16 %v363
    %v1521 = vunpack.c.l.b16 %v364
    %v1522 = vunpack.c.h.b16 %v364
    %v1523 = vunpack.c.l.b16 %v365
    %v1524 = vunpack.c.h.b16 %v365
    %v1525 = vunpack.c.l.b16 %v366
    %v1526 = vunpack.c.h.b16 %v366
    %v1527 = vunpack.c.l.b16 %v367
    %v1528 = vunpack.c.h.b16 %v367
    %v1529 = vunpack.c.l.b16 %v368
    %v1530 = vunpack.c.h.b16 %v368
    %v1531 = vunpack.c.l.b16 %v369
    %v1532 = vunpack.c.h.b16 %v369
    %v1533 = vunpack.c.l.b16 %v370
    %v1534 = vunpack.c.h.b16 %v370
    %v1535 = vunpack.c.l.b16 %v371
    %v1536 = vunpack.c.h.b16 %v371
    %v1537 = vunpack.c.l.b16 %v372
    %v1538 = vunpack.c.h.b16 %v372
    %v1539 = vunpack.c.l.b16 %v373
    %v1540 = vunpack.c.h.b16 %v373
    %v1541 = vunpack.c.l.b16 %v374
    %v1542 = vunpack.c.h.b16 %v374
    %v1543 = vunpack.c.l.b16 %v375
    %v1544 = vunpack.c.h.b16 %v375
    %v1545 = vunpack.c.l.b16 %v376
    %v1546 = vunpack.c.h.b16 %v376
    %v1547 = vunpack.c.l.b16 %v377
    %v1548 = vunpack.c.h.b16 %v377
    %v1549 = vunpack.c.l.b16 %v378
    %v1550 = vunpack.c.h.b16 %v378
    %v1551 = vunpack.c.l.b16 %v379
    %v1552 = vunpack.c.h.b16 %v379
    %v1553 = vunpack.c.l.b16 %v380
    %v1554 = vunpack.c.h.b16 %v380
    %v1555 = vunpack.c.l.b16 %v381
    %v1556 = vunpack.c.h.b16 %v381
    %v1557 = vunpack.c.l.b16 %v382
    %v1558 = vunpack.c.h.b16 %v382
    %v1559 = vunpack.c.l.b16 %v383
    %v1560 = vunpack.c.h.b16 %v383
    %v1561 = vunpack.c.l.b16 %v384
    %v1562 = vunpack.c.h.b16 %v384
    %v1563 = vunpack.c.l.b16 %v385
    %v1564 = vunpack.c.h.b16 %v385
    %v1565 = vunpack.c.l.b16 %v386
    %v1566 = vunpack.c.h.b16 %v386
    %v1567 = vunpack.c.l.b16 %v387
    %v1568 = vunpack.c.h.b16 %v387
    %v1569 = vunpack.c.l.b16 %v388
    %v1570 = vunpack.c.h.b16 %v388
    %v1571 = vunpack.c.l.b16 %v389
    %v1572 = vunpack.c.h.b16 %v389
    %v1573 = vunpack.c.l.b16 %v390
    %v1574 = vunpack.c.h.b16 %v390
    %v1575 = vunpack.c.l.b16 %v391
    %v1576 = vunpack.c.h.b16 %v391
    %v1577 = vunpack.c.l.b16 %v392
    %v1578 = vunpack.c.h.b16 %v392
    %v1579 = vunpack.c.l.b16 %v393
    %v1580 = vunpack.c.h.b16 %v393
    %v1581 = vunpack.c.l.b16 %v394
    %v1582 = vunpack.c.h.b16 %v394
    %v1583 = vunpack.c.l.b16 %v395
    %v1584 = vunpack.c.h.b16 %v395
    %v1585 = vunpack.c.l.b16 %v396
    %v1586 = vunpack.c.h.b16 %v396
    %v1587 = vunpack.c.l.b16 %v397
    %v1588 = vunpack.c.h.b16 %v397
    %v1589 = vunpack.c.l.b16 %v398
    %v1590 = vunpack.c.h.b16 %v398
    %v1591 = vunpack.c.l.b16 %v399
    %v1592 = vunpack.c.h.b16 %v399
    %v1593 = vunpack.c.l.b16 %v400
    %v1594 = vunpack.c.h.b16 %v400
    %v1595 = vunpack.c.l.b16 %v401
    %v1596 = vunpack.c.h.b16 %v401
    %v1597 = vunpack.c.l.b16 %v402
    %v1598 = vunpack.c.h.b16 %v402
    %v1599 = vunpack.c.l.b16 %v403
    %v1600 = vunpack.c.h.b16 %v403
    %v1601 = vunpack.c.l.b16 %v404
    %v1602 = vunpack.c.h.b16 %v404
    %v1603 = vunpack.c.l.b16 %v405
    %v1604 = vunpack.c.h.b16 %v405
    %v1605 = vunpack.c.l.b16 %v406
    %v1606 = vunpack.c.h.b16 %v406
    %v1607 = vunpack.c.l.b16 %v407
    %v1608 = vunpack.c.h.b16 %v407
    %v1609 = vunpack.c.l.b16 %v408
    %v1610 = vunpack.c.h.b16 %v408
    %v1611 = vunpack.c.l.b16 %v409
    %v1612 = vunpack.c.h.b16 %v409
    %v1613 = vunpack.c.l.b16 %v410
    %v1614 = vunpack.c.h.b16 %v410
    %v1615 = vunpack.c.l.b16 %v411
    %v1616 = vunpack.c.h.b16 %v411
    %v1617 = vunpack.c.l.b16 %v412
    %v1618 = vunpack.c.h.b16 %v412
    %v1619 = vunpack.c.l.b16 %v413
    %v1620 = vunpack.c.h.b16 %v413
    %v1621 = vunpack.c.l.b16 %v414
    %v1622 = vunpack.c.h.b16 %v414
    %v1623 = vunpack.c.l.b16 %v415
    %v1624 = vunpack.c.h.b16 %v415
    %v1625 = vunpack.c.l.b16 %v416
    %v1626 = vunpack.c.h.b16 %v416
    %v1627 = vunpack.c.l.b16 %v417
    %v1628 = vunpack.c.h.b16 %v417
    %v1629 = vunpack.c.l.b16 %v418
    %v1630 = vunpack.c.h.b16 %v418
    %v1631 = vunpack.c.l.b16 %v419
    %v1632 = vunpack.c.h.b16 %v419
    %v1633 = vunpack.c.l.b16 %v420
    %v1634 = vunpack.c.h.b16 %v420
    %v1635 = vunpack.c.l.b16 %v421
    %v1636 = vunpack.c.h.b16 %v421
    %v1637 = vunpack.c.l.b16 %v422
    %v1638 = vunpack.c.h.b16 %v422
    %v1639 = vunpack.c.l.b16 %v423
    %v1640 = vunpack.c.h.b16 %v423
    %v1641 = vunpack.c.l.b16 %v424
    %v1642 = vunpack.c.h.b16 %v424
    %v1643 = vunpack.c.l.b16 %v425
    %v1644 = vunpack.c.h.b16 %v425
    %v1645 = vunpack.c.l.b16 %v426
    %v1646 = vunpack.c.h.b16 %v426
    %v1647 = vunpack.c.l.b16 %v427
    %v1648 = vunpack.c.h.b16 %v427
    %v1649 = vunpack.c.l.b16 %v428
    %v1650 = vunpack.c.h.b16 %v428
    %v1651 = vunpack.c.l.b16 %v429
    %v1652 = vunpack.c.h.b16 %v429
    %v1653 = vunpack.c.l.b16 %v430
    %v1654 = vunpack.c.h.b16 %v430
    %v1655 = vunpack.c.l.b16 %v431
    %v1656 = vunpack.c.h.b16 %v431
    %v1657 = vunpack.c.l.b16 %v432
    %v1658 = vunpack.c.h.b16 %v432
    %v1659 = vunpack.c.l.b16 %v433
    %v1660 = vunpack.c.h.b16 %v433
    %v1661 = vunpack.c.l.b16 %v434
    %v1662 = vunpack.c.h.b16 %v434
    %v1663 = vunpack.c.l.b16 %v435
    %v1664 = vunpack.c.h.b16 %v435
    %v1665 = vunpack.c.l.b16 %v436
    %v1666 = vunpack.c.h.b16 %v436
    %v1667 = vunpack.c.l.b16 %v437
    %v1668 = vunpack.c.h.b16 %v437
    %v1669 = vunpack.c.l.b16 %v438
    %v1670 = vunpack.c.h.b16 %v438
    %v1671 = vunpack.c.l.b16 %v439
    %v1672 = vunpack.c.h.b16 %v439
    %v1673 = vunpack.c.l.b16 %v440
    %v1674 = vunpack.c.h.b16 %v440
    %v1675 = vunpack.c.l.b16 %v441
    %v1676 = vunpack.c.h.b16 %v441
    %v1677 = vunpack.c.l.b16 %v442
    %v1678 = vunpack.c.h.b16 %v442
    %v1679 = vunpack.c.l.b16 %v443
    %v1680 = vunpack.c.h.b16 %v443
    %v1681 = vunpack.c.l.b16 %v444
    %v1682 = vunpack.c.h.b16 %v444
    %v1683 = vunpack.c.l.b16 %v445
    %v1684 = vunpack.c.h.b16 %v445
    %v1685 = vunpack.c.l.b16 %v446
    %v1686 = vunpack.c.h.b16 %v446
    %v1687 = vunpack.c.l.b16 %v447
    %v1688 = vunpack.c.h.b16 %v447
    %v1689 = vunpack.c.l.b16 %v448
    %v1690 = vunpack.c.h.b16 %v448
    %v1691 = vunpack.c.l.b16 %v449
    %v1692 = vunpack.c.h.b16 %v449
    %v1693 = vunpack.c.l.b16 %v450
    %v1694 = vunpack.c.h.b16 %v450
    %v1695 = vunpack.c.l.b16 %v451
    %v1696 = vunpack.c.h.b16 %v451
    %v1697 = vunpack.c.l.b16 %v452
    %v1698 = vunpack.c.h.b16 %v452
    %v1699 = vunpack.c.l.b16 %v453
    %v1700 = vunpack.c.h.b16 %v453
    %v1701 = vunpack.c.l.b16 %v454
    %v1702 = vunpack.c.h.b16 %v454
    %v1703 = vunpack.c.l.b16 %v455
    %v1704 = vunpack.c.h.b16 %v455
    %v1705 = vunpack.c.l.b16 %v456
    %v1706 = vunpack.c.h.b16 %v456
    %v1707 = vunpack.c.l.b16 %v457
    %v1708 = vunpack.c.h.b16 %v457
    %v1709 = vunpack.c.l.b16 %v458
    %v1710 = vunpack.c.h.b16 %v458
    %v1711 = vunpack.c.l.b16 %v459
    %v1712 = vunpack.c.h.b16 %v459
    %v1713 = vunpack.c.l.b16 %v460
    %v1714 = vunpack.c.h.b16 %v460
    %v1715 = vunpack.c.l.b16 %v461
    %v1716 = vunpack.c.h.b16 %v461
    %v1717 = vunpack.c.l.b16 %v462
    %v1718 = vunpack.c.h.b16 %v462
    %v1719 = vunpack.c.l.b16 %v463
    %v1720 = vunpack.c.h.b16 %v463
    %v1721 = vunpack.c.l.b16 %v464
    %v1722 = vunpack.c.h.b16 %v464
    %v1723 = vunpack.c.l.b16 %v465
    %v1724 = vunpack.c.h.b16 %v465
    %v1725 = vunpack.c.l.b16 %v466
    %v1726 = vunpack.c.h.b16 %v466
    %v1727 = vunpack.c.l.b16 %v467
    %v1728 = vunpack.c.h.b16 %v467
    %v1729 = vunpack.c.l.b16 %v468
    %v1730 = vunpack.c.h.b16 %v468
    %v1731 = vunpack.c.l.b16 %v469
    %v1732 = vunpack.c.h.b16 %v469
    %v1733 = vunpack.c.l.b16 %v470
    %v1734 = vunpack.c.h.b16 %v470
    %v1735 = vunpack.c.l.b16 %v471
    %v1736 = vunpack.c.h.b16 %v471
    %v1737 = vunpack.c.l.b16 %v472
    %v1738 = vunpack.c.h.b16 %v472
    %v1739 = vunpack.c.l.b16 %v473
    %v1740 = vunpack.c.h.b16 %v473
    %v1741 = vunpack.c.l.b16 %v474
    %v1742 = vunpack.c.h.b16 %v474
    %v1743 = vunpack.c.l.b16 %v475
    %v1744 = vunpack.c.h.b16 %v475
    %v1745 = vunpack.c.l.b16 %v476
    %v1746 = vunpack.c.h.b16 %v476
    %v1747 = vunpack.c.l.b16 %v477
    %v1748 = vunpack.c.h.b16 %v477
    %v1749 = vunpack.c.l.b16 %v478
    %v1750 = vunpack.c.h.b16 %v478
    %v1751 = vunpack.c.l.b16 %v479
    %v1752 = vunpack.c.h.b16 %v479
    %v1753 = vunpack.c.l.b16 %v480
    %v1754 = vunpack.c.h.b16 %v480
    %v1755 = vunpack.c.l.b16 %v481
    %v1756 = vunpack.c.h.b16 %v481
    %v1757 = vunpack.c.l.b16 %v482
    %v1758 = vunpack.c.h.b16 %v482
    %v1759 = vunpack.c.l.b16 %v483
    %v1760 = vunpack.c.h.b16 %v483
    %v1761 = vunpack.c.l.b16 %v484
    %v1762 = vunpack.c.h.b16 %v484
    %v1763 = vunpack.c.l.b16 %v485
    %v1764 = vunpack.c.h.b16 %v485
    %v1765 = vunpack.c.l.b16 %v486
    %v1766 = vunpack.c.h.b16 %v486
    %v1767 = vunpack.c.l.b16 %v487
    %v1768 = vunpack.c.h.b16 %v487
    %v1769 = vunpack.c.l.b16 %v488
    %v1770 = vunpack.c.h.b16 %v488
    %v1771 = vunpack.c.l.b16 %v489
    %v1772 = vunpack.c.h.b16 %v489
    %v1773 = vunpack.c.l.b16 %v490
    %v1774 = vunpack.c.h.b16 %v490
    %v1775 = vunpack.c.l.b16 %v491
    %v1776 = vunpack.c.h.b16 %v491
    %v1777 = vunpack.c.l.b16 %v492
    %v1778 = vunpack.c.h.b16 %v492
    %v1779 = vunpack.c.l.b16 %v493
    %v1780 = vunpack.c.h.b16 %v493
    %v1781 = vunpack.c.l.b16 %v494
    %v1782 = vunpack.c.h.b16 %v494
    %v1783 = vunpack.c.l.b16 %v495
    %v1784 = vunpack.c.h.b16 %v495
    %v1785 = vunpack.c.l.b16 %v496
    %v1786 = vunpack.c.h.b16 %v496
    %v1787 = vunpack.c.l.b16 %v497
    %v1788 = vunpack.c.h.b16 %v497
    %v1789 = vunpack.c.l.b16 %v498
    %v1790 = vunpack.c.h.b16 %v498
    %v1791 = vunpack.c.l.b16 %v499
    %v1792 = vunpack.c.h.b16 %v499
    %v1793 = vunpack.c.l.b16 %v500
    %v1794 = vunpack.c.h.b16 %v500
    %v1795 = vunpack.c.l.b16 %v501
    %v1796 = vunpack.c.h.b16 %v501
    %v1797 = vunpack.c.l.b16 %v502
    %v1798 = vunpack.c.h.b16 %v502
    %v1799 = vunpack.c.l.b16 %v503
    %v1800 = vunpack.c.h.b16 %v503
    %v1801 = vunpack.c.l.b16 %v504
    %v1802 = vunpack.c.h.b16 %v504
    %v1803 = vunpack.c.l.b16 %v505
    %v1804 = vunpack.c.h.b16 %v505
    %v1805 = vunpack.c.l.b16 %v506
    %v1806 = vunpack.c.h.b16 %v506
    %v1807 = vunpack.c.l.b16 %v507
    %v1808 = vunpack.c.h.b16 %v507
    %v1809 = vunpack.c.l.b16 %v508
    %v1810 = vunpack.c.h.b16 %v508
    %v1811 = vunpack.c.l.b16 %v509
    %v1812 = vunpack.c.h.b16 %v509
    %v1813 = vunpack.c.l.b16 %v510
    %v1814 = vunpack.c.h.b16 %v510
    %v1815 = vunpack.c.l.b16 %v511
    %v1816 = vunpack.c.h.b16 %v511
    %v1817 = vunpack.c.l.b16 %v512
    %v1818 = vunpack.c.h.b16 %v512
    %v1819 = vunpack.c.l.b16 %v513
    %v1820 = vunpack.c.h.b16 %v513
    %v1821 = vunpack.c.l.b16 %v514
    %v1822 = vunpack.c.h.b16 %v514
    %v1823 = vunpack.c.l.b16 %v515
    %v1824 = vunpack.c.h.b16 %v515
    %v1825 = vunpack.c.l.b16 %v516
    %v1826 = vunpack.c.h.b16 %v516
    %v1827 = vunpack.c.l.b16 %v517
    %v1828 = vunpack.c.h.b16 %v517
    %v1829 = vunpack.c.l.b16 %v518
    %v1830 = vunpack.c.h.b16 %v518
    %v1831 = vunpack.c.l.b16 %v519
    %v1832 = vunpack.c.h.b16 %v519
    %v1833 = vunpack.c.l.b16 %v520
    %v1834 = vunpack.c.h.b16 %v520
    %v1835 = vunpack.c.l.b16 %v521
    %v1836 = vunpack.c.h.b16 %v521
    %v1837 = vunpack.c.l.b16 %v522
    %v1838 = vunpack.c.h.b16 %v522
    %v1839 = vunpack.c.l.b16 %v523
    %v1840 = vunpack.c.h.b16 %v523
    %v1841 = vunpack.c.l.b16 %v524
    %v1842 = vunpack.c.h.b16 %v524
    %v1843 = vunpack.c.l.b16 %v525
    %v1844 = vunpack.c.h.b16 %v525
    %v1845 = vunpack.c.l.b16 %v526
    %v1846 = vunpack.c.h.b16 %v526
    %v1847 = vunpack.c.l.b16 %v527
    %v1848 = vunpack.c.h.b16 %v527
    %v1849 = vunpack.c.l.b16 %v528
    %v1850 = vunpack.c.h.b16 %v528
    %v1851 = vunpack.c.l.b16 %v529
    %v1852 = vunpack.c.h.b16 %v529
    %v1853 = vunpack.c.l.b16 %v530
    %v1854 = vunpack.c.h.b16 %v530
    %v1855 = vunpack.c.l.b16 %v531
    %v1856 = vunpack.c.h.b16 %v531
    %v1857 = vunpack.c.l.b16 %v532
    %v1858 = vunpack.c.h.b16 %v532
    %v1859 = vunpack.c.l.b16 %v533
    %v1860 = vunpack.c.h.b16 %v533
    %v1861 = vunpack.c.l.b16 %v534
    %v1862 = vunpack.c.h.b16 %v534
    %v1863 = vunpack.c.l.b16 %v535
    %v1864 = vunpack.c.h.b16 %v535
    %v1865 = vunpack.c.l.b16 %v536
    %v1866 = vunpack.c.h.b16 %v536
    %v1867 = vunpack.c.l.b16 %v537
    %v1868 = vunpack.c.h.b16 %v537
    %v1869 = vunpack.c.l.b16 %v538
    %v1870 = vunpack.c.h.b16 %v538
    %v1871 = vunpack.c.l.b16 %v539
    %v1872 = vunpack.c.h.b16 %v539
    %v1873 = vunpack.c.l.b16 %v540
    %v1874 = vunpack.c.h.b16 %v540
    %v1875 = vunpack.c.l.b16 %v541
    %v1876 = vunpack.c.h.b16 %v541
    %v1877 = vunpack.c.l.b16 %v542
    %v1878 = vunpack.c.h.b16 %v542
    %v1879 = vunpack.c.l.b16 %v543
    %v1880 = vunpack.c.h.b16 %v543
    %v1881 = vunpack.c.l.b16 %v544
    %v1882 = vunpack.c.h.b16 %v544
    %v1883 = vunpack.c.l.b16 %v545
    %v1884 = vunpack.c.h.b16 %v545
    %v1885 = vunpack.c.l.b16 %v546
    %v1886 = vunpack.c.h.b16 %v546
    %v1887 = vunpack.c.l.b16 %v547
    %v1888 = vunpack.c.h.b16 %v547
    %v1889 = vunpack.c.l.b16 %v548
    %v1890 = vunpack.c.h.b16 %v548
    %v1891 = vunpack.c.l.b16 %v549
    %v1892 = vunpack.c.h.b16 %v549
    %v1893 = vunpack.c.l.b16 %v550
    %v1894 = vunpack.c.h.b16 %v550
    %v1895 = vunpack.c.l.b16 %v551
    %v1896 = vunpack.c.h.b16 %v551
    %v1897 = vunpack.c.l.b16 %v552
    %v1898 = vunpack.c.h.b16 %v552
    %v1899 = vunpack.c.l.b16 %v553
    %v1900 = vunpack.c.h.b16 %v553
    %v1901 = vunpack.c.l.b16 %v554
    %v1902 = vunpack.c.h.b16 %v554
    %v1903 = vunpack.c.l.b16 %v555
    %v1904 = vunpack.c.h.b16 %v555
    %v1905 = vunpack.c.l.b16 %v556
    %v1906 = vunpack.c.h.b16 %v556
    %v1907 = vunpack.c.l.b16 %v557
    %v1908 = vunpack.c.h.b16 %v557
    %v1909 = vunpack.c.l.b16 %v558
    %v1910 = vunpack.c.h.b16 %v558
    %v1911 = vunpack.c.l.b16 %v559
    %v1912 = vunpack.c.h.b16 %v559
    %v1913 = vunpack.c.l.b16 %v560
    %v1914 = vunpack.c.h.b16 %v560
    %v1915 = vunpack.c.l.b16 %v561
    %v1916 = vunpack.c.h.b16 %v561
    %v1917 = vunpack.c.l.b16 %v562
    %v1918 = vunpack.c.h.b16 %v562
    %v1919 = vunpack.c.l.b16 %v563
    %v1920 = vunpack.c.h.b16 %v563
    %v1921 = vunpack.c.l.b16 %v564
    %v1922 = vunpack.c.h.b16 %v564
    %v1923 = vunpack.c.l.b16 %v565
    %v1924 = vunpack.c.h.b16 %v565
    %v1925 = vunpack.c.l.b16 %v566
    %v1926 = vunpack.c.h.b16 %v566
    %v1927 = vunpack.c.l.b16 %v567
    %v1928 = vunpack.c.h.b16 %v567
    %v1929 = vunpack.c.l.b16 %v568
    %v1930 = vunpack.c.h.b16 %v568
    %v1931 = vunpack.c.l.b16 %v569
    %v1932 = vunpack.c.h.b16 %v569
    %v1933 = vunpack.c.l.b16 %v570
    %v1934 = vunpack.c.h.b16 %v570
    %v1935 = vunpack.c.l.b16 %v571
    %v1936 = vunpack.c.h.b16 %v571
    %v1937 = vunpack.c.l.b16 %v572
    %v1938 = vunpack.c.h.b16 %v572
    %v1939 = vunpack.c.l.b16 %v573
    %v1940 = vunpack.c.h.b16 %v573
    %v1941 = vunpack.c.l.b16 %v574
    %v1942 = vunpack.c.h.b16 %v574
    %v1943 = vunpack.c.l.b16 %v575
    %v1944 = vunpack.c.h.b16 %v575
    %v1945 = vunpack.c.l.b16 %v576
    %v1946 = vunpack.c.h.b16 %v576
    %v1947 = vunpack.c.l.b16 %v577
    %v1948 = vunpack.c.h.b16 %v577
    %v1949 = vunpack.c.l.b16 %v578
    %v1950 = vunpack.c.h.b16 %v578
    %v1951 = vunpack.c.l.b16 %v579
    %v1952 = vunpack.c.h.b16 %v579
    %v1953 = vunpack.c.l.b16 %v580
    %v1954 = vunpack.c.h.b16 %v580
    %v1955 = vunpack.c.l.b16 %v581
    %v1956 = vunpack.c.h.b16 %v581
    %v1957 = vunpack.c.l.b16 %v582
    %v1958 = vunpack.c.h.b16 %v582
    %v1959 = vunpack.c.l.b16 %v583
    %v1960 = vunpack.c.h.b16 %v583
    %v1961 = vunpack.c.l.b16 %v584
    %v1962 = vunpack.c.h.b16 %v584
    %v1963 = vunpack.c.l.b16 %v585
    %v1964 = vunpack.c.h.b16 %v585
    %v1965 = vunpack.c.l.b16 %v586
    %v1966 = vunpack.c.h.b16 %v586
    %v1967 = vunpack.c.l.b16 %v587
    %v1968 = vunpack.c.h.b16 %v587
    %v1969 = vunpack.c.l.b16 %v588
    %v1970 = vunpack.c.h.b16 %v588
    %v1971 = vunpack.c.l.b16 %v589
    %v1972 = vunpack.c.h.b16 %v589
    %v1973 = vunpack.c.l.b16 %v590
    %v1974 = vunpack.c.h.b16 %v590
    %v1975 = vunpack.c.l.b16 %v591
    %v1976 = vunpack.c.h.b16 %v591
    %v1977 = vunpack.c.l.b16 %v592
    %v1978 = vunpack.c.h.b16 %v592
    %v1979 = vunpack.c.l.b16 %v593
    %v1980 = vunpack.c.h.b16 %v593
    %v1981 = vunpack.c.l.b16 %v594
    %v1982 = vunpack.c.h.b16 %v594
    %v1983 = vunpack.c.l.b16 %v595
    %v1984 = vunpack.c.h.b16 %v595
    %v1985 = vunpack.c.l.b16 %v596
    %v1986 = vunpack.c.h.b16 %v596
    %v1987 = vunpack.c.l.b16 %v597
    %v1988 = vunpack.c.h.b16 %v597
    %v1989 = vunpack.c.l.b16 %v598
    %v1990 = vunpack.c.h.b16 %v598
    %v1991 = vunpack.c.l.b16 %v599
    %v1992 = vunpack.c.h.b16 %v599
    %v1993 = vunpack.c.l.b16 %v600
    %v1994 = vunpack.c.h.b16 %v600
    %v1995 = vunpack.c.l.b16 %v601
    %v1996 = vunpack.c.h.b16 %v601
    %v1997 = vunpack.c.l.b16 %v602
    %v1998 = vunpack.c.h.b16 %v602
    %v1999 = vunpack.c.l.b16 %v603
    %v2000 = vunpack.c.h.b16 %v603
    %v2001 = vunpack.c.l.b16 %v604
    %v2002 = vunpack.c.h.b16 %v604
    %v2003 = vunpack.c.l.b16 %v605
    %v2004 = vunpack.c.h.b16 %v605
    %v2005 = vunpack.c.l.b16 %v606
    %v2006 = vunpack.c.h.b16 %v606
    %v2007 = vunpack.c.l.b16 %v607
    %v2008 = vunpack.c.h.b16 %v607
    %v2009 = vunpack.c.l.b16 %v608
    %v2010 = vunpack.c.h.b16 %v608
    %v2011 = vunpack.c.l.b16 %v609
    %v2012 = vunpack.c.h.b16 %v609
    %v2013 = vunpack.c.l.b16 %v610
    %v2014 = vunpack.c.h.b16 %v610
    %v2015 = vunpack.c.l.b16 %v611
    %v2016 = vunpack.c.h.b16 %v611
    %v2017 = vunpack.c.l.b16 %v612
    %v2018 = vunpack.c.h.b16 %v612
    %v2019 = vunpack.c.l.b16 %v613
    %v2020 = vunpack.c.h.b16 %v613
    %v2021 = vunpack.c.l.b16 %v614
    %v2022 = vunpack.c.h.b16 %v614
    %v2023 = vunpack.c.l.b16 %v615
    %v2024 = vunpack.c.h.b16 %v615
    %v2025 = vunpack.c.l.b16 %v616
    %v2026 = vunpack.c.h.b16 %v616
    %v2027 = vunpack.c.l.b16 %v617
    %v2028 = vunpack.c.h.b16 %v617
    %v2029 = vunpack.c.l.b16 %v618
    %v2030 = vunpack.c.h.b16 %v618
    %v2031 = vunpack.c.l.b16 %v619
    %v2032 = vunpack.c.h.b16 %v619
    %v2033 = vunpack.c.l.b16 %v620
    %v2034 = vunpack.c.h.b16 %v620
    %v2035 = vunpack.c.l.b16 %v621
    %v2036 = vunpack.c.h.b16 %v621
    %v2037 = vunpack.c.l.b16 %v622
    %v2038 = vunpack.c.h.b16 %v622
    %v2039 = vunpack.c.l.b16 %v623
    %v2040 = vunpack.c.h.b16 %v623
    %v2041 = vunpack.c.l.b16 %v624
    %v2042 = vunpack.c.h.b16 %v624
    %v2043 = vunpack.c.l.b16 %v625
    %v2044 = vunpack.c.h.b16 %v625
    %v2045 = vunpack.c.l.b16 %v626
    %v2046 = vunpack.c.h.b16 %v626
    %v2047 = vunpack.c.l.b16 %v627
    %v2048 = vunpack.c.h.b16 %v627
    %v2049 = vunpack.c.l.b16 %v628
    %v2050 = vunpack.c.h.b16 %v628
    %v2051 = vunpack.c.l.b16 %v629
    %v2052 = vunpack.c.h.b16 %v629
    %v2053 = vunpack.c.l.b16 %v630
    %v2054 = vunpack.c.h.b16 %v630
    %v2055 = vunpack.c.l.b16 %v631
    %v2056 = vunpack.c.h.b16 %v631
    %v2057 = vunpack.c.l.b16 %v632
    %v2058 = vunpack.c.h.b16 %v632
    %v2059 = vunpack.c.l.b16 %v633
    %v2060 = vunpack.c.h.b16 %v633
    %v2061 = vunpack.c.l.b16 %v634
    %v2062 = vunpack.c.h.b16 %v634
    %v2063 = vunpack.c.l.b16 %v635
    %v2064 = vunpack.c.h.b16 %v635
    %v2065 = vunpack.c.l.b16 %v636
    %v2066 = vunpack.c.h.b16 %v636
    %v2067 = vunpack.c.l.b16 %v637
    %v2068 = vunpack.c.h.b16 %v637
    %v2069 = vunpack.c.l.b16 %v638
    %v2070 = vunpack.c.h.b16 %v638
    %v2071 = vunpack.c.l.b16 %v639
    %v2072 = vunpack.c.h.b16 %v639
    %v2073 = vunpack.c.l.b16 %v640
    %v2074 = vunpack.c.h.b16 %v640
    %v2075 = vunpack.c.l.b16 %v641
    %v2076 = vunpack.c.h.b16 %v641
    %v2077 = vunpack.c.l.b16 %v642
    %v2078 = vunpack.c.h.b16 %v642
    %v2079 = vunpack.c.l.b16 %v643
    %v2080 = vunpack.c.h.b16 %v643
    %v2081 = vunpack.c.l.b16 %v644
    %v2082 = vunpack.c.h.b16 %v644
    %v2083 = vunpack.c.l.b16 %v645
    %v2084 = vunpack.c.h.b16 %v645
    %v2085 = vunpack.c.l.b16 %v646
    %v2086 = vunpack.c.h.b16 %v646
    %v2087 = vunpack.c.l.b16 %v647
    %v2088 = vunpack.c.h.b16 %v647
    %v2089 = vunpack.c.l.b16 %v648
    %v2090 = vunpack.c.h.b16 %v648
    %v2091 = vunpack.c.l.b16 %v649
    %v2092 = vunpack.c.h.b16 %v649
    %v2093 = vunpack.c.l.b16 %v650
    %v2094 = vunpack.c.h.b16 %v650
    %v2095 = vunpack.c.l.b16 %v651
    %v2096 = vunpack.c.h.b16 %v651
    %v2097 = vunpack.c.l.b16 %v652
    %v2098 = vunpack.c.h.b16 %v652
    %v2099 = vunpack.c.l.b16 %v653
    %v2100 = vunpack.c.h.b16 %v653
    %v2101 = vunpack.c.l.b16 %v654
    %v2102 = vunpack.c.h.b16 %v654
    %v2103 = vunpack.c.l.b16 %v655
    %v2104 = vunpack.c.h.b16 %v655
    %v2105 = vunpack.c.l.b16 %v656
    %v2106 = vunpack.c.h.b16 %v656
    %v2107 = vunpack.c.l.b16 %v657
    %v2108 = vunpack.c.h.b16 %v657
    %v2109 = vunpack.c.l.b16 %v658
    %v2110 = vunpack.c.h.b16 %v658
    %v2111 = vunpack.c.l.b16 %v659
    %v2112 = vunpack.c.h.b16 %v659
    %v2113 = vunpack.c.l.b16 %v660
    %v2114 = vunpack.c.h.b16 %v660
    %v2115 = vunpack.c.l.b16 %v661
    %v2116 = vunpack.c.h.b16 %v661
    %v2117 = vunpack.c.l.b16 %v662
    %v2118 = vunpack.c.h.b16 %v662
    %v2119 = vunpack.c.l.b16 %v663
    %v2120 = vunpack.c.h.b16 %v663
    %v2121 = vunpack.c.l.b16 %v664
    %v2122 = vunpack.c.h.b16 %v664
    %v2123 = vunpack.c.l.b16 %v665
    %v2124 = vunpack.c.h.b16 %v665
    %v2125 = vunpack.c.l.b16 %v666
    %v2126 = vunpack.c.h.b16 %v666
    %v2127 = vunpack.c.l.b16 %v667
    %v2128 = vunpack.c.h.b16 %v667
    %v2129 = vunpack.c.l.b16 %v668
    %v2130 = vunpack.c.h.b16 %v668
    %v2131 = vunpack.c.l.b16 %v669
    %v2132 = vunpack.c.h.b16 %v669
    %v2133 = vunpack.c.l.b16 %v670
    %v2134 = vunpack.c.h.b16 %v670
    %v2135 = vunpack.c.l.b16 %v671
    %v2136 = vunpack.c.h.b16 %v671
    %v2137 = vunpack.c.l.b16 %v672
    %v2138 = vunpack.c.h.b16 %v672
    %v2139 = vunpack.c.l.b16 %v673
    %v2140 = vunpack.c.h.b16 %v673
    %v2141 = vunpack.c.l.b16 %v674
    %v2142 = vunpack.c.h.b16 %v674
    %v2143 = vunpack.c.l.b16 %v675
    %v2144 = vunpack.c.h.b16 %v675
    %v2145 = vunpack.c.l.b16 %v676
    %v2146 = vunpack.c.h.b16 %v676
    %v2147 = vunpack.c.l.b16 %v677
    %v2148 = vunpack.c.h.b16 %v677
    %v2149 = vunpack.c.l.b16 %v678
    %v2150 = vunpack.c.h.b16 %v678
    %v2151 = vunpack.c.l.b16 %v679
    %v2152 = vunpack.c.h.b16 %v679
    %v2153 = vunpack.c.l.b16 %v680
    %v2154 = vunpack.c.h.b16 %v680
    %v2155 = vunpack.c.l.b16 %v681
    %v2156 = vunpack.c.h.b16 %v681
    %v2157 = vunpack.c.l.b16 %v682
    %v2158 = vunpack.c.h.b16 %v682
    %v2159 = vunpack.c.l.b16 %v683
    %v2160 = vunpack.c.h.b16 %v683
    %v2161 = vunpack.c.l.b16 %v684
    %v2162 = vunpack.c.h.b16 %v684
    %v2163 = vunpack.c.l.b16 %v685
    %v2164 = vunpack.c.h.b16 %v685
    %v2165 = vunpack.c.l.b16 %v686
    %v2166 = vunpack.c.h.b16 %v686
    %v2167 = vunpack.c.l.b16 %v687
    %v2168 = vunpack.c.h.b16 %v687
    %v2169 = vunpack.c.l.b16 %v688
    %v2170 = vunpack.c.h.b16 %v688
    %v2171 = vunpack.c.l.b16 %v689
    %v2172 = vunpack.c.h.b16 %v689
    %v2173 = vunpack.c.l.b16 %v690
    %v2174 = vunpack.c.h.b16 %v690
    %v2175 = vunpack.c.l.b16 %v691
    %v2176 = vunpack.c.h.b16 %v691
    %v2177 = vunpack.c.l.b16 %v692
    %v2178 = vunpack.c.h.b16 %v692
    %v2179 = vunpack.c.l.b16 %v693
    %v2180 = vunpack.c.h.b16 %v693
    %v2181 = vunpack.c.l.b16 %v694
    %v2182 = vunpack.c.h.b16 %v694
    %v2183 = vunpack.c.l.b16 %v695
    %v2184 = vunpack.c.h.b16 %v695
    %v2185 = vunpack.c.l.b16 %v696
    %v2186 = vunpack.c.h.b16 %v696
    %v2187 = vunpack.c.l.b16 %v697
    %v2188 = vunpack.c.h.b16 %v697
    %v2189 = vunpack.c.l.b16 %v698
    %v2190 = vunpack.c.h.b16 %v698
    %v2191 = vunpack.c.l.b16 %v699
    %v2192 = vunpack.c.h.b16 %v699
    %v2193 = vunpack.c.l.b16 %v700
    %v2194 = vunpack.c.h.b16 %v700
    %v2195 = vunpack.c.l.b16 %v701
    %v2196 = vunpack.c.h.b16 %v701
    %v2197 = vunpack.c.l.b16 %v702
    %v2198 = vunpack.c.h.b16 %v702
    %v2199 = vunpack.c.l.b16 %v703
    %v2200 = vunpack.c.h.b16 %v703
    %v2201 = vunpack.c.l.b16 %v704
    %v2202 = vunpack.c.h.b16 %v704
    %v2203 = vunpack.c.l.b16 %v705
    %v2204 = vunpack.c.h.b16 %v705
    %v2205 = vunpack.c.l.b16 %v706
    %v2206 = vunpack.c.h.b16 %v706
    %v2207 = vunpack.c.l.b16 %v707
    %v2208 = vunpack.c.h.b16 %v707
    %v2209 = vunpack.c.l.b16 %v708
    %v2210 = vunpack.c.h.b16 %v708
    %v2211 = vunpack.c.l.b16 %v709
    %v2212 = vunpack.c.h.b16 %v709
    %v2213 = vunpack.c.l.b16 %v710
    %v2214 = vunpack.c.h.b16 %v710
    %v2215 = vunpack.c.l.b16 %v711
    %v2216 = vunpack.c.h.b16 %v711
    %v2217 = vunpack.c.l.b16 %v712
    %v2218 = vunpack.c.h.b16 %v712
    %v2219 = vunpack.c.l.b16 %v713
    %v2220 = vunpack.c.h.b16 %v713
    %v2221 = vunpack.c.l.b16 %v714
    %v2222 = vunpack.c.h.b16 %v714
    %v2223 = vunpack.c.l.b16 %v715
    %v2224 = vunpack.c.h.b16 %v715
    %v2225 = vunpack.c.l.b16 %v716
    %v2226 = vunpack.c.h.b16 %v716
    %v2227 = vunpack.c.l.b16 %v717
    %v2228 = vunpack.c.h.b16 %v717
    %v2229 = vunpack.c.l.b16 %v718
    %v2230 = vunpack.c.h.b16 %v718
    %v2231 = vunpack.c.l.b16 %v719
    %v2232 = vunpack.c.h.b16 %v719
    %v2233 = vunpack.c.l.b16 %v720
    %v2234 = vunpack.c.h.b16 %v720
    %v2235 = vunpack.c.l.b16 %v721
    %v2236 = vunpack.c.h.b16 %v721
    %v2237 = vunpack.c.l.b16 %v722
    %v2238 = vunpack.c.h.b16 %v722
    %v2239 = vunpack.c.l.b16 %v723
    %v2240 = vunpack.c.h.b16 %v723
    %v2241 = vunpack.c.l.b16 %v724
    %v2242 = vunpack.c.h.b16 %v724
    %v2243 = vunpack.c.l.b16 %v725
    %v2244 = vunpack.c.h.b16 %v725
    %v2245 = vunpack.c.l.b16 %v726
    %v2246 = vunpack.c.h.b16 %v726
    %v2247 = vunpack.c.l.b16 %v727
    %v2248 = vunpack.c.h.b16 %v727
    %v2249 = vunpack.c.l.b16 %v728
    %v2250 = vunpack.c.h.b16 %v728
    %v2251 = vunpack.c.l.b16 %v729
    %v2252 = vunpack.c.h.b16 %v729
    %v2253 = vunpack.c.l.b16 %v730
    %v2254 = vunpack.c.h.b16 %v730
    %v2255 = vunpack.c.l.b16 %v731
    %v2256 = vunpack.c.h.b16 %v731
    %v2257 = vunpack.c.l.b16 %v732
    %v2258 = vunpack.c.h.b16 %v732
    %v2259 = vunpack.c.l.b16 %v733
    %v2260 = vunpack.c.h.b16 %v733
    %v2261 = vunpack.c.l.b16 %v734
    %v2262 = vunpack.c.h.b16 %v734
    %v2263 = vunpack.c.l.b16 %v735
    %v2264 = vunpack.c.h.b16 %v735
    %v2265 = vunpack.c.l.b16 %v736
    %v2266 = vunpack.c.h.b16 %v736
    %v2267 = vunpack.c.l.b16 %v737
    %v2268 = vunpack.c.h.b16 %v737
    %v2269 = vunpack.c.l.b16 %v738
    %v2270 = vunpack.c.h.b16 %v738
    %v2271 = vunpack.c.l.b16 %v739
    %v2272 = vunpack.c.h.b16 %v739
    %v2273 = vunpack.c.l.b16 %v740
    %v2274 = vunpack.c.h.b16 %v740
    %v2275 = vunpack.c.l.b16 %v741
    %v2276 = vunpack.c.h.b16 %v741
    %v2277 = vunpack.c.l.b16 %v742
    %v2278 = vunpack.c.h.b16 %v742
    %v2279 = vunpack.c.l.b16 %v743
    %v2280 = vunpack.c.h.b16 %v743
    %v2281 = vunpack.c.l.b16 %v744
    %v2282 = vunpack.c.h.b16 %v744
    %v2283 = vunpack.c.l.b16 %v745
    %v2284 = vunpack.c.h.b16 %v745
    %v2285 = vunpack.c.l.b16 %v746
    %v2286 = vunpack.c.h.b16 %v746
    %v2287 = vunpack.c.l.b16 %v747
    %v2288 = vunpack.c.h.b16 %v747
    %v2289 = vunpack.c.l.b16 %v748
    %v2290 = vunpack.c.h.b16 %v748
    %v2291 = vunpack.c.l.b16 %v749
    %v2292 = vunpack.c.h.b16 %v749
    %v2293 = vunpack.c.l.b16 %v750
    %v2294 = vunpack.c.h.b16 %v750
    %v2295 = vunpack.c.l.b16 %v751
    %v2296 = vunpack.c.h.b16 %v751
    %v2297 = vunpack.c.l.b16 %v752
    %v2298 = vunpack.c.h.b16 %v752
    %v2299 = vunpack.c.l.b16 %v753
    %v2300 = vunpack.c.h.b16 %v753
    %v2301 = vunpack.c.l.b16 %v754
    %v2302 = vunpack.c.h.b16 %v754
    %v2303 = vunpack.c.l.b16 %v755
    %v2304 = vunpack.c.h.b16 %v755
    %v2305 = vunpack.c.l.b16 %v756
    %v2306 = vunpack.c.h.b16 %v756
    %v2307 = vunpack.c.l.b16 %v757
    %v2308 = vunpack.c.h.b16 %v757
    %v2309 = vunpack.c.l.b16 %v758
    %v2310 = vunpack.c.h.b16 %v758
    %v2311 = vunpack.c.l.b16 %v759
    %v2312 = vunpack.c.h.b16 %v759
    %v2313 = vunpack.c.l.b16 %v760
    %v2314 = vunpack.c.h.b16 %v760
    %v2315 = vunpack.c.l.b16 %v761
    %v2316 = vunpack.c.h.b16 %v761
    %v2317 = vunpack.c.l.b16 %v762
    %v2318 = vunpack.c.h.b16 %v762
    %v2319 = vunpack.c.l.b16 %v763
    %v2320 = vunpack.c.h.b16 %v763
    %v2321 = vunpack.c.l.b16 %v764
    %v2322 = vunpack.c.h.b16 %v764
    %v2323 = vpack.c.b16 %v1303, %v1299
    %v2324 = vpack.c.b16 %v1304, %v1300
    %v2325 = vpack.c.b16 %v1305, %v1301
    %v2326 = vpack.c.b16 %v1306, %v1302
    %v2327 = vpack.c.b16 %v1311, %v1307
    %v2328 = vpack.c.b16 %v1312, %v1308
    %v2329 = vpack.c.b16 %v1313, %v1309
    %v2330 = vpack.c.b16 %v1314, %v1310
    %v2331 = vpack.c.b16 %v1319, %v1315
    %v2332 = vpack.c.b16 %v1320, %v1316
    %v2333 = vpack.c.b16 %v1321, %v1317
    %v2334 = vpack.c.b16 %v1322, %v1318
    %v2335 = vpack.c.b16 %v1327, %v1323
    %v2336 = vpack.c.b16 %v1328, %v1324
    %v2337 = vpack.c.b16 %v1329, %v1325
    %v2338 = vpack.c.b16 %v1330, %v1326
    %v2339 = vpack.c.b16 %v1335, %v1331
    %v2340 = vpack.c.b16 %v1336, %v1332
    %v2341 = vpack.c.b16 %v1337, %v1333
    %v2342 = vpack.c.b16 %v1338, %v1334
    %v2343 = vpack.c.b16 %v1343, %v1339
    %v2344 = vpack.c.b16 %v1344, %v1340
    %v2345 = vpack.c.b16 %v1345, %v1341
    %v2346 = vpack.c.b16 %v1346, %v1342
    %v2347 = vpack.c.b16 %v1351, %v1347
    %v2348 = vpack.c.b16 %v1352, %v1348
    %v2349 = vpack.c.b16 %v1353, %v1349
    %v2350 = vpack.c.b16 %v1354, %v1350
    %v2351 = vpack.c.b16 %v1359, %v1355
    %v2352 = vpack.c.b16 %v1360, %v1356
    %v2353 = vpack.c.b16 %v1361, %v1357
    %v2354 = vpack.c.b16 %v1362, %v1358
    %v2355 = vpack.c.b16 %v1367, %v1363
    %v2356 = vpack.c.b16 %v1368, %v1364
    %v2357 = vpack.c.b16 %v1369, %v1365
    %v2358 = vpack.c.b16 %v1370, %v1366
    %v2359 = vpack.c.b16 %v1375, %v1371
    %v2360 = vpack.c.b16 %v1376, %v1372
    %v2361 = vpack.c.b16 %v1377, %v1373
    %v2362 = vpack.c.b16 %v1378, %v1374
    %v2363 = vpack.c.b16 %v1383, %v1379
    %v2364 = vpack.c.b16 %v1384, %v1380
    %v2365 = vpack.c.b16 %v1385, %v1381
    %v2366 = vpack.c.b16 %v1386, %v1382
    %v2367 = vpack.c.b16 %v1391, %v1387
    %v2368 = vpack.c.b16 %v1392, %v1388
    %v2369 = vpack.c.b16 %v1393, %v1389
    %v2370 = vpack.c.b16 %v1394, %v1390
    %v2371 = vpack.c.b16 %v1399, %v1395
    %v2372 = vpack.c.b16 %v1400, %v1396
    %v2373 = vpack.c.b16 %v1401, %v1397
    %v2374 = vpack.c.b16 %v1402, %v1398
    %v2375 = vpack.c.b16 %v1407, %v1403
    %v2376 = vpack.c.b16 %v1408, %v1404
    %v2377 = vpack.c.b16 %v1409, %v1405
    %v2378 = vpack.c.b16 %v1410, %v1406
    %v2379 = vpack.c.b16 %v1415, %v1411
    %v2380 = vpack.c.b16 %v1416, %v1412
    %v2381 = vpack.c.b16 %v1417, %v1413
    %v2382 = vpack.c.b16 %v1418, %v1414
    %v2383 = vpack.c.b16 %v1423, %v1419
    %v2384 = vpack.c.b16 %v1424, %v1420
    %v2385 = vpack.c.b16 %v1425, %v1421
    %v2386 = vpack.c.b16 %v1426, %v1422
    %v2387 = vpack.c.b16 %v1431, %v1427
    %v2388 = vpack.c.b16 %v1432, %v1428
    %v2389 = vpack.c.b16 %v1433, %v1429
    %v2390 = vpack.c.b16 %v1434, %v1430
    %v2391 = vpack.c.b16 %v1439, %v1435
    %v2392 = vpack.c.b16 %v1440, %v1436
    %v2393 = vpack.c.b16 %v1441, %v1437
    %v2394 = vpack.c.b16 %v1442, %v1438
    %v2395 = vpack.c.b16 %v1447, %v1443
    %v2396 = vpack.c.b16 %v1448, %v1444
    %v2397 = vpack.c.b16 %v1449, %v1445
    %v2398 = vpack.c.b16 %v1450, %v1446
    %v2399 = vpack.c.b16 %v1455, %v1451
    %v2400 = vpack.c.b16 %v1456, %v1452
    %v2401 = vpack.c.b16 %v1457, %v1453
    %v2402 = vpack.c.b16 %v1458, %v1454
    %v2403 = vpack.c.b16 %v1463, %v1459
    %v2404 = vpack.c.b16 %v1464, %v1460
    %v2405 = vpack.c.b16 %v1465, %v1461
    %v2406 = vpack.c.b16 %v1466, %v1462
    %v2407 = vpack.c.b16 %v1471, %v1467
    %v2408 = vpack.c.b16 %v1472, %v1468
    %v2409 = vpack.c.b16 %v1473, %v1469
    %v2410 = vpack.c.b16 %v1474, %v1470
    %v2411 = vpack.c.b16 %v1479, %v1475
    %v2412 = vpack.c.b16 %v1480, %v1476
    %v2413 = vpack.c.b16 %v1481, %v1477
    %v2414 = vpack.c.b16 %v1482, %v1478
    %v2415 = vpack.c.b16 %v1487, %v1483
    %v2416 = vpack.c.b16 %v1488, %v1484
    %v2417 = vpack.c.b16 %v1489, %v1485
    %v2418 = vpack.c.b16 %v1490, %v1486
    %v2419 = vpack.c.b16 %v1495, %v1491
    %v2420 = vpack.c.b16 %v1496, %v1492
    %v2421 = vpack.c.b16 %v1497, %v1493
    %v2422 = vpack.c.b16 %v1498, %v1494
    %v2423 = vpack.c.b16 %v1503, %v1499
    %v2424 = vpack.c.b16 %v1504, %v1500
    %v2425 = vpack.c.b16 %v1505, %v1501
    %v2426 = vpack.c.b16 %v1506, %v1502
    %v2427 = vpack.c.b16 %v1511, %v1507
    %v2428 = vpack.c.b16 %v1512, %v1508
    %v2429 = vpack.c.b16 %v1513, %v1509
    %v2430 = vpack.c.b16 %v1514, %v1510
    %v2431 = vpack.c.b16 %v1519, %v1515
    %v2432 = vpack.c.b16 %v1520, %v1516
    %v2433 = vpack.c.b16 %v1521, %v1517
    %v2434 = vpack.c.b16 %v1522, %v1518
    %v2435 = vpack.c.b16 %v1527, %v1523
    %v2436 = vpack.c.b16 %v1528, %v1524
    %v2437 = vpack.c.b16 %v1529, %v1525
    %v2438 = vpack.c.b16 %v1530, %v1526
    %v2439 = vpack.c.b16 %v1535, %v1531
    %v2440 = vpack.c.b16 %v1536, %v1532
    %v2441 = vpack.c.b16 %v1537, %v1533
    %v2442 = vpack.c.b16 %v1538, %v1534
    %v2443 = vpack.c.b16 %v1543, %v1539
    %v2444 = vpack.c.b16 %v1544, %v1540
    %v2445 = vpack.c.b16 %v1545, %v1541
    %v2446 = vpack.c.b16 %v1546, %v1542
    %v2447 = vpack.c.b16 %v1551, %v1547
    %v2448 = vpack.c.b16 %v1552, %v1548
    %v2449 = vpack.c.b16 %v1553, %v1549
    %v2450 = vpack.c.b16 %v1554, %v1550
    %v2451 = vpack.c.b16 %v1559, %v1555
    %v2452 = vpack.c.b16 %v1560, %v1556
    %v2453 = vpack.c.b16 %v1561, %v1557
    %v2454 = vpack.c.b16 %v1562, %v1558
    %v2455 = vpack.c.b16 %v1567, %v1563
    %v2456 = vpack.c.b16 %v1568, %v1564
    %v2457 = vpack.c.b16 %v1569, %v1565
    %v2458 = vpack.c.b16 %v1570, %v1566
    %v2459 = vpack.c.b16 %v1575, %v1571
    %v2460 = vpack.c.b16 %v1576, %v1572
    %v2461 = vpack.c.b16 %v1577, %v1573
    %v2462 = vpack.c.b16 %v1578, %v1574
    %v2463 = vpack.c.b16 %v1583, %v1579
    %v2464 = vpack.c.b16 %v1584, %v1580
    %v2465 = vpack.c.b16 %v1585, %v1581
    %v2466 = vpack.c.b16 %v1586, %v1582
    %v2467 = vpack.c.b16 %v1591, %v1587
    %v2468 = vpack.c.b16 %v1592, %v1588
    %v2469 = vpack.c.b16 %v1593, %v1589
    %v2470 = vpack.c.b16 %v1594, %v1590
    %v2471 = vpack.c.b16 %v1599, %v1595
    %v2472 = vpack.c.b16 %v1600, %v1596
    %v2473 = vpack.c.b16 %v1601, %v1597
    %v2474 = vpack.c.b16 %v1602, %v1598
    %v2475 = vpack.c.b16 %v1607, %v1603
    %v2476 = vpack.c.b16 %v1608, %v1604
    %v2477 = vpack.c.b16 %v1609, %v1605
    %v2478 = vpack.c.b16 %v1610, %v1606
    %v2479 = vpack.c.b16 %v1615, %v1611
    %v2480 = vpack.c.b16 %v1616, %v1612
    %v2481 = vpack.c.b16 %v1617, %v1613
    %v2482 = vpack.c.b16 %v1618, %v1614
    %v2483 = vpack.c.b16 %v1623, %v1619
    %v2484 = vpack.c.b16 %v1624, %v1620
    %v2485 = vpack.c.b16 %v1625, %v1621
    %v2486 = vpack.c.b16 %v1626, %v1622
    %v2487 = vpack.c.b16 %v1631, %v1627
    %v2488 = vpack.c.b16 %v1632, %v1628
    %v2489 = vpack.c.b16 %v1633, %v1629
    %v2490 = vpack.c.b16 %v1634, %v1630
    %v2491 = vpack.c.b16 %v1639, %v1635
    %v2492 = vpack.c.b16 %v1640, %v1636
    %v2493 = vpack.c.b16 %v1641, %v1637
    %v2494 = vpack.c.b16 %v1642, %v1638
    %v2495 = vpack.c.b16 %v1647, %v1643
    %v2496 = vpack.c.b16 %v1648, %v1644
    %v2497 = vpack.c.b16 %v1649, %v1645
    %v2498 = vpack.c.b16 %v1650, %v1646
    %v2499 = vpack.c.b16 %v1655, %v1651
    %v2500 = vpack.c.b16 %v1656, %v1652
    %v2501 = vpack.c.b16 %v1657, %v1653
    %v2502 = vpack.c.b16 %v1658, %v1654
    %v2503 = vpack.c.b16 %v1663, %v1659
    %v2504 = vpack.c.b16 %v1664, %v1660
    %v2505 = vpack.c.b16 %v1665, %v1661
    %v2506 = vpack.c.b16 %v1666, %v1662
    %v2507 = vpack.c.b16 %v1671, %v1667
    %v2508 = vpack.c.b16 %v1672, %v1668
    %v2509 = vpack.c.b16 %v1673, %v1669
    %v2510 = vpack.c.b16 %v1674, %v1670
    %v2511 = vpack.c.b16 %v1679, %v1675
    %v2512 = vpack.c.b16 %v1680, %v1676
    %v2513 = vpack.c.b16 %v1681, %v1677
    %v2514 = vpack.c.b16 %v1682, %v1678
    %v2515 = vpack.c.b16 %v1687, %v1683
    %v2516 = vpack.c.b16 %v1688, %v1684
    %v2517 = vpack.c.b16 %v1689, %v1685
    %v2518 = vpack.c.b16 %v1690, %v1686
    %v2519 = vpack.c.b16 %v1695, %v1691
    %v2520 = vpack.c.b16 %v1696, %v1692
    %v2521 = vpack.c.b16 %v1697, %v1693
    %v2522 = vpack.c.b16 %v1698, %v1694
    %v2523 = vpack.c.b16 %v1703, %v1699
    %v2524 = vpack.c.b16 %v1704, %v1700
    %v2525 = vpack.c.b16 %v1705, %v1701
    %v2526 = vpack.c.b16 %v1706, %v1702
    %v2527 = vpack.c.b16 %v1711, %v1707
    %v2528 = vpack.c.b16 %v1712, %v1708
    %v2529 = vpack.c.b16 %v1713, %v1709
    %v2530 = vpack.c.b16 %v1714, %v1710
    %v2531 = vpack.c.b16 %v1719, %v1715
    %v2532 = vpack.c.b16 %v1720, %v1716
    %v2533 = vpack.c.b16 %v1721, %v1717
    %v2534 = vpack.c.b16 %v1722, %v1718
    %v2535 = vpack.c.b16 %v1727, %v1723
    %v2536 = vpack.c.b16 %v1728, %v1724
    %v2537 = vpack.c.b16 %v1729, %v1725
    %v2538 = vpack.c.b16 %v1730, %v1726
    %v2539 = vpack.c.b16 %v1735, %v1731
    %v2540 = vpack.c.b16 %v1736, %v1732
    %v2541 = vpack.c.b16 %v1737, %v1733
    %v2542 = vpack.c.b16 %v1738, %v1734
    %v2543 = vpack.c.b16 %v1743, %v1739
    %v2544 = vpack.c.b16 %v1744, %v1740
    %v2545 = vpack.c.b16 %v1745, %v1741
    %v2546 = vpack.c.b16 %v1746, %v1742
    %v2547 = vpack.c.b16 %v1751, %v1747
    %v2548 = vpack.c.b16 %v1752, %v1748
    %v2549 = vpack.c.b16 %v1753, %v1749
    %v2550 = vpack.c.b16 %v1754, %v1750
    %v2551 = vpack.c.b16 %v1759, %v1755
    %v2552 = vpack.c.b16 %v1760, %v1756
    %v2553 = vpack.c.b16 %v1761, %v1757
    %v2554 = vpack.c.b16 %v1762, %v1758
    %v2555 = vpack.c.b16 %v1767, %v1763
    %v2556 = vpack.c.b16 %v1768, %v1764
    %v2557 = vpack.c.b16 %v1769, %v1765
    %v2558 = vpack.c.b16 %v1770, %v1766
    %v2559 = vpack.c.b16 %v1775, %v1771
    %v2560 = vpack.c.b16 %v1776, %v1772
    %v2561 = vpack.c.b16 %v1777, %v1773
    %v2562 = vpack.c.b16 %v1778, %v1774
    %v2563 = vpack.c.b16 %v1783, %v1779
    %v2564 = vpack.c.b16 %v1784, %v1780
    %v2565 = vpack.c.b16 %v1785, %v1781
    %v2566 = vpack.c.b16 %v1786, %v1782
    %v2567 = vpack.c.b16 %v1791, %v1787
    %v2568 = vpack.c.b16 %v1792, %v1788
    %v2569 = vpack.c.b16 %v1793, %v1789
    %v2570 = vpack.c.b16 %v1794, %v1790
    %v2571 = vpack.c.b16 %v1799, %v1795
    %v2572 = vpack.c.b16 %v1800, %v1796
    %v2573 = vpack.c.b16 %v1801, %v1797
    %v2574 = vpack.c.b16 %v1802, %v1798
    %v2575 = vpack.c.b16 %v1807, %v1803
    %v2576 = vpack.c.b16 %v1808, %v1804
    %v2577 = vpack.c.b16 %v1809, %v1805
    %v2578 = vpack.c.b16 %v1810, %v1806
    %v2579 = vpack.c.b16 %v1815, %v1811
    %v2580 = vpack.c.b16 %v1816, %v1812
    %v2581 = vpack.c.b16 %v1817, %v1813
    %v2582 = vpack.c.b16 %v1818, %v1814
    %v2583 = vpack.c.b16 %v1823, %v1819
    %v2584 = vpack.c.b16 %v1824, %v1820
    %v2585 = vpack.c.b16 %v1825, %v1821
    %v2586 = vpack.c.b16 %v1826, %v1822
    %v2587 = vpack.c.b16 %v1831, %v1827
    %v2588 = vpack.c.b16 %v1832, %v1828
    %v2589 = vpack.c.b16 %v1833, %v1829
    %v2590 = vpack.c.b16 %v1834, %v1830
    %v2591 = vpack.c.b16 %v1839, %v1835
    %v2592 = vpack.c.b16 %v1840, %v1836
    %v2593 = vpack.c.b16 %v1841, %v1837
    %v2594 = vpack.c.b16 %v1842, %v1838
    %v2595 = vpack.c.b16 %v1847, %v1843
    %v2596 = vpack.c.b16 %v1848, %v1844
    %v2597 = vpack.c.b16 %v1849, %v1845
    %v2598 = vpack.c.b16 %v1850, %v1846
    %v2599 = vpack.c.b16 %v1855, %v1851
    %v2600 = vpack.c.b16 %v1856, %v1852
    %v2601 = vpack.c.b16 %v1857, %v1853
    %v2602 = vpack.c.b16 %v1858, %v1854
    %v2603 = vpack.c.b16 %v1863, %v1859
    %v2604 = vpack.c.b16 %v1864, %v1860
    %v2605 = vpack.c.b16 %v1865, %v1861
    %v2606 = vpack.c.b16 %v1866, %v1862
    %v2607 = vpack.c.b16 %v1871, %v1867
    %v2608 = vpack.c.b16 %v1872, %v1868
    %v2609 = vpack.c.b16 %v1873, %v1869
    %v2610 = vpack.c.b16 %v1874, %v1870
    %v2611 = vpack.c.b16 %v1879, %v1875
    %v2612 = vpack.c.b16 %v1880, %v1876
    %v2613 = vpack.c.b16 %v1881, %v1877
    %v2614 = vpack.c.b16 %v1882, %v1878
    %v2615 = vpack.c.b16 %v1887, %v1883
    %v2616 = vpack.c.b16 %v1888, %v1884
    %v2617 = vpack.c.b16 %v1889, %v1885
    %v2618 = vpack.c.b16 %v1890, %v1886
    %v2619 = vpack.c.b16 %v1895, %v1891
    %v2620 = vpack.c.b16 %v1896, %v1892
    %v2621 = vpack.c.b16 %v1897, %v1893
    %v2622 = vpack.c.b16 %v1898, %v1894
    %v2623 = vpack.c.b16 %v1903, %v1899
    %v2624 = vpack.c.b16 %v1904, %v1900
    %v2625 = vpack.c.b16 %v1905, %v1901
    %v2626 = vpack.c.b16 %v1906, %v1902
    %v2627 = vpack.c.b16 %v1911, %v1907
    %v2628 = vpack.c.b16 %v1912, %v1908
    %v2629 = vpack.c.b16 %v1913, %v1909
    %v2630 = vpack.c.b16 %v1914, %v1910
    %v2631 = vpack.c.b16 %v1919, %v1915
    %v2632 = vpack.c.b16 %v1920, %v1916
    %v2633 = vpack.c.b16 %v1921, %v1917
    %v2634 = vpack.c.b16 %v1922, %v1918
    %v2635 = vpack.c.b16 %v1927, %v1923
    %v2636 = vpack.c.b16 %v1928, %v1924
    %v2637 = vpack.c.b16 %v1929, %v1925
    %v2638 = vpack.c.b16 %v1930, %v1926
    %v2639 = vpack.c.b16 %v1935, %v1931
    %v2640 = vpack.c.b16 %v1936, %v1932
    %v2641 = vpack.c.b16 %v1937, %v1933
    %v2642 = vpack.c.b16 %v1938, %v1934
    %v2643 = vpack.c.b16 %v1943, %v1939
    %v2644 = vpack.c.b16 %v1944, %v1940
    %v2645 = vpack.c.b16 %v1945, %v1941
    %v2646 = vpack.c.b16 %v1946, %v1942
    %v2647 = vpack.c.b16 %v1951, %v1947
    %v2648 = vpack.c.b16 %v1952, %v1948
    %v2649 = vpack.c.b16 %v1953, %v1949
    %v2650 = vpack.c.b16 %v1954, %v1950
    %v2651 = vpack.c.b16 %v1959, %v1955
    %v2652 = vpack.c.b16 %v1960, %v1956
    %v2653 = vpack.c.b16 %v1961, %v1957
    %v2654 = vpack.c.b16 %v1962, %v1958
    %v2655 = vpack.c.b16 %v1967, %v1963
    %v2656 = vpack.c.b16 %v1968, %v1964
    %v2657 = vpack.c.b16 %v1969, %v1965
    %v2658 = vpack.c.b16 %v1970, %v1966
    %v2659 = vpack.c.b16 %v1975, %v1971
    %v2660 = vpack.c.b16 %v1976, %v1972
    %v2661 = vpack.c.b16 %v1977, %v1973
    %v2662 = vpack.c.b16 %v1978, %v1974
    %v2663 = vpack.c.b16 %v1983, %v1979
    %v2664 = vpack.c.b16 %v1984, %v1980
    %v2665 = vpack.c.b16 %v1985, %v1981
    %v2666 = vpack.c.b16 %v1986, %v1982
    %v2667 = vpack.c.b16 %v1991, %v1987
    %v2668 = vpack.c.b16 %v1992, %v1988
    %v2669 = vpack.c.b16 %v1993, %v1989
    %v2670 = vpack.c.b16 %v1994, %v1990
    %v2671 = vpack.c.b16 %v1999, %v1995
    %v2672 = vpack.c.b16 %v2000, %v1996
    %v2673 = vpack.c.b16 %v2001, %v1997
    %v2674 = vpack.c.b16 %v2002, %v1998
    %v2675 = vpack.c.b16 %v2007, %v2003
    %v2676 = vpack.c.b16 %v2008, %v2004
    %v2677 = vpack.c.b16 %v2009, %v2005
    %v2678 = vpack.c.b16 %v2010, %v2006
    %v2679 = vpack.c.b16 %v2015, %v2011
    %v2680 = vpack.c.b16 %v2016, %v2012
    %v2681 = vpack.c.b16 %v2017, %v2013
    %v2682 = vpack.c.b16 %v2018, %v2014
    %v2683 = vpack.c.b16 %v2023, %v2019
    %v2684 = vpack.c.b16 %v2024, %v2020
    %v2685 = vpack.c.b16 %v2025, %v2021
    %v2686 = vpack.c.b16 %v2026, %v2022
    %v2687 = vpack.c.b16 %v2031, %v2027
    %v2688 = vpack.c.b16 %v2032, %v2028
    %v2689 = vpack.c.b16 %v2033, %v2029
    %v2690 = vpack.c.b16 %v2034, %v2030
    %v2691 = vpack.c.b16 %v2039, %v2035
    %v2692 = vpack.c.b16 %v2040, %v2036
    %v2693 = vpack.c.b16 %v2041, %v2037
    %v2694 = vpack.c.b16 %v2042, %v2038
    %v2695 = vpack.c.b16 %v2047, %v2043
    %v2696 = vpack.c.b16 %v2048, %v2044
    %v2697 = vpack.c.b16 %v2049, %v2045
    %v2698 = vpack.c.b16 %v2050, %v2046
    %v2699 = vpack.c.b16 %v2055, %v2051
    %v2700 = vpack.c.b16 %v2056, %v2052
    %v2701 = vpack.c.b16 %v2057, %v2053
    %v2702 = vpack.c.b16 %v2058, %v2054
    %v2703 = vpack.c.b16 %v2063, %v2059
    %v2704 = vpack.c.b16 %v2064, %v2060
    %v2705 = vpack.c.b16 %v2065, %v2061
    %v2706 = vpack.c.b16 %v2066, %v2062
    %v2707 = vpack.c.b16 %v2071, %v2067
    %v2708 = vpack.c.b16 %v2072, %v2068
    %v2709 = vpack.c.b16 %v2073, %v2069
    %v2710 = vpack.c.b16 %v2074, %v2070
    %v2711 = vpack.c.b16 %v2079, %v2075
    %v2712 = vpack.c.b16 %v2080, %v2076
    %v2713 = vpack.c.b16 %v2081, %v2077
    %v2714 = vpack.c.b16 %v2082, %v2078
    %v2715 = vpack.c.b16 %v2087, %v2083
    %v2716 = vpack.c.b16 %v2088, %v2084
    %v2717 = vpack.c.b16 %v2089, %v2085
    %v2718 = vpack.c.b16 %v2090, %v2086
    %v2719 = vpack.c.b16 %v2095, %v2091
    %v2720 = vpack.c.b16 %v2096, %v2092
    %v2721 = vpack.c.b16 %v2097, %v2093
    %v2722 = vpack.c.b16 %v2098, %v2094
    %v2723 = vpack.c.b16 %v2103, %v2099
    %v2724 = vpack.c.b16 %v2104, %v2100
    %v2725 = vpack.c.b16 %v2105, %v2101
    %v2726 = vpack.c.b16 %v2106, %v2102
    %v2727 = vpack.c.b16 %v2111, %v2107
    %v2728 = vpack.c.b16 %v2112, %v2108
    %v2729 = vpack.c.b16 %v2113, %v2109
    %v2730 = vpack.c.b16 %v2114, %v2110
    %v2731 = vpack.c.b16 %v2119, %v2115
    %v2732 = vpack.c.b16 %v2120, %v2116
    %v2733 = vpack.c.b16 %v2121, %v2117
    %v2734 = vpack.c.b16 %v2122, %v2118
    %v2735 = vpack.c.b16 %v2127, %v2123
    %v2736 = vpack.c.b16 %v2128, %v2124
    %v2737 = vpack.c.b16 %v2129, %v2125
    %v2738 = vpack.c.b16 %v2130, %v2126
    %v2739 = vpack.c.b16 %v2135, %v2131
    %v2740 = vpack.c.b16 %v2136, %v2132
    %v2741 = vpack.c.b16 %v2137, %v2133
    %v2742 = vpack.c.b16 %v2138, %v2134
    %v2743 = vpack.c.b16 %v2143, %v2139
    %v2744 = vpack.c.b16 %v2144, %v2140
    %v2745 = vpack.c.b16 %v2145, %v2141
    %v2746 = vpack.c.b16 %v2146, %v2142
    %v2747 = vpack.c.b16 %v2151, %v2147
    %v2748 = vpack.c.b16 %v2152, %v2148
    %v2749 = vpack.c.b16 %v2153, %v2149
    %v2750 = vpack.c.b16 %v2154, %v2150
    %v2751 = vpack.c.b16 %v2159, %v2155
    %v2752 = vpack.c.b16 %v2160, %v2156
    %v2753 = vpack.c.b16 %v2161, %v2157
    %v2754 = vpack.c.b16 %v2162, %v2158
    %v2755 = vpack.c.b16 %v2167, %v2163
    %v2756 = vpack.c.b16 %v2168, %v2164
    %v2757 = vpack.c.b16 %v2169, %v2165
    %v2758 = vpack.c.b16 %v2170, %v2166
    %v2759 = vpack.c.b16 %v2175, %v2171
    %v2760 = vpack.c.b16 %v2176, %v2172
    %v2761 = vpack.c.b16 %v2177, %v2173
    %v2762 = vpack.c.b16 %v2178, %v2174
    %v2763 = vpack.c.b16 %v2183, %v2179
    %v2764 = vpack.c.b16 %v2184, %v2180
    %v2765 = vpack.c.b16 %v2185, %v2181
    %v2766 = vpack.c.b16 %v2186, %v2182
    %v2767 = vpack.c.b16 %v2191, %v2187
    %v2768 = vpack.c.b16 %v2192, %v2188
    %v2769 = vpack.c.b16 %v2193, %v2189
    %v2770 = vpack.c.b16 %v2194, %v2190
    %v2771 = vpack.c.b16 %v2199, %v2195
    %v2772 = vpack.c.b16 %v2200, %v2196
    %v2773 = vpack.c.b16 %v2201, %v2197
    %v2774 = vpack.c.b16 %v2202, %v2198
    %v2775 = vpack.c.b16 %v2207, %v2203
    %v2776 = vpack.c.b16 %v2208, %v2204
    %v2777 = vpack.c.b16 %v2209, %v2205
    %v2778 = vpack.c.b16 %v2210, %v2206
    %v2779 = vpack.c.b16 %v2215, %v2211
    %v2780 = vpack.c.b16 %v2216, %v2212
    %v2781 = vpack.c.b16 %v2217, %v2213
    %v2782 = vpack.c.b16 %v2218, %v2214
    %v2783 = vpack.c.b16 %v2223, %v2219
    %v2784 = vpack.c.b16 %v2224, %v2220
    %v2785 = vpack.c.b16 %v2225, %v2221
    %v2786 = vpack.c.b16 %v2226, %v2222
    %v2787 = vpack.c.b16 %v2231, %v2227
    %v2788 = vpack.c.b16 %v2232, %v2228
    %v2789 = vpack.c.b16 %v2233, %v2229
    %v2790 = vpack.c.b16 %v2234, %v2230
    %v2791 = vpack.c.b16 %v2239, %v2235
    %v2792 = vpack.c.b16 %v2240, %v2236
    %v2793 = vpack.c.b16 %v2241, %v2237
    %v2794 = vpack.c.b16 %v2242, %v2238
    %v2795 = vpack.c.b16 %v2247, %v2243
    %v2796 = vpack.c.b16 %v2248, %v2244
    %v2797 = vpack.c.b16 %v2249, %v2245
    %v2798 = vpack.c.b16 %v2250, %v2246
    %v2799 = vpack.c.b16 %v2255, %v2251
    %v2800 = vpack.c.b16 %v2256, %v2252
    %v2801 = vpack.c.b16 %v2257, %v2253
    %v2802 = vpack.c.b16 %v2258, %v2254
    %v2803 = vpack.c.b16 %v2263, %v2259
    %v2804 = vpack.c.b16 %v2264, %v2260
    %v2805 = vpack.c.b16 %v2265, %v2261
    %v2806 = vpack.c.b16 %v2266, %v2262
    %v2807 = vpack.c.b16 %v2271, %v2267
    %v2808 = vpack.c.b16 %v2272, %v2268
    %v2809 = vpack.c.b16 %v2273, %v2269
    %v2810 = vpack.c.b16 %v2274, %v2270
    %v2811 = vpack.c.b16 %v2279, %v2275
    %v2812 = vpack.c.b16 %v2280, %v2276
    %v2813 = vpack.c.b16 %v2281, %v2277
    %v2814 = vpack.c.b16 %v2282, %v2278
    %v2815 = vpack.c.b16 %v2287, %v2283
    %v2816 = vpack.c.b16 %v2288, %v2284
    %v2817 = vpack.c.b16 %v2289, %v2285
    %v2818 = vpack.c.b16 %v2290, %v2286
    %v2819 = vpack.c.b16 %v2295, %v2291
    %v2820 = vpack.c.b16 %v2296, %v2292
    %v2821 = vpack.c.b16 %v2297, %v2293
    %v2822 = vpack.c.b16 %v2298, %v2294
    %v2823 = vpack.c.b16 %v2303, %v2299
    %v2824 = vpack.c.b16 %v2304, %v2300
    %v2825 = vpack.c.b16 %v2305, %v2301
    %v2826 = vpack.c.b16 %v2306, %v2302
    %v2827 = vpack.c.b16 %v2311, %v2307
    %v2828 = vpack.c.b16 %v2312, %v2308
    %v2829 = vpack.c.b16 %v2313, %v2309
    %v2830 = vpack.c.b16 %v2314, %v2310
    %v2831 = vpack.c.b16 %v2319, %v2315
    %v2832 = vpack.c.b16 %v2320, %v2316
    %v2833 = vpack.c.b16 %v2321, %v2317
    %v2834 = vpack.c.b16 %v2322, %v2318
    %3347 = vmatprep.subr.bf16.mxu0 %v2324
    %3348 = vmatpush1.bf16.msra.mxu0 %v2323
    %3349 = vmatprep.subr.bf16.mxu0 %v2328
    %3350 = vmatpush1.bf16.msra.mxu0 %v2327
    %3351 = vmatprep.subr.bf16.mxu0 %v2332
    %3352 = vmatpush1.bf16.msra.mxu0 %v2331
    %3353 = vmatprep.subr.bf16.mxu0 %v2336
    %3354 = vmatpush1.bf16.msra.mxu0 %v2335
    %3355 = vmatprep.subr.bf16.mxu0 %v2340
    %3356 = vmatpush1.bf16.msra.mxu0 %v2339
    %3357 = vmatprep.subr.bf16.mxu0 %v2344
    %3358 = vmatpush1.bf16.msra.mxu0 %v2343
    %3359 = vmatprep.subr.bf16.mxu0 %v2348
    %3360 = vmatpush1.bf16.msra.mxu0 %v2347
    %3361 = vmatprep.subr.bf16.mxu0 %v2352
    %3362 = vmatpush1.bf16.msra.mxu0 %v2351
    %3363 = vmatprep.subr.bf16.mxu0 %v2356
    %3364 = vmatpush1.bf16.msra.mxu0 %v2355
    %3365 = vmatprep.subr.bf16.mxu0 %v2360
    %3366 = vmatpush1.bf16.msra.mxu0 %v2359
    %3367 = vmatprep.subr.bf16.mxu0 %v2364
    %3368 = vmatpush1.bf16.msra.mxu0 %v2363
    %3369 = vmatprep.subr.bf16.mxu0 %v2368
    %3370 = vmatpush1.bf16.msra.mxu0 %v2367
    %3371 = vmatprep.subr.bf16.mxu0 %v2372
    %3372 = vmatpush1.bf16.msra.mxu0 %v2371
    %3373 = vmatprep.subr.bf16.mxu0 %v2376
    %3374 = vmatpush1.bf16.msra.mxu0 %v2375
    %3375 = vmatprep.subr.bf16.mxu0 %v2380
    %3376 = vmatpush1.bf16.msra.mxu0 %v2379
    %3377 = vmatprep.subr.bf16.mxu0 %v2384
    %3378 = vmatpush1.bf16.msra.mxu0 %v2383
    %3379 = vmatprep.mubr.bf16.mxu0 %v238
    %3380 = vmatmul.mubr.bf16.gmra.mrb[0].mxu0 %v237
    %v3381 = vpop.f32.mrb[0].mxu0
    %v3382 = vadd.f32 %v770, %v3381
    %v3383 = vpop.f32.mrb[0].mxu0
    %v3384 = vadd.f32 %v774, %v3383
    %v3385 = vpop.f32.mrb[0].mxu0
    %v3386 = vpop.f32.mrb[0].mxu0
    %3387 = vdwg.mxu0
    %3388 = vmatprep.subr.bf16.mxu0 %v2388
    %3389 = vmatpush1.bf16.msra.mxu0 %v2387
    %3390 = vmatprep.subr.bf16.mxu0 %v2392
    %3391 = vmatpush1.bf16.msra.mxu0 %v2391
    %3392 = vmatprep.subr.bf16.mxu0 %v2396
    %3393 = vmatpush1.bf16.msra.mxu0 %v2395
    %3394 = vmatprep.subr.bf16.mxu0 %v2400
    %3395 = vmatpush1.bf16.msra.mxu0 %v2399
    %3396 = vmatprep.subr.bf16.mxu0 %v2404
    %3397 = vmatpush1.bf16.msra.mxu0 %v2403
    %3398 = vmatprep.subr.bf16.mxu0 %v2408
    %3399 = vmatpush1.bf16.msra.mxu0 %v2407
    %3400 = vmatprep.subr.bf16.mxu0 %v2412
    %3401 = vmatpush1.bf16.msra.mxu0 %v2411
    %3402 = vmatprep.subr.bf16.mxu0 %v2416
    %3403 = vmatpush1.bf16.msra.mxu0 %v2415
    %3404 = vmatprep.subr.bf16.mxu0 %v2420
    %3405 = vmatpush1.bf16.msra.mxu0 %v2419
    %3406 = vmatprep.subr.bf16.mxu0 %v2424
    %3407 = vmatpush1.bf16.msra.mxu0 %v2423
    %3408 = vmatprep.subr.bf16.mxu0 %v2428
    %3409 = vmatpush1.bf16.msra.mxu0 %v2427
    %3410 = vmatprep.subr.bf16.mxu0 %v2432
    %3411 = vmatpush1.bf16.msra.mxu0 %v2431
    %3412 = vmatprep.subr.bf16.mxu0 %v2436
    %3413 = vmatpush1.bf16.msra.mxu0 %v2435
    %3414 = vmatprep.subr.bf16.mxu0 %v2440
    %3415 = vmatpush1.bf16.msra.mxu0 %v2439
    %3416 = vmatprep.subr.bf16.mxu0 %v2444
    %3417 = vmatpush1.bf16.msra.mxu0 %v2443
    %3418 = vmatprep.subr.bf16.mxu0 %v2448
    %3419 = vmatpush1.bf16.msra.mxu0 %v2447
    %3420 = vmatprep.mubr.bf16.mxu0 %v240
    %3421 = vmatmul.mubr.bf16.gmra.mrb[0].mxu0 %v239
    %v3422 = vpop.f32.mrb[0].mxu0
    %v3423 = vadd.f32 %v3382, %v3422
    %v3424 = vpop.f32.mrb[0].mxu0
    %v3425 = vadd.f32 %v3384, %v3424
    %v3426 = vpop.f32.mrb[0].mxu0
    %v3427 = vpop.f32.mrb[0].mxu0
    %3428 = vdwg.mxu0
    %3429 = vmatprep.subr.bf16.mxu0 %v2452
    %3430 = vmatpush1.bf16.msra.mxu0 %v2451
    %3431 = vmatprep.subr.bf16.mxu0 %v2456
    %3432 = vmatpush1.bf16.msra.mxu0 %v2455
    %3433 = vmatprep.subr.bf16.mxu0 %v2460
    %3434 = vmatpush1.bf16.msra.mxu0 %v2459
    %3435 = vmatprep.subr.bf16.mxu0 %v2464
    %3436 = vmatpush1.bf16.msra.mxu0 %v2463
    %3437 = vmatprep.subr.bf16.mxu0 %v2468
    %3438 = vmatpush1.bf16.msra.mxu0 %v2467
    %3439 = vmatprep.subr.bf16.mxu0 %v2472
    %3440 = vmatpush1.bf16.msra.mxu0 %v2471
    %3441 = vmatprep.subr.bf16.mxu0 %v2476
    %3442 = vmatpush1.bf16.msra.mxu0 %v2475
    %3443 = vmatprep.subr.bf16.mxu0 %v2480
    %3444 = vmatpush1.bf16.msra.mxu0 %v2479
    %3445 = vmatprep.subr.bf16.mxu0 %v2484
    %3446 = vmatpush1.bf16.msra.mxu0 %v2483
    %3447 = vmatprep.subr.bf16.mxu0 %v2488
    %3448 = vmatpush1.bf16.msra.mxu0 %v2487
    %3449 = vmatprep.subr.bf16.mxu0 %v2492
    %3450 = vmatpush1.bf16.msra.mxu0 %v2491
    %3451 = vmatprep.subr.bf16.mxu0 %v2496
    %3452 = vmatpush1.bf16.msra.mxu0 %v2495
    %3453 = vmatprep.subr.bf16.mxu0 %v2500
    %3454 = vmatpush1.bf16.msra.mxu0 %v2499
    %3455 = vmatprep.subr.bf16.mxu0 %v2504
    %3456 = vmatpush1.bf16.msra.mxu0 %v2503
    %3457 = vmatprep.subr.bf16.mxu0 %v2508
    %3458 = vmatpush1.bf16.msra.mxu0 %v2507
    %3459 = vmatprep.subr.bf16.mxu0 %v2512
    %3460 = vmatpush1.bf16.msra.mxu0 %v2511
    %3461 = vmatprep.mubr.bf16.mxu0 %v242
    %3462 = vmatmul.mubr.bf16.gmra.mrb[0].mxu0 %v241
    %v3463 = vpop.f32.mrb[0].mxu0
    %v3464 = vadd.f32 %v3423, %v3463
    %v3465 = vpop.f32.mrb[0].mxu0
    %v3466 = vadd.f32 %v3425, %v3465
    %v3467 = vpop.f32.mrb[0].mxu0
    %v3468 = vpop.f32.mrb[0].mxu0
    %3469 = vdwg.mxu0
    %3470 = vmatprep.subr.bf16.mxu0 %v2516
    %3471 = vmatpush1.bf16.msra.mxu0 %v2515
    %3472 = vmatprep.subr.bf16.mxu0 %v2520
    %3473 = vmatpush1.bf16.msra.mxu0 %v2519
    %3474 = vmatprep.subr.bf16.mxu0 %v2524
    %3475 = vmatpush1.bf16.msra.mxu0 %v2523
    %3476 = vmatprep.subr.bf16.mxu0 %v2528
    %3477 = vmatpush1.bf16.msra.mxu0 %v2527
    %3478 = vmatprep.subr.bf16.mxu0 %v2532
    %3479 = vmatpush1.bf16.msra.mxu0 %v2531
    %3480 = vmatprep.subr.bf16.mxu0 %v2536
    %3481 = vmatpush1.bf16.msra.mxu0 %v2535
    %3482 = vmatprep.subr.bf16.mxu0 %v2540
    %3483 = vmatpush1.bf16.msra.mxu0 %v2539
    %3484 = vmatprep.subr.bf16.mxu0 %v2544
    %3485 = vmatpush1.bf16.msra.mxu0 %v2543
    %3486 = vmatprep.subr.bf16.mxu0 %v2548
    %3487 = vmatpush1.bf16.msra.mxu0 %v2547
    %3488 = vmatprep.subr.bf16.mxu0 %v2552
    %3489 = vmatpush1.bf16.msra.mxu0 %v2551
    %3490 = vmatprep.subr.bf16.mxu0 %v2556
    %3491 = vmatpush1.bf16.msra.mxu0 %v2555
    %3492 = vmatprep.subr.bf16.mxu0 %v2560
    %3493 = vmatpush1.bf16.msra.mxu0 %v2559
    %3494 = vmatprep.subr.bf16.mxu0 %v2564
    %3495 = vmatpush1.bf16.msra.mxu0 %v2563
    %3496 = vmatprep.subr.bf16.mxu0 %v2568
    %3497 = vmatpush1.bf16.msra.mxu0 %v2567
    %3498 = vmatprep.subr.bf16.mxu0 %v2572
    %3499 = vmatpush1.bf16.msra.mxu0 %v2571
    %3500 = vmatprep.subr.bf16.mxu0 %v2576
    %3501 = vmatpush1.bf16.msra.mxu0 %v2575
    %3502 = vmatprep.mubr.bf16.mxu0 %v244
    %3503 = vmatmul.mubr.bf16.gmra.mrb[0].mxu0 %v243
    %v3504 = vpop.f32.mrb[0].mxu0
    %v3505 = vadd.f32 %v3464, %v3504
    %v3506 = vpop.f32.mrb[0].mxu0
    %v3507 = vadd.f32 %v3466, %v3506
    %v3508 = vpop.f32.mrb[0].mxu0
    %v3509 = vpop.f32.mrb[0].mxu0
    %3510 = vdwg.mxu0
    %3511 = vmatprep.subr.bf16.mxu0 %v2580
    %3512 = vmatpush1.bf16.msra.mxu0 %v2579
    %3513 = vmatprep.subr.bf16.mxu0 %v2584
    %3514 = vmatpush1.bf16.msra.mxu0 %v2583
    %3515 = vmatprep.subr.bf16.mxu0 %v2588
    %3516 = vmatpush1.bf16.msra.mxu0 %v2587
    %3517 = vmatprep.subr.bf16.mxu0 %v2592
    %3518 = vmatpush1.bf16.msra.mxu0 %v2591
    %3519 = vmatprep.subr.bf16.mxu0 %v2596
    %3520 = vmatpush1.bf16.msra.mxu0 %v2595
    %3521 = vmatprep.subr.bf16.mxu0 %v2600
    %3522 = vmatpush1.bf16.msra.mxu0 %v2599
    %3523 = vmatprep.subr.bf16.mxu0 %v2604
    %3524 = vmatpush1.bf16.msra.mxu0 %v2603
    %3525 = vmatprep.subr.bf16.mxu0 %v2608
    %3526 = vmatpush1.bf16.msra.mxu0 %v2607
    %3527 = vmatprep.subr.bf16.mxu0 %v2612
    %3528 = vmatpush1.bf16.msra.mxu0 %v2611
    %3529 = vmatprep.subr.bf16.mxu0 %v2616
    %3530 = vmatpush1.bf16.msra.mxu0 %v2615
    %3531 = vmatprep.subr.bf16.mxu0 %v2620
    %3532 = vmatpush1.bf16.msra.mxu0 %v2619
    %3533 = vmatprep.subr.bf16.mxu0 %v2624
    %3534 = vmatpush1.bf16.msra.mxu0 %v2623
    %3535 = vmatprep.subr.bf16.mxu0 %v2628
    %3536 = vmatpush1.bf16.msra.mxu0 %v2627
    %3537 = vmatprep.subr.bf16.mxu0 %v2632
    %3538 = vmatpush1.bf16.msra.mxu0 %v2631
    %3539 = vmatprep.subr.bf16.mxu0 %v2636
    %3540 = vmatpush1.bf16.msra.mxu0 %v2635
    %3541 = vmatprep.subr.bf16.mxu0 %v2640
    %3542 = vmatpush1.bf16.msra.mxu0 %v2639
    %3543 = vmatprep.mubr.bf16.mxu0 %v246
    %3544 = vmatmul.mubr.bf16.gmra.mrb[0].mxu0 %v245
    %v3545 = vpop.f32.mrb[0].mxu0
    %v3546 = vadd.f32 %v3505, %v3545
    %v3547 = vpop.f32.mrb[0].mxu0
    %v3548 = vadd.f32 %v3507, %v3547
    %v3549 = vpop.f32.mrb[0].mxu0
    %v3550 = vpop.f32.mrb[0].mxu0
    %3551 = vdwg.mxu0
    %3552 = vmatprep.subr.bf16.mxu0 %v2644
    %3553 = vmatpush1.bf16.msra.mxu0 %v2643
    %3554 = vmatprep.subr.bf16.mxu0 %v2648
    %3555 = vmatpush1.bf16.msra.mxu0 %v2647
    %3556 = vmatprep.subr.bf16.mxu0 %v2652
    %3557 = vmatpush1.bf16.msra.mxu0 %v2651
    %3558 = vmatprep.subr.bf16.mxu0 %v2656
    %3559 = vmatpush1.bf16.msra.mxu0 %v2655
    %3560 = vmatprep.subr.bf16.mxu0 %v2660
    %3561 = vmatpush1.bf16.msra.mxu0 %v2659
    %3562 = vmatprep.subr.bf16.mxu0 %v2664
    %3563 = vmatpush1.bf16.msra.mxu0 %v2663
    %3564 = vmatprep.subr.bf16.mxu0 %v2668
    %3565 = vmatpush1.bf16.msra.mxu0 %v2667
    %3566 = vmatprep.subr.bf16.mxu0 %v2672
    %3567 = vmatpush1.bf16.msra.mxu0 %v2671
    %3568 = vmatprep.subr.bf16.mxu0 %v2676
    %3569 = vmatpush1.bf16.msra.mxu0 %v2675
    %3570 = vmatprep.subr.bf16.mxu0 %v2680
    %3571 = vmatpush1.bf16.msra.mxu0 %v2679
    %3572 = vmatprep.subr.bf16.mxu0 %v2684
    %3573 = vmatpush1.bf16.msra.mxu0 %v2683
    %3574 = vmatprep.subr.bf16.mxu0 %v2688
    %3575 = vmatpush1.bf16.msra.mxu0 %v2687
    %3576 = vmatprep.subr.bf16.mxu0 %v2692
    %3577 = vmatpush1.bf16.msra.mxu0 %v2691
    %3578 = vmatprep.subr.bf16.mxu0 %v2696
    %3579 = vmatpush1.bf16.msra.mxu0 %v2695
    %3580 = vmatprep.subr.bf16.mxu0 %v2700
    %3581 = vmatpush1.bf16.msra.mxu0 %v2699
    %3582 = vmatprep.subr.bf16.mxu0 %v2704
    %3583 = vmatpush1.bf16.msra.mxu0 %v2703
    %3584 = vmatprep.mubr.bf16.mxu0 %v248
    %3585 = vmatmul.mubr.bf16.gmra.mrb[0].mxu0 %v247
    %v3586 = vpop.f32.mrb[0].mxu0
    %v3587 = vadd.f32 %v3546, %v3586
    %v3588 = vpop.f32.mrb[0].mxu0
    %v3589 = vadd.f32 %v3548, %v3588
    %v3590 = vpop.f32.mrb[0].mxu0
    %v3591 = vpop.f32.mrb[0].mxu0
    %3592 = vdwg.mxu0
    %3593 = vmatprep.subr.bf16.mxu0 %v2708
    %3594 = vmatpush1.bf16.msra.mxu0 %v2707
    %3595 = vmatprep.subr.bf16.mxu0 %v2712
    %3596 = vmatpush1.bf16.msra.mxu0 %v2711
    %3597 = vmatprep.subr.bf16.mxu0 %v2716
    %3598 = vmatpush1.bf16.msra.mxu0 %v2715
    %3599 = vmatprep.subr.bf16.mxu0 %v2720
    %3600 = vmatpush1.bf16.msra.mxu0 %v2719
    %3601 = vmatprep.subr.bf16.mxu0 %v2724
    %3602 = vmatpush1.bf16.msra.mxu0 %v2723
    %3603 = vmatprep.subr.bf16.mxu0 %v2728
    %3604 = vmatpush1.bf16.msra.mxu0 %v2727
    %3605 = vmatprep.subr.bf16.mxu0 %v2732
    %3606 = vmatpush1.bf16.msra.mxu0 %v2731
    %3607 = vmatprep.subr.bf16.mxu0 %v2736
    %3608 = vmatpush1.bf16.msra.mxu0 %v2735
    %3609 = vmatprep.subr.bf16.mxu0 %v2740
    %3610 = vmatpush1.bf16.msra.mxu0 %v2739
    %3611 = vmatprep.subr.bf16.mxu0 %v2744
    %3612 = vmatpush1.bf16.msra.mxu0 %v2743
    %3613 = vmatprep.subr.bf16.mxu0 %v2748
    %3614 = vmatpush1.bf16.msra.mxu0 %v2747
    %3615 = vmatprep.subr.bf16.mxu0 %v2752
    %3616 = vmatpush1.bf16.msra.mxu0 %v2751
    %3617 = vmatprep.subr.bf16.mxu0 %v2756
    %3618 = vmatpush1.bf16.msra.mxu0 %v2755
    %3619 = vmatprep.subr.bf16.mxu0 %v2760
    %3620 = vmatpush1.bf16.msra.mxu0 %v2759
    %3621 = vmatprep.subr.bf16.mxu0 %v2764
    %3622 = vmatpush1.bf16.msra.mxu0 %v2763
    %3623 = vmatprep.subr.bf16.mxu0 %v2768
    %3624 = vmatpush1.bf16.msra.mxu0 %v2767
    %3625 = vmatprep.mubr.bf16.mxu0 %v250
    %3626 = vmatmul.mubr.bf16.gmra.mrb[0].mxu0 %v249
    %v3627 = vpop.f32.mrb[0].mxu0
    %v3628 = vadd.f32 %v3587, %v3627
    %v3629 = vpop.f32.mrb[0].mxu0
    %v3630 = vadd.f32 %v3589, %v3629
    %v3631 = vpop.f32.mrb[0].mxu0
    %v3632 = vpop.f32.mrb[0].mxu0
    %3633 = vdwg.mxu0
    %3634 = vmatprep.subr.bf16.mxu0 %v2772
    %3635 = vmatpush1.bf16.msra.mxu0 %v2771
    %3636 = vmatprep.subr.bf16.mxu0 %v2776
    %3637 = vmatpush1.bf16.msra.mxu0 %v2775
    %3638 = vmatprep.subr.bf16.mxu0 %v2780
    %3639 = vmatpush1.bf16.msra.mxu0 %v2779
    %3640 = vmatprep.subr.bf16.mxu0 %v2784
    %3641 = vmatpush1.bf16.msra.mxu0 %v2783
    %3642 = vmatprep.subr.bf16.mxu0 %v2788
    %3643 = vmatpush1.bf16.msra.mxu0 %v2787
    %3644 = vmatprep.subr.bf16.mxu0 %v2792
    %3645 = vmatpush1.bf16.msra.mxu0 %v2791
    %3646 = vmatprep.subr.bf16.mxu0 %v2796
    %3647 = vmatpush1.bf16.msra.mxu0 %v2795
    %3648 = vmatprep.subr.bf16.mxu0 %v2800
    %3649 = vmatpush1.bf16.msra.mxu0 %v2799
    %3650 = vmatprep.subr.bf16.mxu0 %v2804
    %3651 = vmatpush1.bf16.msra.mxu0 %v2803
    %3652 = vmatprep.subr.bf16.mxu0 %v2808
    %3653 = vmatpush1.bf16.msra.mxu0 %v2807
    %3654 = vmatprep.subr.bf16.mxu0 %v2812
    %3655 = vmatpush1.bf16.msra.mxu0 %v2811
    %3656 = vmatprep.subr.bf16.mxu0 %v2816
    %3657 = vmatpush1.bf16.msra.mxu0 %v2815
    %3658 = vmatprep.subr.bf16.mxu0 %v2820
    %3659 = vmatpush1.bf16.msra.mxu0 %v2819
    %3660 = vmatprep.subr.bf16.mxu0 %v2824
    %3661 = vmatpush1.bf16.msra.mxu0 %v2823
    %3662 = vmatprep.subr.bf16.mxu0 %v2828
    %3663 = vmatpush1.bf16.msra.mxu0 %v2827
    %3664 = vmatprep.subr.bf16.mxu0 %v2832
    %3665 = vmatpush1.bf16.msra.mxu0 %v2831
    %3666 = vmatprep.mubr.bf16.mxu0 %v252
    %3667 = vmatmul.mubr.bf16.gmra.mrb[0].mxu0 %v251
    %v3668 = vpop.f32.mrb[0].mxu0
    %v3669 = vadd.f32 %v3628, %v3668
    %v3670 = vpop.f32.mrb[0].mxu0
    %v3671 = vadd.f32 %v3630, %v3670
    %v3672 = vpop.f32.mrb[0].mxu0
    %v3673 = vpop.f32.mrb[0].mxu0
    %3674 = vdwg.mxu0
    %3675 = vmatprep.subr.bf16.mxu0 %v2326
    %3676 = vmatpush1.bf16.msra.mxu0 %v2325
    %3677 = vmatprep.subr.bf16.mxu0 %v2330
    %3678 = vmatpush1.bf16.msra.mxu0 %v2329
    %3679 = vmatprep.subr.bf16.mxu0 %v2334
    %3680 = vmatpush1.bf16.msra.mxu0 %v2333
    %3681 = vmatprep.subr.bf16.mxu0 %v2338
    %3682 = vmatpush1.bf16.msra.mxu0 %v2337
    %3683 = vmatprep.subr.bf16.mxu0 %v2342
    %3684 = vmatpush1.bf16.msra.mxu0 %v2341
    %3685 = vmatprep.subr.bf16.mxu0 %v2346
    %3686 = vmatpush1.bf16.msra.mxu0 %v2345
    %3687 = vmatprep.subr.bf16.mxu0 %v2350
    %3688 = vmatpush1.bf16.msra.mxu0 %v2349
    %3689 = vmatprep.subr.bf16.mxu0 %v2354
    %3690 = vmatpush1.bf16.msra.mxu0 %v2353
    %3691 = vmatprep.subr.bf16.mxu0 %v2358
    %3692 = vmatpush1.bf16.msra.mxu0 %v2357
    %3693 = vmatprep.subr.bf16.mxu0 %v2362
    %3694 = vmatpush1.bf16.msra.mxu0 %v2361
    %3695 = vmatprep.subr.bf16.mxu0 %v2366
    %3696 = vmatpush1.bf16.msra.mxu0 %v2365
    %3697 = vmatprep.subr.bf16.mxu0 %v2370
    %3698 = vmatpush1.bf16.msra.mxu0 %v2369
    %3699 = vmatprep.subr.bf16.mxu0 %v2374
    %3700 = vmatpush1.bf16.msra.mxu0 %v2373
    %3701 = vmatprep.subr.bf16.mxu0 %v2378
    %3702 = vmatpush1.bf16.msra.mxu0 %v2377
    %3703 = vmatprep.subr.bf16.mxu0 %v2382
    %3704 = vmatpush1.bf16.msra.mxu0 %v2381
    %3705 = vmatprep.subr.bf16.mxu0 %v2386
    %3706 = vmatpush1.bf16.msra.mxu0 %v2385
    %3707 = vmatprep.mubr.bf16.mxu0 %v238
    %3708 = vmatmul.mubr.bf16.gmra.mrb[0].mxu0 %v237
    %v3709 = vpop.f32.mrb[0].mxu0
    %v3710 = vadd.f32 %v778, %v3709
    %v3711 = vpop.f32.mrb[0].mxu0
    %v3712 = vadd.f32 %v782, %v3711
    %v3713 = vpop.f32.mrb[0].mxu0
    %v3714 = vpop.f32.mrb[0].mxu0
    %3715 = vdwg.mxu0
    %3716 = vmatprep.subr.bf16.mxu0 %v2390
    %3717 = vmatpush1.bf16.msra.mxu0 %v2389
    %3718 = vmatprep.subr.bf16.mxu0 %v2394
    %3719 = vmatpush1.bf16.msra.mxu0 %v2393
    %3720 = vmatprep.subr.bf16.mxu0 %v2398
    %3721 = vmatpush1.bf16.msra.mxu0 %v2397
    %3722 = vmatprep.subr.bf16.mxu0 %v2402
    %3723 = vmatpush1.bf16.msra.mxu0 %v2401
    %3724 = vmatprep.subr.bf16.mxu0 %v2406
    %3725 = vmatpush1.bf16.msra.mxu0 %v2405
    %3726 = vmatprep.subr.bf16.mxu0 %v2410
    %3727 = vmatpush1.bf16.msra.mxu0 %v2409
    %3728 = vmatprep.subr.bf16.mxu0 %v2414
    %3729 = vmatpush1.bf16.msra.mxu0 %v2413
    %3730 = vmatprep.subr.bf16.mxu0 %v2418
    %3731 = vmatpush1.bf16.msra.mxu0 %v2417
    %3732 = vmatprep.subr.bf16.mxu0 %v2422
    %3733 = vmatpush1.bf16.msra.mxu0 %v2421
    %3734 = vmatprep.subr.bf16.mxu0 %v2426
    %3735 = vmatpush1.bf16.msra.mxu0 %v2425
    %3736 = vmatprep.subr.bf16.mxu0 %v2430
    %3737 = vmatpush1.bf16.msra.mxu0 %v2429
    %3738 = vmatprep.subr.bf16.mxu0 %v2434
    %3739 = vmatpush1.bf16.msra.mxu0 %v2433
    %3740 = vmatprep.subr.bf16.mxu0 %v2438
    %3741 = vmatpush1.bf16.msra.mxu0 %v2437
    %3742 = vmatprep.subr.bf16.mxu0 %v2442
    %3743 = vmatpush1.bf16.msra.mxu0 %v2441
    %3744 = vmatprep.subr.bf16.mxu0 %v2446
    %3745 = vmatpush1.bf16.msra.mxu0 %v2445
    %3746 = vmatprep.subr.bf16.mxu0 %v2450
    %3747 = vmatpush1.bf16.msra.mxu0 %v2449
    %3748 = vmatprep.mubr.bf16.mxu0 %v240
    %3749 = vmatmul.mubr.bf16.gmra.mrb[0].mxu0 %v239
    %v3750 = vpop.f32.mrb[0].mxu0
    %v3751 = vadd.f32 %v3710, %v3750
    %v3752 = vpop.f32.mrb[0].mxu0
    %v3753 = vadd.f32 %v3712, %v3752
    %v3754 = vpop.f32.mrb[0].mxu0
    %v3755 = vpop.f32.mrb[0].mxu0
    %3756 = vdwg.mxu0
    %3757 = vmatprep.subr.bf16.mxu0 %v2454
    %3758 = vmatpush1.bf16.msra.mxu0 %v2453
    %3759 = vmatprep.subr.bf16.mxu0 %v2458
    %3760 = vmatpush1.bf16.msra.mxu0 %v2457
    %3761 = vmatprep.subr.bf16.mxu0 %v2462
    %3762 = vmatpush1.bf16.msra.mxu0 %v2461
    %3763 = vmatprep.subr.bf16.mxu0 %v2466
    %3764 = vmatpush1.bf16.msra.mxu0 %v2465
    %3765 = vmatprep.subr.bf16.mxu0 %v2470
    %3766 = vmatpush1.bf16.msra.mxu0 %v2469
    %3767 = vmatprep.subr.bf16.mxu0 %v2474
    %3768 = vmatpush1.bf16.msra.mxu0 %v2473
    %3769 = vmatprep.subr.bf16.mxu0 %v2478
    %3770 = vmatpush1.bf16.msra.mxu0 %v2477
    %3771 = vmatprep.subr.bf16.mxu0 %v2482
    %3772 = vmatpush1.bf16.msra.mxu0 %v2481
    %3773 = vmatprep.subr.bf16.mxu0 %v2486
    %3774 = vmatpush1.bf16.msra.mxu0 %v2485
    %3775 = vmatprep.subr.bf16.mxu0 %v2490
    %3776 = vmatpush1.bf16.msra.mxu0 %v2489
    %3777 = vmatprep.subr.bf16.mxu0 %v2494
    %3778 = vmatpush1.bf16.msra.mxu0 %v2493
    %3779 = vmatprep.subr.bf16.mxu0 %v2498
    %3780 = vmatpush1.bf16.msra.mxu0 %v2497
    %3781 = vmatprep.subr.bf16.mxu0 %v2502
    %3782 = vmatpush1.bf16.msra.mxu0 %v2501
    %3783 = vmatprep.subr.bf16.mxu0 %v2506
    %3784 = vmatpush1.bf16.msra.mxu0 %v2505
    %3785 = vmatprep.subr.bf16.mxu0 %v2510
    %3786 = vmatpush1.bf16.msra.mxu0 %v2509
    %3787 = vmatprep.subr.bf16.mxu0 %v2514
    %3788 = vmatpush1.bf16.msra.mxu0 %v2513
    %3789 = vmatprep.mubr.bf16.mxu0 %v242
    %3790 = vmatmul.mubr.bf16.gmra.mrb[0].mxu0 %v241
    %v3791 = vpop.f32.mrb[0].mxu0
    %v3792 = vadd.f32 %v3751, %v3791
    %v3793 = vpop.f32.mrb[0].mxu0
    %v3794 = vadd.f32 %v3753, %v3793
    %v3795 = vpop.f32.mrb[0].mxu0
    %v3796 = vpop.f32.mrb[0].mxu0
    %3797 = vdwg.mxu0
    %3798 = vmatprep.subr.bf16.mxu0 %v2518
    %3799 = vmatpush1.bf16.msra.mxu0 %v2517
    %3800 = vmatprep.subr.bf16.mxu0 %v2522
    %3801 = vmatpush1.bf16.msra.mxu0 %v2521
    %3802 = vmatprep.subr.bf16.mxu0 %v2526
    %3803 = vmatpush1.bf16.msra.mxu0 %v2525
    %3804 = vmatprep.subr.bf16.mxu0 %v2530
    %3805 = vmatpush1.bf16.msra.mxu0 %v2529
    %3806 = vmatprep.subr.bf16.mxu0 %v2534
    %3807 = vmatpush1.bf16.msra.mxu0 %v2533
    %3808 = vmatprep.subr.bf16.mxu0 %v2538
    %3809 = vmatpush1.bf16.msra.mxu0 %v2537
    %3810 = vmatprep.subr.bf16.mxu0 %v2542
    %3811 = vmatpush1.bf16.msra.mxu0 %v2541
    %3812 = vmatprep.subr.bf16.mxu0 %v2546
    %3813 = vmatpush1.bf16.msra.mxu0 %v2545
    %3814 = vmatprep.subr.bf16.mxu0 %v2550
    %3815 = vmatpush1.bf16.msra.mxu0 %v2549
    %3816 = vmatprep.subr.bf16.mxu0 %v2554
    %3817 = vmatpush1.bf16.msra.mxu0 %v2553
    %3818 = vmatprep.subr.bf16.mxu0 %v2558
    %3819 = vmatpush1.bf16.msra.mxu0 %v2557
    %3820 = vmatprep.subr.bf16.mxu0 %v2562
    %3821 = vmatpush1.bf16.msra.mxu0 %v2561
    %3822 = vmatprep.subr.bf16.mxu0 %v2566
    %3823 = vmatpush1.bf16.msra.mxu0 %v2565
    %3824 = vmatprep.subr.bf16.mxu0 %v2570
    %3825 = vmatpush1.bf16.msra.mxu0 %v2569
    %3826 = vmatprep.subr.bf16.mxu0 %v2574
    %3827 = vmatpush1.bf16.msra.mxu0 %v2573
    %3828 = vmatprep.subr.bf16.mxu0 %v2578
    %3829 = vmatpush1.bf16.msra.mxu0 %v2577
    %3830 = vmatprep.mubr.bf16.mxu0 %v244
    %3831 = vmatmul.mubr.bf16.gmra.mrb[0].mxu0 %v243
    %v3832 = vpop.f32.mrb[0].mxu0
    %v3833 = vadd.f32 %v3792, %v3832
    %v3834 = vpop.f32.mrb[0].mxu0
    %v3835 = vadd.f32 %v3794, %v3834
    %v3836 = vpop.f32.mrb[0].mxu0
    %v3837 = vpop.f32.mrb[0].mxu0
    %3838 = vdwg.mxu0
    %3839 = vmatprep.subr.bf16.mxu0 %v2582
    %3840 = vmatpush1.bf16.msra.mxu0 %v2581
    %3841 = vmatprep.subr.bf16.mxu0 %v2586
    %3842 = vmatpush1.bf16.msra.mxu0 %v2585
    %3843 = vmatprep.subr.bf16.mxu0 %v2590
    %3844 = vmatpush1.bf16.msra.mxu0 %v2589
    %3845 = vmatprep.subr.bf16.mxu0 %v2594
    %3846 = vmatpush1.bf16.msra.mxu0 %v2593
    %3847 = vmatprep.subr.bf16.mxu0 %v2598
    %3848 = vmatpush1.bf16.msra.mxu0 %v2597
    %3849 = vmatprep.subr.bf16.mxu0 %v2602
    %3850 = vmatpush1.bf16.msra.mxu0 %v2601
    %3851 = vmatprep.subr.bf16.mxu0 %v2606
    %3852 = vmatpush1.bf16.msra.mxu0 %v2605
    %3853 = vmatprep.subr.bf16.mxu0 %v2610
    %3854 = vmatpush1.bf16.msra.mxu0 %v2609
    %3855 = vmatprep.subr.bf16.mxu0 %v2614
    %3856 = vmatpush1.bf16.msra.mxu0 %v2613
    %3857 = vmatprep.subr.bf16.mxu0 %v2618
    %3858 = vmatpush1.bf16.msra.mxu0 %v2617
    %3859 = vmatprep.subr.bf16.mxu0 %v2622
    %3860 = vmatpush1.bf16.msra.mxu0 %v2621
    %3861 = vmatprep.subr.bf16.mxu0 %v2626
    %3862 = vmatpush1.bf16.msra.mxu0 %v2625
    %3863 = vmatprep.subr.bf16.mxu0 %v2630
    %3864 = vmatpush1.bf16.msra.mxu0 %v2629
    %3865 = vmatprep.subr.bf16.mxu0 %v2634
    %3866 = vmatpush1.bf16.msra.mxu0 %v2633
    %3867 = vmatprep.subr.bf16.mxu0 %v2638
    %3868 = vmatpush1.bf16.msra.mxu0 %v2637
    %3869 = vmatprep.subr.bf16.mxu0 %v2642
    %3870 = vmatpush1.bf16.msra.mxu0 %v2641
    %3871 = vmatprep.mubr.bf16.mxu0 %v246
    %3872 = vmatmul.mubr.bf16.gmra.mrb[0].mxu0 %v245
    %v3873 = vpop.f32.mrb[0].mxu0
    %v3874 = vadd.f32 %v3833, %v3873
    %v3875 = vpop.f32.mrb[0].mxu0
    %v3876 = vadd.f32 %v3835, %v3875
    %v3877 = vpop.f32.mrb[0].mxu0
    %v3878 = vpop.f32.mrb[0].mxu0
    %3879 = vdwg.mxu0
    %3880 = vmatprep.subr.bf16.mxu0 %v2646
    %3881 = vmatpush1.bf16.msra.mxu0 %v2645
    %3882 = vmatprep.subr.bf16.mxu0 %v2650
    %3883 = vmatpush1.bf16.msra.mxu0 %v2649
    %3884 = vmatprep.subr.bf16.mxu0 %v2654
    %3885 = vmatpush1.bf16.msra.mxu0 %v2653
    %3886 = vmatprep.subr.bf16.mxu0 %v2658
    %3887 = vmatpush1.bf16.msra.mxu0 %v2657
    %3888 = vmatprep.subr.bf16.mxu0 %v2662
    %3889 = vmatpush1.bf16.msra.mxu0 %v2661
    %3890 = vmatprep.subr.bf16.mxu0 %v2666
    %3891 = vmatpush1.bf16.msra.mxu0 %v2665
    %3892 = vmatprep.subr.bf16.mxu0 %v2670
    %3893 = vmatpush1.bf16.msra.mxu0 %v2669
    %3894 = vmatprep.subr.bf16.mxu0 %v2674
    %3895 = vmatpush1.bf16.msra.mxu0 %v2673
    %3896 = vmatprep.subr.bf16.mxu0 %v2678
    %3897 = vmatpush1.bf16.msra.mxu0 %v2677
    %3898 = vmatprep.subr.bf16.mxu0 %v2682
    %3899 = vmatpush1.bf16.msra.mxu0 %v2681
    %3900 = vmatprep.subr.bf16.mxu0 %v2686
    %3901 = vmatpush1.bf16.msra.mxu0 %v2685
    %3902 = vmatprep.subr.bf16.mxu0 %v2690
    %3903 = vmatpush1.bf16.msra.mxu0 %v2689
    %3904 = vmatprep.subr.bf16.mxu0 %v2694
    %3905 = vmatpush1.bf16.msra.mxu0 %v2693
    %3906 = vmatprep.subr.bf16.mxu0 %v2698
    %3907 = vmatpush1.bf16.msra.mxu0 %v2697
    %3908 = vmatprep.subr.bf16.mxu0 %v2702
    %3909 = vmatpush1.bf16.msra.mxu0 %v2701
    %3910 = vmatprep.subr.bf16.mxu0 %v2706
    %3911 = vmatpush1.bf16.msra.mxu0 %v2705
    %3912 = vmatprep.mubr.bf16.mxu0 %v248
    %3913 = vmatmul.mubr.bf16.gmra.mrb[0].mxu0 %v247
    %v3914 = vpop.f32.mrb[0].mxu0
    %v3915 = vadd.f32 %v3874, %v3914
    %v3916 = vpop.f32.mrb[0].mxu0
    %v3917 = vadd.f32 %v3876, %v3916
    %v3918 = vpop.f32.mrb[0].mxu0
    %v3919 = vpop.f32.mrb[0].mxu0
    %3920 = vdwg.mxu0
    %3921 = vmatprep.subr.bf16.mxu0 %v2710
    %3922 = vmatpush1.bf16.msra.mxu0 %v2709
    %3923 = vmatprep.subr.bf16.mxu0 %v2714
    %3924 = vmatpush1.bf16.msra.mxu0 %v2713
    %3925 = vmatprep.subr.bf16.mxu0 %v2718
    %3926 = vmatpush1.bf16.msra.mxu0 %v2717
    %3927 = vmatprep.subr.bf16.mxu0 %v2722
    %3928 = vmatpush1.bf16.msra.mxu0 %v2721
    %3929 = vmatprep.subr.bf16.mxu0 %v2726
    %3930 = vmatpush1.bf16.msra.mxu0 %v2725
    %3931 = vmatprep.subr.bf16.mxu0 %v2730
    %3932 = vmatpush1.bf16.msra.mxu0 %v2729
    %3933 = vmatprep.subr.bf16.mxu0 %v2734
    %3934 = vmatpush1.bf16.msra.mxu0 %v2733
    %3935 = vmatprep.subr.bf16.mxu0 %v2738
    %3936 = vmatpush1.bf16.msra.mxu0 %v2737
    %3937 = vmatprep.subr.bf16.mxu0 %v2742
    %3938 = vmatpush1.bf16.msra.mxu0 %v2741
    %3939 = vmatprep.subr.bf16.mxu0 %v2746
    %3940 = vmatpush1.bf16.msra.mxu0 %v2745
    %3941 = vmatprep.subr.bf16.mxu0 %v2750
    %3942 = vmatpush1.bf16.msra.mxu0 %v2749
    %3943 = vmatprep.subr.bf16.mxu0 %v2754
    %3944 = vmatpush1.bf16.msra.mxu0 %v2753
    %3945 = vmatprep.subr.bf16.mxu0 %v2758
    %3946 = vmatpush1.bf16.msra.mxu0 %v2757
    %3947 = vmatprep.subr.bf16.mxu0 %v2762
    %3948 = vmatpush1.bf16.msra.mxu0 %v2761
    %3949 = vmatprep.subr.bf16.mxu0 %v2766
    %3950 = vmatpush1.bf16.msra.mxu0 %v2765
    %3951 = vmatprep.subr.bf16.mxu0 %v2770
    %3952 = vmatpush1.bf16.msra.mxu0 %v2769
    %3953 = vmatprep.mubr.bf16.mxu0 %v250
    %3954 = vmatmul.mubr.bf16.gmra.mrb[0].mxu0 %v249
    %v3955 = vpop.f32.mrb[0].mxu0
    %v3956 = vadd.f32 %v3915, %v3955
    %v3957 = vpop.f32.mrb[0].mxu0
    %v3958 = vadd.f32 %v3917, %v3957
    %v3959 = vpop.f32.mrb[0].mxu0
    %v3960 = vpop.f32.mrb[0].mxu0
    %3961 = vdwg.mxu0
    %3962 = vmatprep.subr.bf16.mxu0 %v2774
    %3963 = vmatpush1.bf16.msra.mxu0 %v2773
    %3964 = vmatprep.subr.bf16.mxu0 %v2778
    %3965 = vmatpush1.bf16.msra.mxu0 %v2777
    %3966 = vmatprep.subr.bf16.mxu0 %v2782
    %3967 = vmatpush1.bf16.msra.mxu0 %v2781
    %3968 = vmatprep.subr.bf16.mxu0 %v2786
    %3969 = vmatpush1.bf16.msra.mxu0 %v2785
    %3970 = vmatprep.subr.bf16.mxu0 %v2790
    %3971 = vmatpush1.bf16.msra.mxu0 %v2789
    %3972 = vmatprep.subr.bf16.mxu0 %v2794
    %3973 = vmatpush1.bf16.msra.mxu0 %v2793
    %3974 = vmatprep.subr.bf16.mxu0 %v2798
    %3975 = vmatpush1.bf16.msra.mxu0 %v2797
    %3976 = vmatprep.subr.bf16.mxu0 %v2802
    %3977 = vmatpush1.bf16.msra.mxu0 %v2801
    %3978 = vmatprep.subr.bf16.mxu0 %v2806
    %3979 = vmatpush1.bf16.msra.mxu0 %v2805
    %3980 = vmatprep.subr.bf16.mxu0 %v2810
    %3981 = vmatpush1.bf16.msra.mxu0 %v2809
    %3982 = vmatprep.subr.bf16.mxu0 %v2814
    %3983 = vmatpush1.bf16.msra.mxu0 %v2813
    %3984 = vmatprep.subr.bf16.mxu0 %v2818
    %3985 = vmatpush1.bf16.msra.mxu0 %v2817
    %3986 = vmatprep.subr.bf16.mxu0 %v2822
    %3987 = vmatpush1.bf16.msra.mxu0 %v2821
    %3988 = vmatprep.subr.bf16.mxu0 %v2826
    %3989 = vmatpush1.bf16.msra.mxu0 %v2825
    %3990 = vmatprep.subr.bf16.mxu0 %v2830
    %3991 = vmatpush1.bf16.msra.mxu0 %v2829
    %3992 = vmatprep.subr.bf16.mxu0 %v2834
    %3993 = vmatpush1.bf16.msra.mxu0 %v2833
    %3994 = vmatprep.mubr.bf16.mxu0 %v252
    %3995 = vmatmul.mubr.bf16.gmra.mrb[0].mxu0 %v251
    %v3996 = vpop.f32.mrb[0].mxu0
    %v3997 = vadd.f32 %v3956, %v3996
    %v3998 = vpop.f32.mrb[0].mxu0
    %v3999 = vadd.f32 %v3958, %v3998
    %v4000 = vpop.f32.mrb[0].mxu0
    %v4001 = vpop.f32.mrb[0].mxu0
    %4002 = vdwg.mxu0
    %v4003 = vmax.f32 %v3669, 0.0
    %v4004 = vmax.f32 %v3671, 0.0
    %v4005 = vmax.f32 %v3997, 0.0
    %v4006 = vmax.f32 %v3999, 0.0
    %v4007 = vpack.c.bf16 %v4003, %v4003
    %v4008 = vpack.c.bf16 %v4004, %v4004
    %v4009 = vpack.c.bf16 %v4005, %v4005
    %v4010 = vpack.c.bf16 %v4006, %v4006
    %v4011 = vld [vmem:[#allocation7] sm:$0xff]
    %v4012 = vld [vmem:[#allocation7 + $0x8] sm:$0xff]
    %v4013 = vld [vmem:[#allocation7 + $0x10] sm:$0xff]
    %v4014 = vld [vmem:[#allocation7 + $0x18] sm:$0xff]
    %v4015 = vld [vmem:[#allocation7 + $0x20] sm:$0xff]
    %v4016 = vld [vmem:[#allocation7 + $0x28] sm:$0xff]
    %v4017 = vld [vmem:[#allocation7 + $0x30] sm:$0xff]
    %v4018 = vld [vmem:[#allocation7 + $0x38] sm:$0xff]
    %v4019 = vld [vmem:[#allocation7 + $0x40] sm:$0xff]
    %v4020 = vld [vmem:[#allocation7 + $0x48] sm:$0xff]
    %v4021 = vld [vmem:[#allocation7 + $0x50] sm:$0xff]
    %v4022 = vld [vmem:[#allocation7 + $0x58] sm:$0xff]
    %v4023 = vld [vmem:[#allocation7 + $0x60] sm:$0xff]
    %v4024 = vld [vmem:[#allocation7 + $0x68] sm:$0xff]
    %v4025 = vld [vmem:[#allocation7 + $0x70] sm:$0xff]
    %v4026 = vld [vmem:[#allocation7 + $0x78] sm:$0xff]
    %v4027 = vld [vmem:[#allocation7 + $0x80] sm:$0xff]
    %v4028 = vld [vmem:[#allocation7 + $0x88] sm:$0xff]
    %v4029 = vld [vmem:[#allocation7 + $0x90] sm:$0xff]
    %v4030 = vld [vmem:[#allocation7 + $0x98] sm:$0xff]
    %v4031 = vld [vmem:[#allocation7 + $0xa0] sm:$0xff]
    %v4032 = vld [vmem:[#allocation7 + $0xa8] sm:$0xff]
    %v4033 = vld [vmem:[#allocation7 + $0xb0] sm:$0xff]
    %v4034 = vld [vmem:[#allocation7 + $0xb8] sm:$0xff]
    %v4035 = vld [vmem:[#allocation7 + $0xc0] sm:$0xff]
    %v4036 = vld [vmem:[#allocation7 + $0xc8] sm:$0xff]
    %v4037 = vld [vmem:[#allocation7 + $0xd0] sm:$0xff]
    %v4038 = vld [vmem:[#allocation7 + $0xd8] sm:$0xff]
    %v4039 = vld [vmem:[#allocation7 + $0xe0] sm:$0xff]
    %v4040 = vld [vmem:[#allocation7 + $0xe8] sm:$0xff]
    %v4041 = vld [vmem:[#allocation7 + $0xf0] sm:$0xff]
    %v4042 = vld [vmem:[#allocation7 + $0xf8] sm:$0xff]
    %v4043 = vld [vmem:[#allocation7 + $0x100] sm:$0xff]
    %v4044 = vld [vmem:[#allocation7 + $0x108] sm:$0xff]
    %v4045 = vld [vmem:[#allocation7 + $0x110] sm:$0xff]
    %v4046 = vld [vmem:[#allocation7 + $0x118] sm:$0xff]
    %v4047 = vld [vmem:[#allocation7 + $0x120] sm:$0xff]
    %v4048 = vld [vmem:[#allocation7 + $0x128] sm:$0xff]
    %v4049 = vld [vmem:[#allocation7 + $0x130] sm:$0xff]
    %v4050 = vld [vmem:[#allocation7 + $0x138] sm:$0xff]
    %v4051 = vld [vmem:[#allocation7 + $0x140] sm:$0xff]
    %v4052 = vld [vmem:[#allocation7 + $0x148] sm:$0xff]
    %v4053 = vld [vmem:[#allocation7 + $0x150] sm:$0xff]
    %v4054 = vld [vmem:[#allocation7 + $0x158] sm:$0xff]
    %v4055 = vld [vmem:[#allocation7 + $0x160] sm:$0xff]
    %v4056 = vld [vmem:[#allocation7 + $0x168] sm:$0xff]
    %v4057 = vld [vmem:[#allocation7 + $0x170] sm:$0xff]
    %v4058 = vld [vmem:[#allocation7 + $0x178] sm:$0xff]
    %v4059 = vld [vmem:[#allocation7 + $0x180] sm:$0xff]
    %v4060 = vld [vmem:[#allocation7 + $0x188] sm:$0xff]
    %v4061 = vld [vmem:[#allocation7 + $0x190] sm:$0xff]
    %v4062 = vld [vmem:[#allocation7 + $0x198] sm:$0xff]
    %v4063 = vld [vmem:[#allocation7 + $0x1a0] sm:$0xff]
    %v4064 = vld [vmem:[#allocation7 + $0x1a8] sm:$0xff]
    %v4065 = vld [vmem:[#allocation7 + $0x1b0] sm:$0xff]
    %v4066 = vld [vmem:[#allocation7 + $0x1b8] sm:$0xff]
    %v4067 = vld [vmem:[#allocation7 + $0x1c0] sm:$0xff]
    %v4068 = vld [vmem:[#allocation7 + $0x1c8] sm:$0xff]
    %v4069 = vld [vmem:[#allocation7 + $0x1d0] sm:$0xff]
    %v4070 = vld [vmem:[#allocation7 + $0x1d8] sm:$0xff]
    %v4071 = vld [vmem:[#allocation7 + $0x1e0] sm:$0xff]
    %v4072 = vld [vmem:[#allocation7 + $0x1e8] sm:$0xff]
    %v4073 = vld [vmem:[#allocation7 + $0x1f0] sm:$0xff]
    %v4074 = vld [vmem:[#allocation7 + $0x1f8] sm:$0xff]
    %v4075 = vld [vmem:[#allocation9] sm:$0x3]
    %v4077 = vlaneseq
    %v4078 = vshrl.u32 %v4077, 7
    %v4079 = vsub.s32 0, %v4078
    %v4080 = vrot.slane %v4075, %v4079
    %v4081 = vlaneseq
    %v4082 = vshrl.u32 %v4081, 7
    %v4083 = vsub.s32 1, %v4082
    %v4084 = vrot.slane %v4075, %v4083
    %v4151 = vunpack.c.l.b16 %v4011
    %v4152 = vunpack.c.h.b16 %v4011
    %v4153 = vunpack.c.l.b16 %v4012
    %v4154 = vunpack.c.h.b16 %v4012
    %v4155 = vunpack.c.l.b16 %v4013
    %v4156 = vunpack.c.h.b16 %v4013
    %v4157 = vunpack.c.l.b16 %v4014
    %v4158 = vunpack.c.h.b16 %v4014
    %v4159 = vunpack.c.l.b16 %v4015
    %v4160 = vunpack.c.h.b16 %v4015
    %v4161 = vunpack.c.l.b16 %v4016
    %v4162 = vunpack.c.h.b16 %v4016
    %v4163 = vunpack.c.l.b16 %v4017
    %v4164 = vunpack.c.h.b16 %v4017
    %v4165 = vunpack.c.l.b16 %v4018
    %v4166 = vunpack.c.h.b16 %v4018
    %v4167 = vunpack.c.l.b16 %v4019
    %v4168 = vunpack.c.h.b16 %v4019
    %v4169 = vunpack.c.l.b16 %v4020
    %v4170 = vunpack.c.h.b16 %v4020
    %v4171 = vunpack.c.l.b16 %v4021
    %v4172 = vunpack.c.h.b16 %v4021
    %v4173 = vunpack.c.l.b16 %v4022
    %v4174 = vunpack.c.h.b16 %v4022
    %v4175 = vunpack.c.l.b16 %v4023
    %v4176 = vunpack.c.h.b16 %v4023
    %v4177 = vunpack.c.l.b16 %v4024
    %v4178 = vunpack.c.h.b16 %v4024
    %v4179 = vunpack.c.l.b16 %v4025
    %v4180 = vunpack.c.h.b16 %v4025
    %v4181 = vunpack.c.l.b16 %v4026
    %v4182 = vunpack.c.h.b16 %v4026
    %v4183 = vunpack.c.l.b16 %v4027
    %v4184 = vunpack.c.h.b16 %v4027
    %v4185 = vunpack.c.l.b16 %v4028
    %v4186 = vunpack.c.h.b16 %v4028
    %v4187 = vunpack.c.l.b16 %v4029
    %v4188 = vunpack.c.h.b16 %v4029
    %v4189 = vunpack.c.l.b16 %v4030
    %v4190 = vunpack.c.h.b16 %v4030
    %v4191 = vunpack.c.l.b16 %v4031
    %v4192 = vunpack.c.h.b16 %v4031
    %v4193 = vunpack.c.l.b16 %v4032
    %v4194 = vunpack.c.h.b16 %v4032
    %v4195 = vunpack.c.l.b16 %v4033
    %v4196 = vunpack.c.h.b16 %v4033
    %v4197 = vunpack.c.l.b16 %v4034
    %v4198 = vunpack.c.h.b16 %v4034
    %v4199 = vunpack.c.l.b16 %v4035
    %v4200 = vunpack.c.h.b16 %v4035
    %v4201 = vunpack.c.l.b16 %v4036
    %v4202 = vunpack.c.h.b16 %v4036
    %v4203 = vunpack.c.l.b16 %v4037
    %v4204 = vunpack.c.h.b16 %v4037
    %v4205 = vunpack.c.l.b16 %v4038
    %v4206 = vunpack.c.h.b16 %v4038
    %v4207 = vunpack.c.l.b16 %v4039
    %v4208 = vunpack.c.h.b16 %v4039
    %v4209 = vunpack.c.l.b16 %v4040
    %v4210 = vunpack.c.h.b16 %v4040
    %v4211 = vunpack.c.l.b16 %v4041
    %v4212 = vunpack.c.h.b16 %v4041
    %v4213 = vunpack.c.l.b16 %v4042
    %v4214 = vunpack.c.h.b16 %v4042
    %v4215 = vunpack.c.l.b16 %v4043
    %v4216 = vunpack.c.h.b16 %v4043
    %v4217 = vunpack.c.l.b16 %v4044
    %v4218 = vunpack.c.h.b16 %v4044
    %v4219 = vunpack.c.l.b16 %v4045
    %v4220 = vunpack.c.h.b16 %v4045
    %v4221 = vunpack.c.l.b16 %v4046
    %v4222 = vunpack.c.h.b16 %v4046
    %v4223 = vunpack.c.l.b16 %v4047
    %v4224 = vunpack.c.h.b16 %v4047
    %v4225 = vunpack.c.l.b16 %v4048
    %v4226 = vunpack.c.h.b16 %v4048
    %v4227 = vunpack.c.l.b16 %v4049
    %v4228 = vunpack.c.h.b16 %v4049
    %v4229 = vunpack.c.l.b16 %v4050
    %v4230 = vunpack.c.h.b16 %v4050
    %v4231 = vunpack.c.l.b16 %v4051
    %v4232 = vunpack.c.h.b16 %v4051
    %v4233 = vunpack.c.l.b16 %v4052
    %v4234 = vunpack.c.h.b16 %v4052
    %v4235 = vunpack.c.l.b16 %v4053
    %v4236 = vunpack.c.h.b16 %v4053
    %v4237 = vunpack.c.l.b16 %v4054
    %v4238 = vunpack.c.h.b16 %v4054
    %v4239 = vunpack.c.l.b16 %v4055
    %v4240 = vunpack.c.h.b16 %v4055
    %v4241 = vunpack.c.l.b16 %v4056
    %v4242 = vunpack.c.h.b16 %v4056
    %v4243 = vunpack.c.l.b16 %v4057
    %v4244 = vunpack.c.h.b16 %v4057
    %v4245 = vunpack.c.l.b16 %v4058
    %v4246 = vunpack.c.h.b16 %v4058
    %v4247 = vunpack.c.l.b16 %v4059
    %v4248 = vunpack.c.h.b16 %v4059
    %v4249 = vunpack.c.l.b16 %v4060
    %v4250 = vunpack.c.h.b16 %v4060
    %v4251 = vunpack.c.l.b16 %v4061
    %v4252 = vunpack.c.h.b16 %v4061
    %v4253 = vunpack.c.l.b16 %v4062
    %v4254 = vunpack.c.h.b16 %v4062
    %v4255 = vunpack.c.l.b16 %v4063
    %v4256 = vunpack.c.h.b16 %v4063
    %v4257 = vunpack.c.l.b16 %v4064
    %v4258 = vunpack.c.h.b16 %v4064
    %v4259 = vunpack.c.l.b16 %v4065
    %v4260 = vunpack.c.h.b16 %v4065
    %v4261 = vunpack.c.l.b16 %v4066
    %v4262 = vunpack.c.h.b16 %v4066
    %v4263 = vunpack.c.l.b16 %v4067
    %v4264 = vunpack.c.h.b16 %v4067
    %v4265 = vunpack.c.l.b16 %v4068
    %v4266 = vunpack.c.h.b16 %v4068
    %v4267 = vunpack.c.l.b16 %v4069
    %v4268 = vunpack.c.h.b16 %v4069
    %v4269 = vunpack.c.l.b16 %v4070
    %v4270 = vunpack.c.h.b16 %v4070
    %v4271 = vunpack.c.l.b16 %v4071
    %v4272 = vunpack.c.h.b16 %v4071
    %v4273 = vunpack.c.l.b16 %v4072
    %v4274 = vunpack.c.h.b16 %v4072
    %v4275 = vunpack.c.l.b16 %v4073
    %v4276 = vunpack.c.h.b16 %v4073
    %v4277 = vunpack.c.l.b16 %v4074
    %v4278 = vunpack.c.h.b16 %v4074
    %v4279 = vpack.c.b16 %v4153, %v4151
    %v4280 = vpack.c.b16 %v4154, %v4152
    %v4281 = vpack.c.b16 %v4157, %v4155
    %v4282 = vpack.c.b16 %v4158, %v4156
    %v4283 = vpack.c.b16 %v4161, %v4159
    %v4284 = vpack.c.b16 %v4162, %v4160
    %v4285 = vpack.c.b16 %v4165, %v4163
    %v4286 = vpack.c.b16 %v4166, %v4164
    %v4287 = vpack.c.b16 %v4169, %v4167
    %v4288 = vpack.c.b16 %v4170, %v4168
    %v4289 = vpack.c.b16 %v4173, %v4171
    %v4290 = vpack.c.b16 %v4174, %v4172
    %v4291 = vpack.c.b16 %v4177, %v4175
    %v4292 = vpack.c.b16 %v4178, %v4176
    %v4293 = vpack.c.b16 %v4181, %v4179
    %v4294 = vpack.c.b16 %v4182, %v4180
    %v4295 = vpack.c.b16 %v4185, %v4183
    %v4296 = vpack.c.b16 %v4186, %v4184
    %v4297 = vpack.c.b16 %v4189, %v4187
    %v4298 = vpack.c.b16 %v4190, %v4188
    %v4299 = vpack.c.b16 %v4193, %v4191
    %v4300 = vpack.c.b16 %v4194, %v4192
    %v4301 = vpack.c.b16 %v4197, %v4195
    %v4302 = vpack.c.b16 %v4198, %v4196
    %v4303 = vpack.c.b16 %v4201, %v4199
    %v4304 = vpack.c.b16 %v4202, %v4200
    %v4305 = vpack.c.b16 %v4205, %v4203
    %v4306 = vpack.c.b16 %v4206, %v4204
    %v4307 = vpack.c.b16 %v4209, %v4207
    %v4308 = vpack.c.b16 %v4210, %v4208
    %v4309 = vpack.c.b16 %v4213, %v4211
    %v4310 = vpack.c.b16 %v4214, %v4212
    %v4311 = vpack.c.b16 %v4217, %v4215
    %v4312 = vpack.c.b16 %v4218, %v4216
    %v4313 = vpack.c.b16 %v4221, %v4219
    %v4314 = vpack.c.b16 %v4222, %v4220
    %v4315 = vpack.c.b16 %v4225, %v4223
    %v4316 = vpack.c.b16 %v4226, %v4224
    %v4317 = vpack.c.b16 %v4229, %v4227
    %v4318 = vpack.c.b16 %v4230, %v4228
    %v4319 = vpack.c.b16 %v4233, %v4231
    %v4320 = vpack.c.b16 %v4234, %v4232
    %v4321 = vpack.c.b16 %v4237, %v4235
    %v4322 = vpack.c.b16 %v4238, %v4236
    %v4323 = vpack.c.b16 %v4241, %v4239
    %v4324 = vpack.c.b16 %v4242, %v4240
    %v4325 = vpack.c.b16 %v4245, %v4243
    %v4326 = vpack.c.b16 %v4246, %v4244
    %v4327 = vpack.c.b16 %v4249, %v4247
    %v4328 = vpack.c.b16 %v4250, %v4248
    %v4329 = vpack.c.b16 %v4253, %v4251
    %v4330 = vpack.c.b16 %v4254, %v4252
    %v4331 = vpack.c.b16 %v4257, %v4255
    %v4332 = vpack.c.b16 %v4258, %v4256
    %v4333 = vpack.c.b16 %v4261, %v4259
    %v4334 = vpack.c.b16 %v4262, %v4260
    %v4335 = vpack.c.b16 %v4265, %v4263
    %v4336 = vpack.c.b16 %v4266, %v4264
    %v4337 = vpack.c.b16 %v4269, %v4267
    %v4338 = vpack.c.b16 %v4270, %v4268
    %v4339 = vpack.c.b16 %v4273, %v4271
    %v4340 = vpack.c.b16 %v4274, %v4272
    %v4341 = vpack.c.b16 %v4277, %v4275
    %v4342 = vpack.c.b16 %v4278, %v4276
    %4407 = vmatprep.subr.bf16.mxu0 %v4280
    %4408 = vmatpush1.bf16.msra.mxu0 %v4279
    %4409 = vmatprep.subr.bf16.mxu0 %v4282
    %4410 = vmatpush1.bf16.msra.mxu0 %v4281
    %4411 = vmatprep.subr.bf16.mxu0 %v4284
    %4412 = vmatpush1.bf16.msra.mxu0 %v4283
    %4413 = vmatprep.subr.bf16.mxu0 %v4286
    %4414 = vmatpush1.bf16.msra.mxu0 %v4285
    %4415 = vmatprep.subr.bf16.mxu0 %v4288
    %4416 = vmatpush1.bf16.msra.mxu0 %v4287
    %4417 = vmatprep.subr.bf16.mxu0 %v4290
    %4418 = vmatpush1.bf16.msra.mxu0 %v4289
    %4419 = vmatprep.subr.bf16.mxu0 %v4292
    %4420 = vmatpush1.bf16.msra.mxu0 %v4291
    %4421 = vmatprep.subr.bf16.mxu0 %v4294
    %4422 = vmatpush1.bf16.msra.mxu0 %v4293
    %4423 = vmatprep.subr.bf16.mxu0 %v4296
    %4424 = vmatpush1.bf16.msra.mxu0 %v4295
    %4425 = vmatprep.subr.bf16.mxu0 %v4298
    %4426 = vmatpush1.bf16.msra.mxu0 %v4297
    %4427 = vmatprep.subr.bf16.mxu0 %v4300
    %4428 = vmatpush1.bf16.msra.mxu0 %v4299
    %4429 = vmatprep.subr.bf16.mxu0 %v4302
    %4430 = vmatpush1.bf16.msra.mxu0 %v4301
    %4431 = vmatprep.subr.bf16.mxu0 %v4304
    %4432 = vmatpush1.bf16.msra.mxu0 %v4303
    %4433 = vmatprep.subr.bf16.mxu0 %v4306
    %4434 = vmatpush1.bf16.msra.mxu0 %v4305
    %4435 = vmatprep.subr.bf16.mxu0 %v4308
    %4436 = vmatpush1.bf16.msra.mxu0 %v4307
    %4437 = vmatprep.subr.bf16.mxu0 %v4310
    %4438 = vmatpush1.bf16.msra.mxu0 %v4309
    %4439 = vmatprep.mubr.bf16.mxu0 %v4008
    %4440 = vmatmul.mubr.bf16.gmra.mrb[0].mxu0 %v4007
    %v4441 = vpop.f32.mrb[0].mxu0
    %v4442 = vadd.f32 %v4080, %v4441
    %v4443 = vpop.f32.mrb[0].mxu0
    %v4444 = vadd.f32 %v4084, %v4443
    %v4445 = vpop.f32.mrb[0].mxu0
    %v4446 = vpop.f32.mrb[0].mxu0
    %4447 = vdwg.mxu0
    %4448 = vmatprep.subr.bf16.mxu0 %v4312
    %4449 = vmatpush1.bf16.msra.mxu0 %v4311
    %4450 = vmatprep.subr.bf16.mxu0 %v4314
    %4451 = vmatpush1.bf16.msra.mxu0 %v4313
    %4452 = vmatprep.subr.bf16.mxu0 %v4316
    %4453 = vmatpush1.bf16.msra.mxu0 %v4315
    %4454 = vmatprep.subr.bf16.mxu0 %v4318
    %4455 = vmatpush1.bf16.msra.mxu0 %v4317
    %4456 = vmatprep.subr.bf16.mxu0 %v4320
    %4457 = vmatpush1.bf16.msra.mxu0 %v4319
    %4458 = vmatprep.subr.bf16.mxu0 %v4322
    %4459 = vmatpush1.bf16.msra.mxu0 %v4321
    %4460 = vmatprep.subr.bf16.mxu0 %v4324
    %4461 = vmatpush1.bf16.msra.mxu0 %v4323
    %4462 = vmatprep.subr.bf16.mxu0 %v4326
    %4463 = vmatpush1.bf16.msra.mxu0 %v4325
    %4464 = vmatprep.subr.bf16.mxu0 %v4328
    %4465 = vmatpush1.bf16.msra.mxu0 %v4327
    %4466 = vmatprep.subr.bf16.mxu0 %v4330
    %4467 = vmatpush1.bf16.msra.mxu0 %v4329
    %4468 = vmatprep.subr.bf16.mxu0 %v4332
    %4469 = vmatpush1.bf16.msra.mxu0 %v4331
    %4470 = vmatprep.subr.bf16.mxu0 %v4334
    %4471 = vmatpush1.bf16.msra.mxu0 %v4333
    %4472 = vmatprep.subr.bf16.mxu0 %v4336
    %4473 = vmatpush1.bf16.msra.mxu0 %v4335
    %4474 = vmatprep.subr.bf16.mxu0 %v4338
    %4475 = vmatpush1.bf16.msra.mxu0 %v4337
    %4476 = vmatprep.subr.bf16.mxu0 %v4340
    %4477 = vmatpush1.bf16.msra.mxu0 %v4339
    %4478 = vmatprep.subr.bf16.mxu0 %v4342
    %4479 = vmatpush1.bf16.msra.mxu0 %v4341
    %4480 = vmatprep.mubr.bf16.mxu0 %v4010
    %4481 = vmatmul.mubr.bf16.gmra.mrb[0].mxu0 %v4009
    %v4482 = vpop.f32.mrb[0].mxu0
    %v4483 = vadd.f32 %v4442, %v4482
    %v4484 = vpop.f32.mrb[0].mxu0
    %v4485 = vadd.f32 %v4444, %v4484
    %v4486 = vpop.f32.mrb[0].mxu0
    %v4487 = vpop.f32.mrb[0].mxu0
    %4488 = vdwg.mxu0
    %v4489 = vmax.f32 %v4483, 0.0
    %v4490 = vmax.f32 %v4485, 0.0
    %v4491 = vpack.c.bf16 %v4489, %v4489
    %v4492 = vpack.c.bf16 %v4490, %v4490
    %v4493 = vld [vmem:[#allocation10] sm:$0xf]
    %v4494 = vld [vmem:[#allocation10 + $0x4] sm:$0xf]
    %v4495 = vld [vmem:[#allocation10 + $0x8] sm:$0xf]
    %v4496 = vld [vmem:[#allocation10 + $0xc] sm:$0xf]
    %v4497 = vld [vmem:[#allocation10 + $0x10] sm:$0xf]
    %v4498 = vld [vmem:[#allocation10 + $0x14] sm:$0xf]
    %v4499 = vld [vmem:[#allocation10 + $0x18] sm:$0xf]
    %v4500 = vld [vmem:[#allocation10 + $0x1c] sm:$0xf]
    %v4501 = vld [vmem:[#allocation10 + $0x20] sm:$0xf]
    %v4502 = vld [vmem:[#allocation10 + $0x24] sm:$0xf]
    %v4503 = vld [vmem:[#allocation10 + $0x28] sm:$0xf]
    %v4504 = vld [vmem:[#allocation10 + $0x2c] sm:$0xf]
    %v4505 = vld [vmem:[#allocation10 + $0x30] sm:$0xf]
    %v4506 = vld [vmem:[#allocation10 + $0x34] sm:$0xf]
    %v4507 = vld [vmem:[#allocation10 + $0x38] sm:$0xf]
    %v4508 = vld [vmem:[#allocation10 + $0x3c] sm:$0xf]
    %v4509 = vld [vmem:[#allocation10 + $0x40] sm:$0xf]
    %v4510 = vld [vmem:[#allocation10 + $0x44] sm:$0xf]
    %v4511 = vld [vmem:[#allocation10 + $0x48] sm:$0xf]
    %v4512 = vld [vmem:[#allocation10 + $0x4c] sm:$0xf]
    %v4513 = vld [vmem:[#allocation10 + $0x50] sm:$0xf]
    %v4514 = vld [vmem:[#allocation10 + $0x54] sm:$0xf]
    %v4515 = vld [vmem:[#allocation10 + $0x58] sm:$0xf]
    %v4516 = vld [vmem:[#allocation10 + $0x5c] sm:$0xf]
    %v4517 = vld [vmem:[#allocation10 + $0x60] sm:$0xf]
    %v4518 = vld [vmem:[#allocation10 + $0x64] sm:$0xf]
    %v4519 = vld [vmem:[#allocation10 + $0x68] sm:$0xf]
    %v4520 = vld [vmem:[#allocation10 + $0x6c] sm:$0xf]
    %v4521 = vld [vmem:[#allocation10 + $0x70] sm:$0xf]
    %v4522 = vld [vmem:[#allocation10 + $0x74] sm:$0xf]
    %v4523 = vld [vmem:[#allocation10 + $0x78] sm:$0xf]
    %v4524 = vld [vmem:[#allocation10 + $0x7c] sm:$0xf]
    %v4525 = vld [vmem:[#allocation12] sm:$0x1]
    %v4527 = vlaneseq
    %v4528 = vshrl.u32 %v4527, 7
    %v4529 = vsub.s32 0, %v4528
    %v4530 = vrot.slane %v4525, %v4529
    %v4564 = vunpack.c.l.b16 %v4493
    %v4565 = vunpack.c.l.b16 %v4494
    %v4566 = vunpack.c.l.b16 %v4495
    %v4567 = vunpack.c.l.b16 %v4496
    %v4568 = vunpack.c.l.b16 %v4497
    %v4569 = vunpack.c.l.b16 %v4498
    %v4570 = vunpack.c.l.b16 %v4499
    %v4571 = vunpack.c.l.b16 %v4500
    %v4572 = vunpack.c.l.b16 %v4501
    %v4573 = vunpack.c.l.b16 %v4502
    %v4574 = vunpack.c.l.b16 %v4503
    %v4575 = vunpack.c.l.b16 %v4504
    %v4576 = vunpack.c.l.b16 %v4505
    %v4577 = vunpack.c.l.b16 %v4506
    %v4578 = vunpack.c.l.b16 %v4507
    %v4579 = vunpack.c.l.b16 %v4508
    %v4580 = vunpack.c.l.b16 %v4509
    %v4581 = vunpack.c.l.b16 %v4510
    %v4582 = vunpack.c.l.b16 %v4511
    %v4583 = vunpack.c.l.b16 %v4512
    %v4584 = vunpack.c.l.b16 %v4513
    %v4585 = vunpack.c.l.b16 %v4514
    %v4586 = vunpack.c.l.b16 %v4515
    %v4587 = vunpack.c.l.b16 %v4516
    %v4588 = vunpack.c.l.b16 %v4517
    %v4589 = vunpack.c.l.b16 %v4518
    %v4590 = vunpack.c.l.b16 %v4519
    %v4591 = vunpack.c.l.b16 %v4520
    %v4592 = vunpack.c.l.b16 %v4521
    %v4593 = vunpack.c.l.b16 %v4522
    %v4594 = vunpack.c.l.b16 %v4523
    %v4595 = vunpack.c.l.b16 %v4524
    %v4596 = vpack.c.b16 %v4565, %v4564
    %v4597 = vpack.c.b16 %v4567, %v4566
    %v4598 = vpack.c.b16 %v4569, %v4568
    %v4599 = vpack.c.b16 %v4571, %v4570
    %v4600 = vpack.c.b16 %v4573, %v4572
    %v4601 = vpack.c.b16 %v4575, %v4574
    %v4602 = vpack.c.b16 %v4577, %v4576
    %v4603 = vpack.c.b16 %v4579, %v4578
    %v4604 = vpack.c.b16 %v4581, %v4580
    %v4605 = vpack.c.b16 %v4583, %v4582
    %v4606 = vpack.c.b16 %v4585, %v4584
    %v4607 = vpack.c.b16 %v4587, %v4586
    %v4608 = vpack.c.b16 %v4589, %v4588
    %v4609 = vpack.c.b16 %v4591, %v4590
    %v4610 = vpack.c.b16 %v4593, %v4592
    %v4611 = vpack.c.b16 %v4595, %v4594
    %4628 = vmatprep.subr.bf16.mxu0 0
    %4629 = vmatpush1.bf16.msra.mxu0 %v4596
    %4630 = vmatprep.subr.bf16.mxu0 0
    %4631 = vmatpush1.bf16.msra.mxu0 %v4597
    %4632 = vmatprep.subr.bf16.mxu0 0
    %4633 = vmatpush1.bf16.msra.mxu0 %v4598
    %4634 = vmatprep.subr.bf16.mxu0 0
    %4635 = vmatpush1.bf16.msra.mxu0 %v4599
    %4636 = vmatprep.subr.bf16.mxu0 0
    %4637 = vmatpush1.bf16.msra.mxu0 %v4600
    %4638 = vmatprep.subr.bf16.mxu0 0
    %4639 = vmatpush1.bf16.msra.mxu0 %v4601
    %4640 = vmatprep.subr.bf16.mxu0 0
    %4641 = vmatpush1.bf16.msra.mxu0 %v4602
    %4642 = vmatprep.subr.bf16.mxu0 0
    %4643 = vmatpush1.bf16.msra.mxu0 %v4603
    %4644 = vmatprep.subr.bf16.mxu0 0
    %4645 = vmatpush1.bf16.msra.mxu0 %v4604
    %4646 = vmatprep.subr.bf16.mxu0 0
    %4647 = vmatpush1.bf16.msra.mxu0 %v4605
    %4648 = vmatprep.subr.bf16.mxu0 0
    %4649 = vmatpush1.bf16.msra.mxu0 %v4606
    %4650 = vmatprep.subr.bf16.mxu0 0
    %4651 = vmatpush1.bf16.msra.mxu0 %v4607
    %4652 = vmatprep.subr.bf16.mxu0 0
    %4653 = vmatpush1.bf16.msra.mxu0 %v4608
    %4654 = vmatprep.subr.bf16.mxu0 0
    %4655 = vmatpush1.bf16.msra.mxu0 %v4609
    %4656 = vmatprep.subr.bf16.mxu0 0
    %4657 = vmatpush1.bf16.msra.mxu0 %v4610
    %4658 = vmatprep.subr.bf16.mxu0 0
    %4659 = vmatpush1.bf16.msra.mxu0 %v4611
    %4660 = vmatprep.mubr.bf16.mxu0 %v4492
    %4661 = vmatmul.mubr.bf16.gmra.mrb[0].mxu0 %v4491
    %v4662 = vpop.f32.mrb[0].mxu0
    %v4663 = vadd.f32 %v4530, %v4662
    %v4664 = vpop.f32.mrb[0].mxu0
    %v4665 = vpop.f32.mrb[0].mxu0
    %v4666 = vpop.f32.mrb[0].mxu0
    %4667 = vdwg.mxu0
    %v4668 = vmax.f32 %v4663, 0.0
    %v4669 = vpack.c.bf16 %v4668, %v4668
    %v4670 = vld [vmem:[#allocation13] sm:$0xf]
    %v4671 = vld [vmem:[#allocation13 + $0x4] sm:$0xf]
    %v4672 = vld [vmem:[#allocation13 + $0x8] sm:$0xf]
    %v4673 = vld [vmem:[#allocation13 + $0xc] sm:$0xf]
    %v4674 = vld [vmem:[#allocation13 + $0x10] sm:$0xf]
    %v4675 = vld [vmem:[#allocation13 + $0x14] sm:$0xf]
    %v4676 = vld [vmem:[#allocation13 + $0x18] sm:$0xf]
    %v4677 = vld [vmem:[#allocation13 + $0x1c] sm:$0xf]
    %v4678 = vld [vmem:[#allocation13 + $0x20] sm:$0xf]
    %v4679 = vld [vmem:[#allocation13 + $0x24] sm:$0xf]
    %v4680 = vld [vmem:[#allocation13 + $0x28] sm:$0xf]
    %v4681 = vld [vmem:[#allocation13 + $0x2c] sm:$0xf]
    %v4682 = vld [vmem:[#allocation13 + $0x30] sm:$0xf]
    %v4683 = vld [vmem:[#allocation13 + $0x34] sm:$0xf]
    %v4684 = vld [vmem:[#allocation13 + $0x38] sm:$0xf]
    %v4685 = vld [vmem:[#allocation13 + $0x3c] sm:$0xf]
    %v4686 = vld [vmem:[#allocation15] sm:$0x1]
    %v4688 = vlaneseq
    %v4689 = vshrl.u32 %v4688, 7
    %v4690 = vsub.s32 0, %v4689
    %v4691 = vrot.slane %v4686, %v4690
    %v4709 = vunpack.c.l.b16 %v4670
    %v4710 = vunpack.c.l.b16 %v4671
    %v4711 = vunpack.c.l.b16 %v4672
    %v4712 = vunpack.c.l.b16 %v4673
    %v4713 = vunpack.c.l.b16 %v4674
    %v4714 = vunpack.c.l.b16 %v4675
    %v4715 = vunpack.c.l.b16 %v4676
    %v4716 = vunpack.c.l.b16 %v4677
    %v4717 = vunpack.c.l.b16 %v4678
    %v4718 = vunpack.c.l.b16 %v4679
    %v4719 = vunpack.c.l.b16 %v4680
    %v4720 = vunpack.c.l.b16 %v4681
    %v4721 = vunpack.c.l.b16 %v4682
    %v4722 = vunpack.c.l.b16 %v4683
    %v4723 = vunpack.c.l.b16 %v4684
    %v4724 = vunpack.c.l.b16 %v4685
    %v4725 = vpack.c.b16 %v4710, %v4709
    %v4726 = vpack.c.b16 %v4712, %v4711
    %v4727 = vpack.c.b16 %v4714, %v4713
    %v4728 = vpack.c.b16 %v4716, %v4715
    %v4729 = vpack.c.b16 %v4718, %v4717
    %v4730 = vpack.c.b16 %v4720, %v4719
    %v4731 = vpack.c.b16 %v4722, %v4721
    %v4732 = vpack.c.b16 %v4724, %v4723
    %4741 = vmatprep.subr.bf16.mxu0 0
    %4742 = vmatpush1.bf16.msra.mxu0 %v4725
    %4743 = vmatprep.subr.bf16.mxu0 0
    %4744 = vmatpush1.bf16.msra.mxu0 %v4726
    %4745 = vmatprep.subr.bf16.mxu0 0
    %4746 = vmatpush1.bf16.msra.mxu0 %v4727
    %4747 = vmatprep.subr.bf16.mxu0 0
    %4748 = vmatpush1.bf16.msra.mxu0 %v4728
    %4749 = vmatprep.subr.bf16.mxu0 0
    %4750 = vmatpush1.bf16.msra.mxu0 %v4729
    %4751 = vmatprep.subr.bf16.mxu0 0
    %4752 = vmatpush1.bf16.msra.mxu0 %v4730
    %4753 = vmatprep.subr.bf16.mxu0 0
    %4754 = vmatpush1.bf16.msra.mxu0 %v4731
    %4755 = vmatprep.subr.bf16.mxu0 0
    %4756 = vmatpush1.bf16.msra.mxu0 %v4732
    %4757 = vmatprep.subr.bf16.mxu0 0
    %4758 = vmatpush1.bf16.msra.mxu0 0
    %4759 = vmatprep.subr.bf16.mxu0 0
    %4760 = vmatpush1.bf16.msra.mxu0 0
    %4761 = vmatprep.subr.bf16.mxu0 0
    %4762 = vmatpush1.bf16.msra.mxu0 0
    %4763 = vmatprep.subr.bf16.mxu0 0
    %4764 = vmatpush1.bf16.msra.mxu0 0
    %4765 = vmatprep.subr.bf16.mxu0 0
    %4766 = vmatpush1.bf16.msra.mxu0 0
    %4767 = vmatprep.subr.bf16.mxu0 0
    %4768 = vmatpush1.bf16.msra.mxu0 0
    %4769 = vmatprep.subr.bf16.mxu0 0
    %4770 = vmatpush1.bf16.msra.mxu0 0
    %4771 = vmatprep.subr.bf16.mxu0 0
    %4772 = vmatpush1.bf16.msra.mxu0 0
    %4773 = vmatprep.mubr.bf16.mxu0 0
    %4774 = vmatmul.mubr.bf16.gmra.mrb[0].mxu0 %v4669
    %v4775 = vpop.f32.mrb[0].mxu0
    %v4776 = vadd.f32 %v4691, %v4775
    %v4777 = vpop.f32.mrb[0].mxu0
    %v4778 = vpop.f32.mrb[0].mxu0
    %v4779 = vpop.f32.mrb[0].mxu0
    %4780 = vdwg.mxu0
    %4781 = vst [vmem:[%s9] sm:$0x3] %v4776
    // Predicated region
    $region74: #{fused_head.1} parent=1 // pred_check
      _
    $region75: #{fused_head.1} parent=1 // pred_check_branch
      %4783 = sbr.rel (0) target = $region77
    $region76: #{fused_head.1} parent=1 // pred_region
      _
    $region77: #{fused_head.1} parent=1 // pred_fallthru
      _
    // Predicated region
    $region78: #{fused_head.1} parent=1 // pred_check
      _
    $region79: #{fused_head.1} parent=1 // pred_check_branch
      %4785 = sbr.rel (0) target = $region81
    $region80: #{fused_head.1} parent=1 // pred_region
      _
    $region81: #{fused_head.1} parent=1 // pred_fallthru
      _
    %4786 = vsyncpa [#allocation3], 1
    %4787 = vsyncpa [#allocation5], 1
    %4788 = vsyncpa [#allocation8], 1
    %4789 = vsyncpa [#allocation11], 1
    %4790 = vsyncpa [#allocation14], 1

</llo_original>
